<compile_context>
chip_gen: v6e
topology: v6e:2x2x1
jax: 0.10.0
libtpu: 0.0.40
codegen_flags: <defaults>
</compile_context>

<pallas_src>
import jax
import jax.numpy as jnp
from jax.experimental import pallas as pl
from jax.experimental.pallas import tpu as pltpu


def make_cross_attention_kernel(num_heads, head_dim):
    scale = head_dim ** (-0.5)

    def kernel(q_ref, x_ref, wq_ref, wk_ref, wv_ref, wp_ref, bp_ref, o_ref):
        # q_ref : (Nq, C)     query tokens for this batch element (batch squeezed)
        # x_ref : (Nk, C)     image tokens
        # wq_ref: (H, C, hd)  per-head q weight, (in, out) per head
        # wk_ref: (H, C, hd)  per-head k weight
        # wv_ref: (H, C, hd)  per-head v weight
        # wp_ref: (H, hd, C)  per-head output-projection weight
        # bp_ref: (1, C)      output-projection bias
        # o_ref : (Nq, C)
        H = num_heads
        nq, c = q_ref.shape
        nk, _ = x_ref.shape
        in_dtype = q_ref.dtype

        # Broadcast tokens across the head axis once; every matmul below is a
        # head-batched 3D einsum (leading batch dim) on the MXU.
        qb = jnp.broadcast_to(q_ref[...], (H, nq, c))
        xb = jnp.broadcast_to(x_ref[...], (H, nk, c))

        # Projections: contraction over the full C dim, f32 accumulation.
        qh = jnp.einsum('hnc,hcd->hnd', qb, wq_ref[...],
                        preferred_element_type=jnp.float32)      # (H, Nq, hd)
        kh = jnp.einsum('hnc,hcd->hnd', xb, wk_ref[...],
                        preferred_element_type=jnp.float32)      # (H, Nk, hd)
        vh = jnp.einsum('hnc,hcd->hnd', xb, wv_ref[...],
                        preferred_element_type=jnp.float32)      # (H, Nk, hd)

        # MXU operands stay in the input dtype (bf16 inputs are fed as bf16);
        # softmax math and all accumulations stay in f32.
        qh = (qh * scale).astype(in_dtype)
        kh = kh.astype(in_dtype)
        vh = vh.astype(in_dtype)

        s = jnp.einsum('hqd,hkd->hqk', qh, kh,
                       preferred_element_type=jnp.float32)       # (H, Nq, Nk)
        s = s - jnp.max(s, axis=-1, keepdims=True)
        p = jnp.exp(s)
        # approx=True -> EUP vrcp slot (otherwise idle here).
        p = p * pl.reciprocal(jnp.sum(p, axis=-1, keepdims=True), approx=True)
        # TODO(synk): attn_drop / proj_drop are identity (eval-mode dropout).

        ctx = jnp.einsum('hqk,hkd->hqd', p.astype(in_dtype), vh,
                         preferred_element_type=jnp.float32)     # (H, Nq, hd)

        # Output projection accumulated per head (no lane-dim concat of heads).
        proj = jnp.einsum('hqd,hdc->hqc', ctx.astype(in_dtype), wp_ref[...],
                          preferred_element_type=jnp.float32)    # (H, Nq, C)
        out = jnp.sum(proj, axis=0) + bp_ref[...].astype(jnp.float32)  # (Nq, C)
        o_ref[...] = out.astype(o_ref.dtype)

    return kernel


def cross_attention(query, image_token, wq, wkv, wp, bp, num_heads):
    """query: (B, Nq, C), image_token: (B, Nk, C). Returns (B, Nq, C)."""
    B, Nq, C = query.shape
    Bi, Nk, Ci = image_token.shape
    assert B == Bi and C == Ci
    assert C % num_heads == 0
    H = num_heads
    hd = C // H

    # One-time wrapper-side weight prep (PyTorch convention W:(out, in)):
    #   transpose to (in, out), split kv into k/v, split per head.
    wq_h = jnp.transpose(wq.T.reshape(C, H, hd), (1, 0, 2))        # (H, C, hd)
    wk_h = jnp.transpose(wkv[:C].T.reshape(C, H, hd), (1, 0, 2))   # (H, C, hd)
    wv_h = jnp.transpose(wkv[C:].T.reshape(C, H, hd), (1, 0, 2))   # (H, C, hd)
    wp_h = wp.T.reshape(H, hd, C)                                  # (H, hd, C)
    bp2 = bp.reshape(1, C)

    kernel = make_cross_attention_kernel(H, hd)

    # Weights are grid-invariant -> single-buffer them (halves their VMEM use).
    def wspec(shape):
        return pl.BlockSpec(shape, lambda b: (0,) * len(shape),
                            pipeline_mode=pl.Buffered(1))

    return pl.pallas_call(
        kernel,
        out_shape=jax.ShapeDtypeStruct((B, Nq, C), query.dtype),
        grid_spec=pltpu.PrefetchScalarGridSpec(
            num_scalar_prefetch=0,
            grid=(B,),
            in_specs=[
                pl.BlockSpec((None, Nq, C), lambda b: (b, 0, 0)),   # query
                pl.BlockSpec((None, Nk, C), lambda b: (b, 0, 0)),   # image tokens
                wspec((H, C, hd)),                                  # Wq per head
                wspec((H, C, hd)),                                  # Wk per head
                wspec((H, C, hd)),                                  # Wv per head
                wspec((H, hd, C)),                                  # Wproj per head
                wspec((1, C)),                                      # proj bias
            ],
            out_specs=pl.BlockSpec((None, Nq, C), lambda b: (b, 0, 0)),
        ),
        compiler_params=pltpu.CompilerParams(
            dimension_semantics=("parallel",),   # batch axis feeds both TCs on v7x
            vmem_limit_bytes=32 * 1024 * 1024,
        ),
    )(query, image_token, wq_h, wk_h, wv_h, wp_h, bp2)


def cross_attention_ref(query, image_token, wq, wkv, wp, bp, num_heads):
    """Pure-JAX reference matching the PyTorch forward (eval mode)."""
    B, Nk, C = image_token.shape
    _, Nq, _ = query.shape
    hd = C // num_heads
    scale = hd ** (-0.5)
    kv = image_token @ wkv.T                                   # (B, Nk, 2C)
    kv = kv.reshape(B, Nk, 2, num_heads, hd).transpose(2, 0, 3, 1, 4)
    k, v = kv[0], kv[1]                                        # (B, H, Nk, hd)
    q = (query @ wq.T).reshape(B, Nq, num_heads, hd).transpose(0, 2, 1, 3)
    attn = (q @ jnp.swapaxes(k, -2, -1)) * scale
    attn = jax.nn.softmax(attn, axis=-1)
    x = (attn @ v).transpose(0, 2, 1, 3).reshape(B, Nq, C)
    return x @ wp.T + bp


if __name__ == "__main__":
    B, Nq, Nk, C, H = 2, 8, 16, 32, 8

    key = jax.random.PRNGKey(0)
    k_q, k_img, k_wq, k_wkv, k_wp, k_bp = jax.random.split(key, 6)

    query = jax.random.normal(k_q, (B, Nq, C), dtype=jnp.float32)
    image_token = jax.random.normal(k_img, (B, Nk, C), dtype=jnp.float32)

    # Deterministic parameter init (qkv_bias=False -> no q/kv bias; proj has bias).
    wq = jax.random.normal(k_wq, (C, C), dtype=jnp.float32) * 0.05
    wkv = jax.random.normal(k_wkv, (2 * C, C), dtype=jnp.float32) * 0.05
    wp = jax.random.normal(k_wp, (C, C), dtype=jnp.float32) * 0.05
    bp = jax.random.normal(k_bp, (C,), dtype=jnp.float32) * 0.05

    out = cross_attention(query, image_token, wq, wkv, wp, bp, H)
    out = jax.block_until_ready(out)

    ref = cross_attention_ref(query, image_token, wq, wkv, wp, bp, H)
    assert out.shape == (B, Nq, C)
    # Tolerance loosened slightly to admit the EUP approximate reciprocal in softmax.
    assert jnp.allclose(out, ref, atol=1e-3, rtol=1e-3), (
        f"max err {jnp.max(jnp.abs(out - ref))}")

    print("KERNEL_OK")
</pallas_src>

<mosaic_0001>
module attributes {stable_mosaic.version = 11 : i64} {
  func.func @kernel(%arg0: i32, %arg1: memref<1x8x32xf32, #tpu.memory_space<vmem>>, %arg2: memref<1x16x32xf32, #tpu.memory_space<vmem>>, %arg3: memref<8x32x4xf32, #tpu.memory_space<vmem>>, %arg4: memref<8x32x4xf32, #tpu.memory_space<vmem>>, %arg5: memref<8x32x4xf32, #tpu.memory_space<vmem>>, %arg6: memref<8x4x32xf32, #tpu.memory_space<vmem>>, %arg7: memref<1x32xf32, #tpu.memory_space<vmem>>, %arg8: memref<1x8x32xf32, #tpu.memory_space<vmem>>) attributes {dimension_semantics = [#tpu.dimension_semantics<parallel>], iteration_bounds = array<i64: 2>, scalar_prefetch = 0 : i64, scratch_operands = 0 : i64, tpu.core_type = #tpu.core_type<tc>, window_params = [{transform_indices = @transform_0, window_bounds = array<i64: 1, 8, 32>}, {transform_indices = @transform_1, window_bounds = array<i64: 1, 16, 32>}, {pipeline_mode = #tpu.pipeline_mode<synchronous>, transform_indices = @transform_2, window_bounds = array<i64: 8, 32, 4>}, {pipeline_mode = #tpu.pipeline_mode<synchronous>, transform_indices = @transform_3, window_bounds = array<i64: 8, 32, 4>}, {pipeline_mode = #tpu.pipeline_mode<synchronous>, transform_indices = @transform_4, window_bounds = array<i64: 8, 32, 4>}, {pipeline_mode = #tpu.pipeline_mode<synchronous>, transform_indices = @transform_5, window_bounds = array<i64: 8, 4, 32>}, {pipeline_mode = #tpu.pipeline_mode<synchronous>, transform_indices = @transform_6, window_bounds = array<i64: 1, 32>}, {transform_indices = @transform_7, window_bounds = array<i64: 1, 8, 32>}]} {
    %c0 = arith.constant 0 : index
    %c0_0 = arith.constant 0 : index
    %c0_1 = arith.constant 0 : index
    %0 = vector.load %arg1[%c0, %c0_0, %c0_1] : memref<1x8x32xf32, #tpu.memory_space<vmem>>, vector<1x8x32xf32>
    %1 = vector.shape_cast %0 : vector<1x8x32xf32> to vector<8x32xf32>
    %2 = vector.shape_cast %1 : vector<8x32xf32> to vector<1x8x32xf32>
    %3 = vector.broadcast %2 : vector<1x8x32xf32> to vector<8x8x32xf32>
    %c0_2 = arith.constant 0 : index
    %c0_3 = arith.constant 0 : index
    %c0_4 = arith.constant 0 : index
    %4 = vector.load %arg2[%c0_2, %c0_3, %c0_4] : memref<1x16x32xf32, #tpu.memory_space<vmem>>, vector<1x16x32xf32>
    %5 = vector.shape_cast %4 : vector<1x16x32xf32> to vector<16x32xf32>
    %6 = vector.shape_cast %5 : vector<16x32xf32> to vector<1x16x32xf32>
    %7 = vector.broadcast %6 : vector<1x16x32xf32> to vector<8x16x32xf32>
    %c0_5 = arith.constant 0 : index
    %c0_6 = arith.constant 0 : index
    %c0_7 = arith.constant 0 : index
    %8 = vector.load %arg3[%c0_5, %c0_6, %c0_7] : memref<8x32x4xf32, #tpu.memory_space<vmem>>, vector<8x32x4xf32>
    "tpu.trace_start"() <{level = 10 : i32, message = "hnc,hcd->hnd"}> : () -> ()
    %cst = arith.constant dense<0.000000e+00> : vector<8x8x4xf32>
    %9 = tpu.matmul %3, %8, %cst {dimension_numbers = #tpu.dot_dimension_numbers<[2], [1], [1], [2], [0, 0, 0, 1, 1, 2], [0], [0]>} : vector<8x8x32xf32>, vector<8x32x4xf32>, vector<8x8x4xf32> -> vector<8x8x4xf32>
    "tpu.trace_stop"() : () -> ()
    %c0_8 = arith.constant 0 : index
    %c0_9 = arith.constant 0 : index
    %c0_10 = arith.constant 0 : index
    %10 = vector.load %arg4[%c0_8, %c0_9, %c0_10] : memref<8x32x4xf32, #tpu.memory_space<vmem>>, vector<8x32x4xf32>
    "tpu.trace_start"() <{level = 10 : i32, message = "hnc,hcd->hnd"}> : () -> ()
    %cst_11 = arith.constant dense<0.000000e+00> : vector<8x16x4xf32>
    %11 = tpu.matmul %7, %10, %cst_11 {dimension_numbers = #tpu.dot_dimension_numbers<[2], [1], [1], [2], [0, 0, 0, 1, 1, 2], [0], [0]>} : vector<8x16x32xf32>, vector<8x32x4xf32>, vector<8x16x4xf32> -> vector<8x16x4xf32>
    "tpu.trace_stop"() : () -> ()
    %c0_12 = arith.constant 0 : index
    %c0_13 = arith.constant 0 : index
    %c0_14 = arith.constant 0 : index
    %12 = vector.load %arg5[%c0_12, %c0_13, %c0_14] : memref<8x32x4xf32, #tpu.memory_space<vmem>>, vector<8x32x4xf32>
    "tpu.trace_start"() <{level = 10 : i32, message = "hnc,hcd->hnd"}> : () -> ()
    %cst_15 = arith.constant dense<0.000000e+00> : vector<8x16x4xf32>
    %13 = tpu.matmul %7, %12, %cst_15 {dimension_numbers = #tpu.dot_dimension_numbers<[2], [1], [1], [2], [0, 0, 0, 1, 1, 2], [0], [0]>} : vector<8x16x32xf32>, vector<8x32x4xf32>, vector<8x16x4xf32> -> vector<8x16x4xf32>
    "tpu.trace_stop"() : () -> ()
    %cst_16 = arith.constant 5.000000e-01 : f32
    %14 = vector.broadcast %cst_16 : f32 to vector<8x8x4xf32>
    %15 = arith.mulf %9, %14 : vector<8x8x4xf32>
    "tpu.trace_start"() <{level = 10 : i32, message = "hqd,hkd->hqk"}> : () -> ()
    %cst_17 = arith.constant dense<0.000000e+00> : vector<8x8x16xf32>
    %16 = tpu.matmul %15, %11, %cst_17 {dimension_numbers = #tpu.dot_dimension_numbers<[2], [2], [1], [1], [0, 0, 0, 1, 1, 1], [0], [0]>} : vector<8x8x4xf32>, vector<8x16x4xf32>, vector<8x8x16xf32> -> vector<8x8x16xf32>
    "tpu.trace_stop"() : () -> ()
    %cst_18 = arith.constant dense<0xFF800000> : vector<8x8xf32>
    %17 = vector.multi_reduction <maximumf>, %16, %cst_18 [2] : vector<8x8x16xf32> to vector<8x8xf32>
    %18 = vector.shape_cast %17 : vector<8x8xf32> to vector<8x8x1xf32>
    %19 = vector.broadcast %18 : vector<8x8x1xf32> to vector<8x8x16xf32>
    %20 = arith.subf %16, %19 : vector<8x8x16xf32>
    %21 = math.exp %20 : vector<8x8x16xf32>
    %cst_19 = arith.constant dense<0.000000e+00> : vector<8x8xf32>
    %22 = vector.multi_reduction <add>, %21, %cst_19 [2] : vector<8x8x16xf32> to vector<8x8xf32>
    %23 = vector.shape_cast %22 : vector<8x8xf32> to vector<8x8x1xf32>
    %24 = tpu.reciprocal %23 {approx = true} : vector<8x8x1xf32> -> vector<8x8x1xf32>
    %25 = vector.broadcast %24 : vector<8x8x1xf32> to vector<8x8x16xf32>
    %26 = arith.mulf %21, %25 : vector<8x8x16xf32>
    "tpu.trace_start"() <{level = 10 : i32, message = "hqk,hkd->hqd"}> : () -> ()
    %cst_20 = arith.constant dense<0.000000e+00> : vector<8x8x4xf32>
    %27 = tpu.matmul %26, %13, %cst_20 {dimension_numbers = #tpu.dot_dimension_numbers<[2], [1], [1], [2], [0, 0, 0, 1, 1, 2], [0], [0]>} : vector<8x8x16xf32>, vector<8x16x4xf32>, vector<8x8x4xf32> -> vector<8x8x4xf32>
    "tpu.trace_stop"() : () -> ()
    %c0_21 = arith.constant 0 : index
    %c0_22 = arith.constant 0 : index
    %c0_23 = arith.constant 0 : index
    %28 = vector.load %arg6[%c0_21, %c0_22, %c0_23] : memref<8x4x32xf32, #tpu.memory_space<vmem>>, vector<8x4x32xf32>
    "tpu.trace_start"() <{level = 10 : i32, message = "hqd,hdc->hqc"}> : () -> ()
    %cst_24 = arith.constant dense<0.000000e+00> : vector<8x8x32xf32>
    %29 = tpu.matmul %27, %28, %cst_24 {dimension_numbers = #tpu.dot_dimension_numbers<[2], [1], [1], [2], [0, 0, 0, 1, 1, 2], [0], [0]>} : vector<8x8x4xf32>, vector<8x4x32xf32>, vector<8x8x32xf32> -> vector<8x8x32xf32>
    "tpu.trace_stop"() : () -> ()
    %cst_25 = arith.constant dense<0.000000e+00> : vector<8x32xf32>
    %30 = vector.multi_reduction <add>, %29, %cst_25 [0] : vector<8x8x32xf32> to vector<8x32xf32>
    %c0_26 = arith.constant 0 : index
    %c0_27 = arith.constant 0 : index
    %31 = vector.load %arg7[%c0_26, %c0_27] : memref<1x32xf32, #tpu.memory_space<vmem>>, vector<1x32xf32>
    %32 = vector.broadcast %31 : vector<1x32xf32> to vector<8x32xf32>
    %33 = arith.addf %30, %32 : vector<8x32xf32>
    %c0_28 = arith.constant 0 : index
    %c0_29 = arith.constant 0 : index
    %c0_30 = arith.constant 0 : index
    %34 = vector.load %arg8[%c0_28, %c0_29, %c0_30] : memref<1x8x32xf32, #tpu.memory_space<vmem>>, vector<1x8x32xf32>
    %35 = vector.shape_cast %34 : vector<1x8x32xf32> to vector<8x32xf32>
    %36 = vector.shape_cast %33 : vector<8x32xf32> to vector<1x8x32xf32>
    tpu.vector_store %arg8[%c0_28, %c0_29, %c0_30], %36 {strides = array<i32>} : memref<1x8x32xf32, #tpu.memory_space<vmem>>, vector<1x8x32xf32>,
    return
  }
  func.func @transform_0(%arg0: i32) -> (i32, i32, i32) {
    %c0_i32 = arith.constant 0 : i32
    %c0_i32_0 = arith.constant 0 : i32
    %c0_i32_1 = arith.constant 0 : i32
    return %arg0, %c0_i32, %c0_i32_0 : i32, i32, i32
  }
  func.func @transform_1(%arg0: i32) -> (i32, i32, i32) {
    %c0_i32 = arith.constant 0 : i32
    %c0_i32_0 = arith.constant 0 : i32
    %c0_i32_1 = arith.constant 0 : i32
    return %arg0, %c0_i32, %c0_i32_0 : i32, i32, i32
  }
  func.func @transform_2(%arg0: i32) -> (i32, i32, i32) {
    %c0_i32 = arith.constant 0 : i32
    %c0_i32_0 = arith.constant 0 : i32
    %c0_i32_1 = arith.constant 0 : i32
    %c0_i32_2 = arith.constant 0 : i32
    return %c0_i32, %c0_i32_0, %c0_i32_1 : i32, i32, i32
  }
  func.func @transform_3(%arg0: i32) -> (i32, i32, i32) {
    %c0_i32 = arith.constant 0 : i32
    %c0_i32_0 = arith.constant 0 : i32
    %c0_i32_1 = arith.constant 0 : i32
    %c0_i32_2 = arith.constant 0 : i32
    return %c0_i32, %c0_i32_0, %c0_i32_1 : i32, i32, i32
  }
  func.func @transform_4(%arg0: i32) -> (i32, i32, i32) {
    %c0_i32 = arith.constant 0 : i32
    %c0_i32_0 = arith.constant 0 : i32
    %c0_i32_1 = arith.constant 0 : i32
    %c0_i32_2 = arith.constant 0 : i32
    return %c0_i32, %c0_i32_0, %c0_i32_1 : i32, i32, i32
  }
  func.func @transform_5(%arg0: i32) -> (i32, i32, i32) {
    %c0_i32 = arith.constant 0 : i32
    %c0_i32_0 = arith.constant 0 : i32
    %c0_i32_1 = arith.constant 0 : i32
    %c0_i32_2 = arith.constant 0 : i32
    return %c0_i32, %c0_i32_0, %c0_i32_1 : i32, i32, i32
  }
  func.func @transform_6(%arg0: i32) -> (i32, i32) {
    %c0_i32 = arith.constant 0 : i32
    %c0_i32_0 = arith.constant 0 : i32
    %c0_i32_1 = arith.constant 0 : i32
    return %c0_i32, %c0_i32_0 : i32, i32
  }
  func.func @transform_7(%arg0: i32) -> (i32, i32, i32) {
    %c0_i32 = arith.constant 0 : i32
    %c0_i32_0 = arith.constant 0 : i32
    %c0_i32_1 = arith.constant 0 : i32
    return %arg0, %c0_i32, %c0_i32_0 : i32, i32, i32
  }
}

</mosaic_0001>

<llo_original>
// kernel: tpu_custom_call.1
$region0: #{tpu_custom_call.1}
  #allocation0 [shape = 'u32[]', space=smem, size = 0x4, offset = 0x4, fixed_abs, tag = 'smem constant byte address 0x4 - core index']
  #allocation1 [shape = 'u32[144,128]{1,0:T(1,128)}', space=vmem, size = 0x12000, scoped, tag = 'internal scratch']
  %s0 = inlined_call_operand.vmem [shape: f32[2,8,32], index: 0, kind: input, shape index: {}]
  %s1 = inlined_call_operand.vmem [shape: f32[2,16,32], index: 1, kind: input, shape index: {}]
  %s2 = inlined_call_operand.vmem [shape: f32[8,32,4], index: 2, kind: input, shape index: {}]
  %s3 = inlined_call_operand.vmem [shape: f32[8,32,4], index: 3, kind: input, shape index: {}]
  %s4 = inlined_call_operand.vmem [shape: f32[8,32,4], index: 4, kind: input, shape index: {}]
  %s5 = inlined_call_operand.vmem [shape: f32[8,4,32], index: 5, kind: input, shape index: {}]
  %s6 = inlined_call_operand.vmem [shape: f32[1,32], index: 6, kind: input, shape index: {}]
  %s7 = inlined_call_operand.hbm [shape: f32[2,8,32], index: 7, kind: output, shape index: {}]
  %s8 = sld [smem:[#allocation0]]
  $region61: #{tpu_custom_call.1} parent=0
    _
  %s10 = ssub.s32 1, %s8
  %s11 = scalar_select 0, %s10, %s8
  $region1: #{tpu_custom_call.1} parent=0
    #allocation2 [shape = 'u8[8192]{0}', space=vmem, size = 0x2000, scoped, tag = 'output window, operand 0']
    #allocation3 [shape = 's32[2]{0}', space=sflag, size = 0x8, scoped, tag = 'scoped memory for tpu_custom_call.1']
    %12 = vsyncpa [#allocation3], 0
    %s13 = scalar_lea.sflag [#allocation3], 1
    %14 = vsyncpa %s13, 0
    loop: start=0, step=1, limit=4
    $region2: #{tpu_custom_call.1} parent=1 // loop_pre_header
      _
    $region3: #{tpu_custom_call.1} parent=1 // loop_header
      %s16 = sphi 0, %s20
      %p17 = scmp.ge.s32.totalorder %s16, 4
      %s26 = sphi 0, %s28
      %s29 = sphi 0, %s26
      %s30 = sphi 0, %s29
      %s46 = sphi 0, %s30
      %s52 = sphi 0, %s54
      %s55 = sphi 0, %s52
      %s56 = sphi 0, %s55
      %s72 = sphi 0, %s56
      %s76 = sphi 0, %s76
      %s78 = sphi 0, %s76
      %s79 = sphi 0, %s78
      %s93 = sphi 0, %s79
      %s97 = sphi 0, %s97
      %s99 = sphi 0, %s97
      %s100 = sphi 0, %s99
      %s114 = sphi 0, %s100
      %s118 = sphi 0, %s118
      %s120 = sphi 0, %s118
      %s121 = sphi 0, %s120
      %s135 = sphi 0, %s121
      %s139 = sphi 0, %s139
      %s141 = sphi 0, %s139
      %s142 = sphi 0, %s141
      %s156 = sphi 0, %s142
      %s160 = sphi 0, %s160
      %s162 = sphi 0, %s160
      %s163 = sphi 0, %s162
      %s177 = sphi 0, %s163
      %s183 = sphi 0, %s185
      %s186 = sphi 0, %s183
      %s187 = sphi 0, %s186
      %s203 = sphi 0, %s187
    $region4: #{tpu_custom_call.1} parent=1 // loop_header_branch
      %19 = sbr.rel (%p17) target = $region8
    $region5: #{tpu_custom_call.1} parent=1 // loop_body
      %s21 = ssub.s32 %s16, 1
      %s22 = ssub.s32 %s16, 2
      %s23 = sadd.s32 %s16, 1
      %s24 = ssub.s32 %s16, %s23
      %p25 = scmp.eq.s32.totalorder %s24, 0
      %s27 = sadd.s32 %s26, 1
      %s28 = scalar_select %p25, %s26, %s27
      %p31 = pneg %p25
      %p32 = scmp.eq.s32.totalorder %s16, 1
      %p33 = por %p31, %p32
      %p34 = scmp.ne.s32.totalorder %s26, %s29
      %p35 = scmp.eq.s32.totalorder %s16, 0
      %p36 = por %p34, %p35
      %p37 = scmp.ne.s32.totalorder %s26, %s29
      %p38 = scmp.eq.s32.totalorder %s21, 1
      %p39 = por %p37, %p38
      %p40 = scmp.ne.s32.totalorder %s29, %s30
      %p41 = scmp.eq.s32.totalorder %s21, 0
      %p42 = por %p40, %p41
      %p43 = scmp.ne.s32.totalorder %s29, %s30
      %p44 = scmp.eq.s32.totalorder %s22, 1
      %p45 = por %p43, %p44
      %p47 = scmp.ne.s32.totalorder %s30, %s46
      %p48 = scmp.eq.s32.totalorder %s22, 0
      %p49 = por %p47, %p48
      %s50 = ssub.s32 %s16, %s23
      %p51 = scmp.eq.s32.totalorder %s50, 0
      %s53 = sadd.s32 %s52, 1
      %s54 = scalar_select %p51, %s52, %s53
      %p57 = pneg %p51
      %p58 = scmp.eq.s32.totalorder %s16, 1
      %p59 = por %p57, %p58
      %p60 = scmp.ne.s32.totalorder %s52, %s55
      %p61 = scmp.eq.s32.totalorder %s16, 0
      %p62 = por %p60, %p61
      %p63 = scmp.ne.s32.totalorder %s52, %s55
      %p64 = scmp.eq.s32.totalorder %s21, 1
      %p65 = por %p63, %p64
      %p66 = scmp.ne.s32.totalorder %s55, %s56
      %p67 = scmp.eq.s32.totalorder %s21, 0
      %p68 = por %p66, %p67
      %p69 = scmp.ne.s32.totalorder %s55, %s56
      %p70 = scmp.eq.s32.totalorder %s22, 1
      %p71 = por %p69, %p70
      %p73 = scmp.ne.s32.totalorder %s56, %s72
      %p74 = scmp.eq.s32.totalorder %s22, 0
      %p75 = por %p73, %p74
      %s77 = sadd.s32 %s76, 1
      %p80 = scmp.eq.s32.totalorder %s16, 1
      %p81 = scmp.ne.s32.totalorder %s76, %s78
      %p82 = scmp.eq.s32.totalorder %s16, 0
      %p83 = por %p81, %p82
      %p84 = scmp.ne.s32.totalorder %s76, %s78
      %p85 = scmp.eq.s32.totalorder %s21, 1
      %p86 = por %p84, %p85
      %p87 = scmp.ne.s32.totalorder %s78, %s79
      %p88 = scmp.eq.s32.totalorder %s21, 0
      %p89 = por %p87, %p88
      %p90 = scmp.ne.s32.totalorder %s78, %s79
      %p91 = scmp.eq.s32.totalorder %s22, 1
      %p92 = por %p90, %p91
      %p94 = scmp.ne.s32.totalorder %s79, %s93
      %p95 = scmp.eq.s32.totalorder %s22, 0
      %p96 = por %p94, %p95
      %s98 = sadd.s32 %s97, 1
      %p101 = scmp.eq.s32.totalorder %s16, 1
      %p102 = scmp.ne.s32.totalorder %s97, %s99
      %p103 = scmp.eq.s32.totalorder %s16, 0
      %p104 = por %p102, %p103
      %p105 = scmp.ne.s32.totalorder %s97, %s99
      %p106 = scmp.eq.s32.totalorder %s21, 1
      %p107 = por %p105, %p106
      %p108 = scmp.ne.s32.totalorder %s99, %s100
      %p109 = scmp.eq.s32.totalorder %s21, 0
      %p110 = por %p108, %p109
      %p111 = scmp.ne.s32.totalorder %s99, %s100
      %p112 = scmp.eq.s32.totalorder %s22, 1
      %p113 = por %p111, %p112
      %p115 = scmp.ne.s32.totalorder %s100, %s114
      %p116 = scmp.eq.s32.totalorder %s22, 0
      %p117 = por %p115, %p116
      %s119 = sadd.s32 %s118, 1
      %p122 = scmp.eq.s32.totalorder %s16, 1
      %p123 = scmp.ne.s32.totalorder %s118, %s120
      %p124 = scmp.eq.s32.totalorder %s16, 0
      %p125 = por %p123, %p124
      %p126 = scmp.ne.s32.totalorder %s118, %s120
      %p127 = scmp.eq.s32.totalorder %s21, 1
      %p128 = por %p126, %p127
      %p129 = scmp.ne.s32.totalorder %s120, %s121
      %p130 = scmp.eq.s32.totalorder %s21, 0
      %p131 = por %p129, %p130
      %p132 = scmp.ne.s32.totalorder %s120, %s121
      %p133 = scmp.eq.s32.totalorder %s22, 1
      %p134 = por %p132, %p133
      %p136 = scmp.ne.s32.totalorder %s121, %s135
      %p137 = scmp.eq.s32.totalorder %s22, 0
      %p138 = por %p136, %p137
      %s140 = sadd.s32 %s139, 1
      %p143 = scmp.eq.s32.totalorder %s16, 1
      %p144 = scmp.ne.s32.totalorder %s139, %s141
      %p145 = scmp.eq.s32.totalorder %s16, 0
      %p146 = por %p144, %p145
      %p147 = scmp.ne.s32.totalorder %s139, %s141
      %p148 = scmp.eq.s32.totalorder %s21, 1
      %p149 = por %p147, %p148
      %p150 = scmp.ne.s32.totalorder %s141, %s142
      %p151 = scmp.eq.s32.totalorder %s21, 0
      %p152 = por %p150, %p151
      %p153 = scmp.ne.s32.totalorder %s141, %s142
      %p154 = scmp.eq.s32.totalorder %s22, 1
      %p155 = por %p153, %p154
      %p157 = scmp.ne.s32.totalorder %s142, %s156
      %p158 = scmp.eq.s32.totalorder %s22, 0
      %p159 = por %p157, %p158
      %s161 = sadd.s32 %s160, 1
      %p164 = scmp.eq.s32.totalorder %s16, 1
      %p165 = scmp.ne.s32.totalorder %s160, %s162
      %p166 = scmp.eq.s32.totalorder %s16, 0
      %p167 = por %p165, %p166
      %p168 = scmp.ne.s32.totalorder %s160, %s162
      %p169 = scmp.eq.s32.totalorder %s21, 1
      %p170 = por %p168, %p169
      %p171 = scmp.ne.s32.totalorder %s162, %s163
      %p172 = scmp.eq.s32.totalorder %s21, 0
      %p173 = por %p171, %p172
      %p174 = scmp.ne.s32.totalorder %s162, %s163
      %p175 = scmp.eq.s32.totalorder %s22, 1
      %p176 = por %p174, %p175
      %p178 = scmp.ne.s32.totalorder %s163, %s177
      %p179 = scmp.eq.s32.totalorder %s22, 0
      %p180 = por %p178, %p179
      %s181 = ssub.s32 %s16, %s23
      %p182 = scmp.eq.s32.totalorder %s181, 0
      %s184 = sadd.s32 %s183, 1
      %s185 = scalar_select %p182, %s183, %s184
      %p188 = pneg %p182
      %p189 = scmp.eq.s32.totalorder %s16, 1
      %p190 = por %p188, %p189
      %p191 = scmp.ne.s32.totalorder %s183, %s186
      %p192 = scmp.eq.s32.totalorder %s16, 0
      %p193 = por %p191, %p192
      %p194 = scmp.ne.s32.totalorder %s183, %s186
      %p195 = scmp.eq.s32.totalorder %s21, 1
      %p196 = por %p194, %p195
      %p197 = scmp.ne.s32.totalorder %s186, %s187
      %p198 = scmp.eq.s32.totalorder %s21, 0
      %p199 = por %p197, %p198
      %p200 = scmp.ne.s32.totalorder %s186, %s187
      %p201 = scmp.eq.s32.totalorder %s22, 1
      %p202 = por %p200, %p201
      %p204 = scmp.ne.s32.totalorder %s187, %s203
      %p205 = scmp.eq.s32.totalorder %s22, 0
      %p206 = por %p204, %p205
      %p207 = scmp.le.s32.totalorder 1, %s16
      %p208 = scmp.lt.s32.totalorder %s16, 3
      %p209 = pnand %p207, %p208
      %p210 = pneg %p209
      // Predicated region
      $region9: #{tpu_custom_call.1} parent=5 // pred_check
        _
      $region10: #{tpu_custom_call.1} parent=5 // pred_check_branch
        %212 = sbr.rel (%p209) target = $region12
      $region11: #{tpu_custom_call.1} parent=5 // pred_region
        %s213 = ssub.s32 %s16, 1
        // Predicated region
        $region13: #{tpu_custom_call.1} parent=11 // pred_check
          %p214 = pneg %p89
        $region14: #{tpu_custom_call.1} parent=11 // pred_check_branch
          %216 = sbr.rel (%p214) target = $region16
        $region15: #{tpu_custom_call.1} parent=11 // pred_region
          _
        $region16: #{tpu_custom_call.1} parent=11 // pred_fallthru
          _
        // Predicated region
        $region17: #{tpu_custom_call.1} parent=11 // pred_check
          %p217 = pneg %p110
        $region18: #{tpu_custom_call.1} parent=11 // pred_check_branch
          %219 = sbr.rel (%p217) target = $region20
        $region19: #{tpu_custom_call.1} parent=11 // pred_region
          _
        $region20: #{tpu_custom_call.1} parent=11 // pred_fallthru
          _
        // Predicated region
        $region21: #{tpu_custom_call.1} parent=11 // pred_check
          %p220 = pneg %p131
        $region22: #{tpu_custom_call.1} parent=11 // pred_check_branch
          %222 = sbr.rel (%p220) target = $region24
        $region23: #{tpu_custom_call.1} parent=11 // pred_region
          _
        $region24: #{tpu_custom_call.1} parent=11 // pred_fallthru
          _
        // Predicated region
        $region25: #{tpu_custom_call.1} parent=11 // pred_check
          %p223 = pneg %p152
        $region26: #{tpu_custom_call.1} parent=11 // pred_check_branch
          %225 = sbr.rel (%p223) target = $region28
        $region27: #{tpu_custom_call.1} parent=11 // pred_region
          _
        $region28: #{tpu_custom_call.1} parent=11 // pred_fallthru
          _
        // Predicated region
        $region29: #{tpu_custom_call.1} parent=11 // pred_check
          %p226 = pneg %p173
        $region30: #{tpu_custom_call.1} parent=11 // pred_check_branch
          %228 = sbr.rel (%p226) target = $region32
        $region31: #{tpu_custom_call.1} parent=11 // pred_region
          _
        $region32: #{tpu_custom_call.1} parent=11 // pred_fallthru
          _
      $region12: #{tpu_custom_call.1} parent=5 // pred_fallthru
        _
      %p229 = scmp.lt.s32.totalorder %s16, 2
      // Predicated region
      $region33: #{tpu_custom_call.1} parent=5 // pred_check
        %p230 = pneg %p229
      $region34: #{tpu_custom_call.1} parent=5 // pred_check_branch
        %232 = sbr.rel (%p230) target = $region36
      $region35: #{tpu_custom_call.1} parent=5 // pred_region
        // Predicated region
        $region37: #{tpu_custom_call.1} parent=35 // pred_check
          %p233 = pneg %p36
        $region38: #{tpu_custom_call.1} parent=35 // pred_check_branch
          %235 = sbr.rel (%p233) target = $region40
        $region39: #{tpu_custom_call.1} parent=35 // pred_region
          %p236 = scmp.lt.s32.totalorder %s16, 1
          %s237 = scalar_select %p236, %s16, 1
          %s238 = smul.addr %s237, 8
          %s239 = scalar_lea.vmem %s0, %s238
        $region40: #{tpu_custom_call.1} parent=35 // pred_fallthru
          _
        // Predicated region
        $region41: #{tpu_custom_call.1} parent=35 // pred_check
          %p240 = pneg %p62
        $region42: #{tpu_custom_call.1} parent=35 // pred_check_branch
          %242 = sbr.rel (%p240) target = $region44
        $region43: #{tpu_custom_call.1} parent=35 // pred_region
          %p243 = scmp.lt.s32.totalorder %s16, 1
          %s244 = scalar_select %p243, %s16, 1
          %s245 = smul.addr %s244, 2
          %s246 = smul.addr %s245, 8
          %s247 = scalar_lea.vmem %s1, %s246
        $region44: #{tpu_custom_call.1} parent=35 // pred_fallthru
          _
      $region36: #{tpu_custom_call.1} parent=5 // pred_fallthru
        _
      %p248 = scmp.le.s32.totalorder 1, %s16
      %p249 = scmp.lt.s32.totalorder %s16, 3
      %p250 = pnand %p248, %p249
      %p251 = pneg %p250
      // Predicated region
      $region45: #{tpu_custom_call.1} parent=5 // pred_check
        _
      $region46: #{tpu_custom_call.1} parent=5 // pred_check_branch
        %253 = sbr.rel (%p250) target = $region48
      $region47: #{tpu_custom_call.1} parent=5 // pred_region
        %s254 = ssub.s32 %s16, 1
        %p255 = scmp.lt.s32.totalorder %s21, 1
        %s256 = scalar_select %p255, %s21, 1
        %s257 = smul.addr %s256, 8
        %s258 = scalar_lea.vmem %s0, %s257
        %p259 = pneg %p42
        %p260 = pneg %p39
        %p261 = scmp.lt.s32.totalorder %s21, 1
        %s262 = scalar_select %p261, %s21, 1
        %s263 = smul.addr %s262, 2
        %s264 = smul.addr %s263, 8
        %s265 = scalar_lea.vmem %s1, %s264
        %p266 = pneg %p68
        %p267 = pneg %p65
        %p268 = pneg %p89
        %p269 = pneg %p86
        %p270 = pneg %p110
        %p271 = pneg %p107
        %p272 = pneg %p131
        %p273 = pneg %p128
        %p274 = pneg %p152
        %p275 = pneg %p149
        %p276 = pneg %p173
        %p277 = pneg %p170
        %p278 = pneg %p199
        %p279 = pneg %p196
        %s280 = sand.u32 %s186, 1
        %s281 = scalar_lea.sflag [#allocation3], %s280
        %s282 = sand.u32 %s186, 1
        %s283 = smul.addr %s282, 8
        %s284 = scalar_lea.vmem [#allocation2], %s283
        %p285 = scmp.lt.s32.totalorder %s21, 1
        %s286 = scalar_select %p285, %s21, 1
        %s287 = smul.addr %s286, 8
        %s288 = scalar_lea.vmem %s0, %s287
        %p289 = scmp.lt.s32.totalorder %s21, 1
        %s290 = scalar_select %p289, %s21, 1
        %s291 = smul.addr %s290, 2
        %s292 = smul.addr %s291, 8
        %s293 = scalar_lea.vmem %s1, %s292
        %v294 = vld [vmem:[%s288] sm:$0xff]
        %v295 = vld [vmem:[%s293] sm:$0xff]
        %v296 = vld [vmem:[%s293 + $0x8] sm:$0xff]
        %v297 = vld [vmem:[%s2] sm:$0xff]
        %v298 = vld [vmem:[%s2 + $0x8] sm:$0xff]
        %v299 = vld [vmem:[%s2 + $0x10] sm:$0xff]
        %v300 = vld [vmem:[%s2 + $0x18] sm:$0xff]
        %v301 = vld [vmem:[%s2 + $0x20] sm:$0xff]
        %v302 = vld [vmem:[%s2 + $0x28] sm:$0xff]
        %v303 = vld [vmem:[%s2 + $0x30] sm:$0xff]
        %v304 = vld [vmem:[%s2 + $0x38] sm:$0xff]
        %v305 = vld [vmem:[%s2 + $0x40] sm:$0xff]
        %v306 = vld [vmem:[%s2 + $0x48] sm:$0xff]
        %v307 = vld [vmem:[%s2 + $0x50] sm:$0xff]
        %v308 = vld [vmem:[%s2 + $0x58] sm:$0xff]
        %v309 = vld [vmem:[%s2 + $0x60] sm:$0xff]
        %v310 = vld [vmem:[%s2 + $0x68] sm:$0xff]
        %v311 = vld [vmem:[%s2 + $0x70] sm:$0xff]
        %v312 = vld [vmem:[%s2 + $0x78] sm:$0xff]
        %v313 = vld [vmem:[%s2 + $0x80] sm:$0xff]
        %v314 = vld [vmem:[%s2 + $0x88] sm:$0xff]
        %v315 = vld [vmem:[%s2 + $0x90] sm:$0xff]
        %v316 = vld [vmem:[%s2 + $0x98] sm:$0xff]
        %v317 = vld [vmem:[%s2 + $0xa0] sm:$0xff]
        %v318 = vld [vmem:[%s2 + $0xa8] sm:$0xff]
        %v319 = vld [vmem:[%s2 + $0xb0] sm:$0xff]
        %v320 = vld [vmem:[%s2 + $0xb8] sm:$0xff]
        %v321 = vld [vmem:[%s2 + $0xc0] sm:$0xff]
        %v322 = vld [vmem:[%s2 + $0xc8] sm:$0xff]
        %v323 = vld [vmem:[%s2 + $0xd0] sm:$0xff]
        %v324 = vld [vmem:[%s2 + $0xd8] sm:$0xff]
        %v325 = vld [vmem:[%s2 + $0xe0] sm:$0xff]
        %v326 = vld [vmem:[%s2 + $0xe8] sm:$0xff]
        %v327 = vld [vmem:[%s2 + $0xf0] sm:$0xff]
        %v328 = vld [vmem:[%s2 + $0xf8] sm:$0xff]
        %vm329 = vcmask 261120
        %v331 = vsel %vm329, %v294, 0
        %333 = vmatprep.subr.mxu0 0.0
        %334 = vmatpush1.msra.mxu0 0.0
        %335 = vmatprep.subr.mxu0 0.0
        %336 = vmatpush1.msra.mxu0 0.0
        %337 = vmatprep.subr.mxu0 0.0
        %338 = vmatpush1.msra.mxu0 0.0
        %339 = vmatprep.subr.mxu0 0.0
        %340 = vmatpush1.msra.mxu0 0.0
        %341 = vmatprep.subr.mxu0 0.0
        %342 = vmatpush1.msra.mxu0 0.0
        %343 = vmatprep.subr.mxu0 0.0
        %344 = vmatpush1.msra.mxu0 0.0
        %345 = vmatprep.subr.mxu0 0.0
        %346 = vmatpush1.msra.mxu0 0.0
        %347 = vmatprep.subr.mxu0 0.0
        %348 = vmatpush1.msra.mxu0 0.0
        %349 = vmatprep.subr.mxu0 0.0
        %350 = vmatpush1.msra.mxu0 0.0
        %351 = vmatprep.subr.mxu0 0.0
        %352 = vmatpush1.msra.mxu0 0.0
        %353 = vmatprep.subr.mxu0 0.0
        %354 = vmatpush1.msra.mxu0 0.0
        %355 = vmatprep.subr.mxu0 0.0
        %356 = vmatpush1.msra.mxu0 0.0
        %357 = vmatprep.subr.mxu0 0.0
        %358 = vmatpush1.msra.mxu0 %v300
        %359 = vmatprep.subr.mxu0 0.0
        %360 = vmatpush1.msra.mxu0 %v299
        %361 = vmatprep.subr.mxu0 0.0
        %362 = vmatpush1.msra.mxu0 %v298
        %363 = vmatprep.subr.mxu0 0.0
        %364 = vmatpush1.msra.mxu0 %v297
        %365 = vmatprep.subr.mxu0 0.0
        %366 = vmatpush2.msra.mxu0 0.0
        %367 = vmatprep.subr.mxu0 0.0
        %368 = vmatpush2.msra.mxu0 0.0
        %369 = vmatprep.subr.mxu0 0.0
        %370 = vmatpush2.msra.mxu0 0.0
        %371 = vmatprep.subr.mxu0 0.0
        %372 = vmatpush2.msra.mxu0 0.0
        %373 = vmatprep.subr.mxu0 0.0
        %374 = vmatpush2.msra.mxu0 0.0
        %375 = vmatprep.subr.mxu0 0.0
        %376 = vmatpush2.msra.mxu0 0.0
        %377 = vmatprep.subr.mxu0 0.0
        %378 = vmatpush2.msra.mxu0 0.0
        %379 = vmatprep.subr.mxu0 0.0
        %380 = vmatpush2.msra.mxu0 0.0
        %381 = vmatprep.subr.mxu0 0.0
        %382 = vmatpush2.msra.mxu0 0.0
        %383 = vmatprep.subr.mxu0 0.0
        %384 = vmatpush2.msra.mxu0 0.0
        %385 = vmatprep.subr.mxu0 0.0
        %386 = vmatpush2.msra.mxu0 0.0
        %387 = vmatprep.subr.mxu0 0.0
        %388 = vmatpush2.msra.mxu0 0.0
        %389 = vmatprep.subr.mxu0 0.0
        %390 = vmatpush2.msra.mxu0 0.0
        %391 = vmatprep.subr.mxu0 0.0
        %392 = vmatpush2.msra.mxu0 0.0
        %393 = vmatprep.subr.mxu0 0.0
        %394 = vmatpush2.msra.mxu0 0.0
        %395 = vmatprep.subr.mxu0 0.0
        %396 = vmatpush2.msra.mxu0 0.0
        %397 = vmatprep.mubr.f32.mxu0 0.0
        %398 = vmatmul.mubr.f32.gmra.mxu0 %v331
        %v399 = vpop.f32.mrf.mxu0
        %v400 = vadd.f32 0.0, %v399
        %v401 = vpop.f32.mrf.mxu0
        %402 = vdwg.mxu0
        %403 = vmatprep.subr.mxu0 0.0
        %404 = vmatpush1.msra.mxu0 0.0
        %405 = vmatprep.subr.mxu0 0.0
        %406 = vmatpush1.msra.mxu0 0.0
        %407 = vmatprep.subr.mxu0 0.0
        %408 = vmatpush1.msra.mxu0 0.0
        %409 = vmatprep.subr.mxu0 0.0
        %410 = vmatpush1.msra.mxu0 0.0
        %411 = vmatprep.subr.mxu0 0.0
        %412 = vmatpush1.msra.mxu0 0.0
        %413 = vmatprep.subr.mxu0 0.0
        %414 = vmatpush1.msra.mxu0 0.0
        %415 = vmatprep.subr.mxu0 0.0
        %416 = vmatpush1.msra.mxu0 0.0
        %417 = vmatprep.subr.mxu0 0.0
        %418 = vmatpush1.msra.mxu0 0.0
        %419 = vmatprep.subr.mxu0 0.0
        %420 = vmatpush1.msra.mxu0 0.0
        %421 = vmatprep.subr.mxu0 0.0
        %422 = vmatpush1.msra.mxu0 0.0
        %423 = vmatprep.subr.mxu0 0.0
        %424 = vmatpush1.msra.mxu0 0.0
        %425 = vmatprep.subr.mxu0 0.0
        %426 = vmatpush1.msra.mxu0 0.0
        %427 = vmatprep.subr.mxu0 0.0
        %428 = vmatpush1.msra.mxu0 %v304
        %429 = vmatprep.subr.mxu0 0.0
        %430 = vmatpush1.msra.mxu0 %v303
        %431 = vmatprep.subr.mxu0 0.0
        %432 = vmatpush1.msra.mxu0 %v302
        %433 = vmatprep.subr.mxu0 0.0
        %434 = vmatpush1.msra.mxu0 %v301
        %435 = vmatprep.subr.mxu0 0.0
        %436 = vmatpush2.msra.mxu0 0.0
        %437 = vmatprep.subr.mxu0 0.0
        %438 = vmatpush2.msra.mxu0 0.0
        %439 = vmatprep.subr.mxu0 0.0
        %440 = vmatpush2.msra.mxu0 0.0
        %441 = vmatprep.subr.mxu0 0.0
        %442 = vmatpush2.msra.mxu0 0.0
        %443 = vmatprep.subr.mxu0 0.0
        %444 = vmatpush2.msra.mxu0 0.0
        %445 = vmatprep.subr.mxu0 0.0
        %446 = vmatpush2.msra.mxu0 0.0
        %447 = vmatprep.subr.mxu0 0.0
        %448 = vmatpush2.msra.mxu0 0.0
        %449 = vmatprep.subr.mxu0 0.0
        %450 = vmatpush2.msra.mxu0 0.0
        %451 = vmatprep.subr.mxu0 0.0
        %452 = vmatpush2.msra.mxu0 0.0
        %453 = vmatprep.subr.mxu0 0.0
        %454 = vmatpush2.msra.mxu0 0.0
        %455 = vmatprep.subr.mxu0 0.0
        %456 = vmatpush2.msra.mxu0 0.0
        %457 = vmatprep.subr.mxu0 0.0
        %458 = vmatpush2.msra.mxu0 0.0
        %459 = vmatprep.subr.mxu0 0.0
        %460 = vmatpush2.msra.mxu0 0.0
        %461 = vmatprep.subr.mxu0 0.0
        %462 = vmatpush2.msra.mxu0 0.0
        %463 = vmatprep.subr.mxu0 0.0
        %464 = vmatpush2.msra.mxu0 0.0
        %465 = vmatprep.subr.mxu0 0.0
        %466 = vmatpush2.msra.mxu0 0.0
        %467 = vmatprep.mubr.f32.mxu0 0.0
        %468 = vmatmul.mubr.f32.gmra.mxu0 %v331
        %v469 = vpop.f32.mrf.mxu0
        %v470 = vadd.f32 0.0, %v469
        %v471 = vpop.f32.mrf.mxu0
        %472 = vdwg.mxu0
        %473 = vmatprep.subr.mxu0 0.0
        %474 = vmatpush1.msra.mxu0 0.0
        %475 = vmatprep.subr.mxu0 0.0
        %476 = vmatpush1.msra.mxu0 0.0
        %477 = vmatprep.subr.mxu0 0.0
        %478 = vmatpush1.msra.mxu0 0.0
        %479 = vmatprep.subr.mxu0 0.0
        %480 = vmatpush1.msra.mxu0 0.0
        %481 = vmatprep.subr.mxu0 0.0
        %482 = vmatpush1.msra.mxu0 0.0
        %483 = vmatprep.subr.mxu0 0.0
        %484 = vmatpush1.msra.mxu0 0.0
        %485 = vmatprep.subr.mxu0 0.0
        %486 = vmatpush1.msra.mxu0 0.0
        %487 = vmatprep.subr.mxu0 0.0
        %488 = vmatpush1.msra.mxu0 0.0
        %489 = vmatprep.subr.mxu0 0.0
        %490 = vmatpush1.msra.mxu0 0.0
        %491 = vmatprep.subr.mxu0 0.0
        %492 = vmatpush1.msra.mxu0 0.0
        %493 = vmatprep.subr.mxu0 0.0
        %494 = vmatpush1.msra.mxu0 0.0
        %495 = vmatprep.subr.mxu0 0.0
        %496 = vmatpush1.msra.mxu0 0.0
        %497 = vmatprep.subr.mxu0 0.0
        %498 = vmatpush1.msra.mxu0 %v308
        %499 = vmatprep.subr.mxu0 0.0
        %500 = vmatpush1.msra.mxu0 %v307
        %501 = vmatprep.subr.mxu0 0.0
        %502 = vmatpush1.msra.mxu0 %v306
        %503 = vmatprep.subr.mxu0 0.0
        %504 = vmatpush1.msra.mxu0 %v305
        %505 = vmatprep.subr.mxu0 0.0
        %506 = vmatpush2.msra.mxu0 0.0
        %507 = vmatprep.subr.mxu0 0.0
        %508 = vmatpush2.msra.mxu0 0.0
        %509 = vmatprep.subr.mxu0 0.0
        %510 = vmatpush2.msra.mxu0 0.0
        %511 = vmatprep.subr.mxu0 0.0
        %512 = vmatpush2.msra.mxu0 0.0
        %513 = vmatprep.subr.mxu0 0.0
        %514 = vmatpush2.msra.mxu0 0.0
        %515 = vmatprep.subr.mxu0 0.0
        %516 = vmatpush2.msra.mxu0 0.0
        %517 = vmatprep.subr.mxu0 0.0
        %518 = vmatpush2.msra.mxu0 0.0
        %519 = vmatprep.subr.mxu0 0.0
        %520 = vmatpush2.msra.mxu0 0.0
        %521 = vmatprep.subr.mxu0 0.0
        %522 = vmatpush2.msra.mxu0 0.0
        %523 = vmatprep.subr.mxu0 0.0
        %524 = vmatpush2.msra.mxu0 0.0
        %525 = vmatprep.subr.mxu0 0.0
        %526 = vmatpush2.msra.mxu0 0.0
        %527 = vmatprep.subr.mxu0 0.0
        %528 = vmatpush2.msra.mxu0 0.0
        %529 = vmatprep.subr.mxu0 0.0
        %530 = vmatpush2.msra.mxu0 0.0
        %531 = vmatprep.subr.mxu0 0.0
        %532 = vmatpush2.msra.mxu0 0.0
        %533 = vmatprep.subr.mxu0 0.0
        %534 = vmatpush2.msra.mxu0 0.0
        %535 = vmatprep.subr.mxu0 0.0
        %536 = vmatpush2.msra.mxu0 0.0
        %537 = vmatprep.mubr.f32.mxu0 0.0
        %538 = vmatmul.mubr.f32.gmra.mxu0 %v331
        %v539 = vpop.f32.mrf.mxu0
        %v540 = vadd.f32 0.0, %v539
        %v541 = vpop.f32.mrf.mxu0
        %542 = vdwg.mxu0
        %543 = vmatprep.subr.mxu0 0.0
        %544 = vmatpush1.msra.mxu0 0.0
        %545 = vmatprep.subr.mxu0 0.0
        %546 = vmatpush1.msra.mxu0 0.0
        %547 = vmatprep.subr.mxu0 0.0
        %548 = vmatpush1.msra.mxu0 0.0
        %549 = vmatprep.subr.mxu0 0.0
        %550 = vmatpush1.msra.mxu0 0.0
        %551 = vmatprep.subr.mxu0 0.0
        %552 = vmatpush1.msra.mxu0 0.0
        %553 = vmatprep.subr.mxu0 0.0
        %554 = vmatpush1.msra.mxu0 0.0
        %555 = vmatprep.subr.mxu0 0.0
        %556 = vmatpush1.msra.mxu0 0.0
        %557 = vmatprep.subr.mxu0 0.0
        %558 = vmatpush1.msra.mxu0 0.0
        %559 = vmatprep.subr.mxu0 0.0
        %560 = vmatpush1.msra.mxu0 0.0
        %561 = vmatprep.subr.mxu0 0.0
        %562 = vmatpush1.msra.mxu0 0.0
        %563 = vmatprep.subr.mxu0 0.0
        %564 = vmatpush1.msra.mxu0 0.0
        %565 = vmatprep.subr.mxu0 0.0
        %566 = vmatpush1.msra.mxu0 0.0
        %567 = vmatprep.subr.mxu0 0.0
        %568 = vmatpush1.msra.mxu0 %v312
        %569 = vmatprep.subr.mxu0 0.0
        %570 = vmatpush1.msra.mxu0 %v311
        %571 = vmatprep.subr.mxu0 0.0
        %572 = vmatpush1.msra.mxu0 %v310
        %573 = vmatprep.subr.mxu0 0.0
        %574 = vmatpush1.msra.mxu0 %v309
        %575 = vmatprep.subr.mxu0 0.0
        %576 = vmatpush2.msra.mxu0 0.0
        %577 = vmatprep.subr.mxu0 0.0
        %578 = vmatpush2.msra.mxu0 0.0
        %579 = vmatprep.subr.mxu0 0.0
        %580 = vmatpush2.msra.mxu0 0.0
        %581 = vmatprep.subr.mxu0 0.0
        %582 = vmatpush2.msra.mxu0 0.0
        %583 = vmatprep.subr.mxu0 0.0
        %584 = vmatpush2.msra.mxu0 0.0
        %585 = vmatprep.subr.mxu0 0.0
        %586 = vmatpush2.msra.mxu0 0.0
        %587 = vmatprep.subr.mxu0 0.0
        %588 = vmatpush2.msra.mxu0 0.0
        %589 = vmatprep.subr.mxu0 0.0
        %590 = vmatpush2.msra.mxu0 0.0
        %591 = vmatprep.subr.mxu0 0.0
        %592 = vmatpush2.msra.mxu0 0.0
        %593 = vmatprep.subr.mxu0 0.0
        %594 = vmatpush2.msra.mxu0 0.0
        %595 = vmatprep.subr.mxu0 0.0
        %596 = vmatpush2.msra.mxu0 0.0
        %597 = vmatprep.subr.mxu0 0.0
        %598 = vmatpush2.msra.mxu0 0.0
        %599 = vmatprep.subr.mxu0 0.0
        %600 = vmatpush2.msra.mxu0 0.0
        %601 = vmatprep.subr.mxu0 0.0
        %602 = vmatpush2.msra.mxu0 0.0
        %603 = vmatprep.subr.mxu0 0.0
        %604 = vmatpush2.msra.mxu0 0.0
        %605 = vmatprep.subr.mxu0 0.0
        %606 = vmatpush2.msra.mxu0 0.0
        %607 = vmatprep.mubr.f32.mxu0 0.0
        %608 = vmatmul.mubr.f32.gmra.mxu0 %v331
        %v609 = vpop.f32.mrf.mxu0
        %v610 = vadd.f32 0.0, %v609
        %v611 = vpop.f32.mrf.mxu0
        %612 = vdwg.mxu0
        %613 = vmatprep.subr.mxu0 0.0
        %614 = vmatpush1.msra.mxu0 0.0
        %615 = vmatprep.subr.mxu0 0.0
        %616 = vmatpush1.msra.mxu0 0.0
        %617 = vmatprep.subr.mxu0 0.0
        %618 = vmatpush1.msra.mxu0 0.0
        %619 = vmatprep.subr.mxu0 0.0
        %620 = vmatpush1.msra.mxu0 0.0
        %621 = vmatprep.subr.mxu0 0.0
        %622 = vmatpush1.msra.mxu0 0.0
        %623 = vmatprep.subr.mxu0 0.0
        %624 = vmatpush1.msra.mxu0 0.0
        %625 = vmatprep.subr.mxu0 0.0
        %626 = vmatpush1.msra.mxu0 0.0
        %627 = vmatprep.subr.mxu0 0.0
        %628 = vmatpush1.msra.mxu0 0.0
        %629 = vmatprep.subr.mxu0 0.0
        %630 = vmatpush1.msra.mxu0 0.0
        %631 = vmatprep.subr.mxu0 0.0
        %632 = vmatpush1.msra.mxu0 0.0
        %633 = vmatprep.subr.mxu0 0.0
        %634 = vmatpush1.msra.mxu0 0.0
        %635 = vmatprep.subr.mxu0 0.0
        %636 = vmatpush1.msra.mxu0 0.0
        %637 = vmatprep.subr.mxu0 0.0
        %638 = vmatpush1.msra.mxu0 %v316
        %639 = vmatprep.subr.mxu0 0.0
        %640 = vmatpush1.msra.mxu0 %v315
        %641 = vmatprep.subr.mxu0 0.0
        %642 = vmatpush1.msra.mxu0 %v314
        %643 = vmatprep.subr.mxu0 0.0
        %644 = vmatpush1.msra.mxu0 %v313
        %645 = vmatprep.subr.mxu0 0.0
        %646 = vmatpush2.msra.mxu0 0.0
        %647 = vmatprep.subr.mxu0 0.0
        %648 = vmatpush2.msra.mxu0 0.0
        %649 = vmatprep.subr.mxu0 0.0
        %650 = vmatpush2.msra.mxu0 0.0
        %651 = vmatprep.subr.mxu0 0.0
        %652 = vmatpush2.msra.mxu0 0.0
        %653 = vmatprep.subr.mxu0 0.0
        %654 = vmatpush2.msra.mxu0 0.0
        %655 = vmatprep.subr.mxu0 0.0
        %656 = vmatpush2.msra.mxu0 0.0
        %657 = vmatprep.subr.mxu0 0.0
        %658 = vmatpush2.msra.mxu0 0.0
        %659 = vmatprep.subr.mxu0 0.0
        %660 = vmatpush2.msra.mxu0 0.0
        %661 = vmatprep.subr.mxu0 0.0
        %662 = vmatpush2.msra.mxu0 0.0
        %663 = vmatprep.subr.mxu0 0.0
        %664 = vmatpush2.msra.mxu0 0.0
        %665 = vmatprep.subr.mxu0 0.0
        %666 = vmatpush2.msra.mxu0 0.0
        %667 = vmatprep.subr.mxu0 0.0
        %668 = vmatpush2.msra.mxu0 0.0
        %669 = vmatprep.subr.mxu0 0.0
        %670 = vmatpush2.msra.mxu0 0.0
        %671 = vmatprep.subr.mxu0 0.0
        %672 = vmatpush2.msra.mxu0 0.0
        %673 = vmatprep.subr.mxu0 0.0
        %674 = vmatpush2.msra.mxu0 0.0
        %675 = vmatprep.subr.mxu0 0.0
        %676 = vmatpush2.msra.mxu0 0.0
        %677 = vmatprep.mubr.f32.mxu0 0.0
        %678 = vmatmul.mubr.f32.gmra.mxu0 %v331
        %v679 = vpop.f32.mrf.mxu0
        %v680 = vadd.f32 0.0, %v679
        %v681 = vpop.f32.mrf.mxu0
        %682 = vdwg.mxu0
        %683 = vmatprep.subr.mxu0 0.0
        %684 = vmatpush1.msra.mxu0 0.0
        %685 = vmatprep.subr.mxu0 0.0
        %686 = vmatpush1.msra.mxu0 0.0
        %687 = vmatprep.subr.mxu0 0.0
        %688 = vmatpush1.msra.mxu0 0.0
        %689 = vmatprep.subr.mxu0 0.0
        %690 = vmatpush1.msra.mxu0 0.0
        %691 = vmatprep.subr.mxu0 0.0
        %692 = vmatpush1.msra.mxu0 0.0
        %693 = vmatprep.subr.mxu0 0.0
        %694 = vmatpush1.msra.mxu0 0.0
        %695 = vmatprep.subr.mxu0 0.0
        %696 = vmatpush1.msra.mxu0 0.0
        %697 = vmatprep.subr.mxu0 0.0
        %698 = vmatpush1.msra.mxu0 0.0
        %699 = vmatprep.subr.mxu0 0.0
        %700 = vmatpush1.msra.mxu0 0.0
        %701 = vmatprep.subr.mxu0 0.0
        %702 = vmatpush1.msra.mxu0 0.0
        %703 = vmatprep.subr.mxu0 0.0
        %704 = vmatpush1.msra.mxu0 0.0
        %705 = vmatprep.subr.mxu0 0.0
        %706 = vmatpush1.msra.mxu0 0.0
        %707 = vmatprep.subr.mxu0 0.0
        %708 = vmatpush1.msra.mxu0 %v320
        %709 = vmatprep.subr.mxu0 0.0
        %710 = vmatpush1.msra.mxu0 %v319
        %711 = vmatprep.subr.mxu0 0.0
        %712 = vmatpush1.msra.mxu0 %v318
        %713 = vmatprep.subr.mxu0 0.0
        %714 = vmatpush1.msra.mxu0 %v317
        %715 = vmatprep.subr.mxu0 0.0
        %716 = vmatpush2.msra.mxu0 0.0
        %717 = vmatprep.subr.mxu0 0.0
        %718 = vmatpush2.msra.mxu0 0.0
        %719 = vmatprep.subr.mxu0 0.0
        %720 = vmatpush2.msra.mxu0 0.0
        %721 = vmatprep.subr.mxu0 0.0
        %722 = vmatpush2.msra.mxu0 0.0
        %723 = vmatprep.subr.mxu0 0.0
        %724 = vmatpush2.msra.mxu0 0.0
        %725 = vmatprep.subr.mxu0 0.0
        %726 = vmatpush2.msra.mxu0 0.0
        %727 = vmatprep.subr.mxu0 0.0
        %728 = vmatpush2.msra.mxu0 0.0
        %729 = vmatprep.subr.mxu0 0.0
        %730 = vmatpush2.msra.mxu0 0.0
        %731 = vmatprep.subr.mxu0 0.0
        %732 = vmatpush2.msra.mxu0 0.0
        %733 = vmatprep.subr.mxu0 0.0
        %734 = vmatpush2.msra.mxu0 0.0
        %735 = vmatprep.subr.mxu0 0.0
        %736 = vmatpush2.msra.mxu0 0.0
        %737 = vmatprep.subr.mxu0 0.0
        %738 = vmatpush2.msra.mxu0 0.0
        %739 = vmatprep.subr.mxu0 0.0
        %740 = vmatpush2.msra.mxu0 0.0
        %741 = vmatprep.subr.mxu0 0.0
        %742 = vmatpush2.msra.mxu0 0.0
        %743 = vmatprep.subr.mxu0 0.0
        %744 = vmatpush2.msra.mxu0 0.0
        %745 = vmatprep.subr.mxu0 0.0
        %746 = vmatpush2.msra.mxu0 0.0
        %747 = vmatprep.mubr.f32.mxu0 0.0
        %748 = vmatmul.mubr.f32.gmra.mxu0 %v331
        %v749 = vpop.f32.mrf.mxu0
        %v750 = vadd.f32 0.0, %v749
        %v751 = vpop.f32.mrf.mxu0
        %752 = vdwg.mxu0
        %753 = vmatprep.subr.mxu0 0.0
        %754 = vmatpush1.msra.mxu0 0.0
        %755 = vmatprep.subr.mxu0 0.0
        %756 = vmatpush1.msra.mxu0 0.0
        %757 = vmatprep.subr.mxu0 0.0
        %758 = vmatpush1.msra.mxu0 0.0
        %759 = vmatprep.subr.mxu0 0.0
        %760 = vmatpush1.msra.mxu0 0.0
        %761 = vmatprep.subr.mxu0 0.0
        %762 = vmatpush1.msra.mxu0 0.0
        %763 = vmatprep.subr.mxu0 0.0
        %764 = vmatpush1.msra.mxu0 0.0
        %765 = vmatprep.subr.mxu0 0.0
        %766 = vmatpush1.msra.mxu0 0.0
        %767 = vmatprep.subr.mxu0 0.0
        %768 = vmatpush1.msra.mxu0 0.0
        %769 = vmatprep.subr.mxu0 0.0
        %770 = vmatpush1.msra.mxu0 0.0
        %771 = vmatprep.subr.mxu0 0.0
        %772 = vmatpush1.msra.mxu0 0.0
        %773 = vmatprep.subr.mxu0 0.0
        %774 = vmatpush1.msra.mxu0 0.0
        %775 = vmatprep.subr.mxu0 0.0
        %776 = vmatpush1.msra.mxu0 0.0
        %777 = vmatprep.subr.mxu0 0.0
        %778 = vmatpush1.msra.mxu0 %v324
        %779 = vmatprep.subr.mxu0 0.0
        %780 = vmatpush1.msra.mxu0 %v323
        %781 = vmatprep.subr.mxu0 0.0
        %782 = vmatpush1.msra.mxu0 %v322
        %783 = vmatprep.subr.mxu0 0.0
        %784 = vmatpush1.msra.mxu0 %v321
        %785 = vmatprep.subr.mxu0 0.0
        %786 = vmatpush2.msra.mxu0 0.0
        %787 = vmatprep.subr.mxu0 0.0
        %788 = vmatpush2.msra.mxu0 0.0
        %789 = vmatprep.subr.mxu0 0.0
        %790 = vmatpush2.msra.mxu0 0.0
        %791 = vmatprep.subr.mxu0 0.0
        %792 = vmatpush2.msra.mxu0 0.0
        %793 = vmatprep.subr.mxu0 0.0
        %794 = vmatpush2.msra.mxu0 0.0
        %795 = vmatprep.subr.mxu0 0.0
        %796 = vmatpush2.msra.mxu0 0.0
        %797 = vmatprep.subr.mxu0 0.0
        %798 = vmatpush2.msra.mxu0 0.0
        %799 = vmatprep.subr.mxu0 0.0
        %800 = vmatpush2.msra.mxu0 0.0
        %801 = vmatprep.subr.mxu0 0.0
        %802 = vmatpush2.msra.mxu0 0.0
        %803 = vmatprep.subr.mxu0 0.0
        %804 = vmatpush2.msra.mxu0 0.0
        %805 = vmatprep.subr.mxu0 0.0
        %806 = vmatpush2.msra.mxu0 0.0
        %807 = vmatprep.subr.mxu0 0.0
        %808 = vmatpush2.msra.mxu0 0.0
        %809 = vmatprep.subr.mxu0 0.0
        %810 = vmatpush2.msra.mxu0 0.0
        %811 = vmatprep.subr.mxu0 0.0
        %812 = vmatpush2.msra.mxu0 0.0
        %813 = vmatprep.subr.mxu0 0.0
        %814 = vmatpush2.msra.mxu0 0.0
        %815 = vmatprep.subr.mxu0 0.0
        %816 = vmatpush2.msra.mxu0 0.0
        %817 = vmatprep.mubr.f32.mxu0 0.0
        %818 = vmatmul.mubr.f32.gmra.mxu0 %v331
        %v819 = vpop.f32.mrf.mxu0
        %v820 = vadd.f32 0.0, %v819
        %v821 = vpop.f32.mrf.mxu0
        %822 = vdwg.mxu0
        %823 = vmatprep.subr.mxu0 0.0
        %824 = vmatpush1.msra.mxu0 0.0
        %825 = vmatprep.subr.mxu0 0.0
        %826 = vmatpush1.msra.mxu0 0.0
        %827 = vmatprep.subr.mxu0 0.0
        %828 = vmatpush1.msra.mxu0 0.0
        %829 = vmatprep.subr.mxu0 0.0
        %830 = vmatpush1.msra.mxu0 0.0
        %831 = vmatprep.subr.mxu0 0.0
        %832 = vmatpush1.msra.mxu0 0.0
        %833 = vmatprep.subr.mxu0 0.0
        %834 = vmatpush1.msra.mxu0 0.0
        %835 = vmatprep.subr.mxu0 0.0
        %836 = vmatpush1.msra.mxu0 0.0
        %837 = vmatprep.subr.mxu0 0.0
        %838 = vmatpush1.msra.mxu0 0.0
        %839 = vmatprep.subr.mxu0 0.0
        %840 = vmatpush1.msra.mxu0 0.0
        %841 = vmatprep.subr.mxu0 0.0
        %842 = vmatpush1.msra.mxu0 0.0
        %843 = vmatprep.subr.mxu0 0.0
        %844 = vmatpush1.msra.mxu0 0.0
        %845 = vmatprep.subr.mxu0 0.0
        %846 = vmatpush1.msra.mxu0 0.0
        %847 = vmatprep.subr.mxu0 0.0
        %848 = vmatpush1.msra.mxu0 %v328
        %849 = vmatprep.subr.mxu0 0.0
        %850 = vmatpush1.msra.mxu0 %v327
        %851 = vmatprep.subr.mxu0 0.0
        %852 = vmatpush1.msra.mxu0 %v326
        %853 = vmatprep.subr.mxu0 0.0
        %854 = vmatpush1.msra.mxu0 %v325
        %855 = vmatprep.subr.mxu0 0.0
        %856 = vmatpush2.msra.mxu0 0.0
        %857 = vmatprep.subr.mxu0 0.0
        %858 = vmatpush2.msra.mxu0 0.0
        %859 = vmatprep.subr.mxu0 0.0
        %860 = vmatpush2.msra.mxu0 0.0
        %861 = vmatprep.subr.mxu0 0.0
        %862 = vmatpush2.msra.mxu0 0.0
        %863 = vmatprep.subr.mxu0 0.0
        %864 = vmatpush2.msra.mxu0 0.0
        %865 = vmatprep.subr.mxu0 0.0
        %866 = vmatpush2.msra.mxu0 0.0
        %867 = vmatprep.subr.mxu0 0.0
        %868 = vmatpush2.msra.mxu0 0.0
        %869 = vmatprep.subr.mxu0 0.0
        %870 = vmatpush2.msra.mxu0 0.0
        %871 = vmatprep.subr.mxu0 0.0
        %872 = vmatpush2.msra.mxu0 0.0
        %873 = vmatprep.subr.mxu0 0.0
        %874 = vmatpush2.msra.mxu0 0.0
        %875 = vmatprep.subr.mxu0 0.0
        %876 = vmatpush2.msra.mxu0 0.0
        %877 = vmatprep.subr.mxu0 0.0
        %878 = vmatpush2.msra.mxu0 0.0
        %879 = vmatprep.subr.mxu0 0.0
        %880 = vmatpush2.msra.mxu0 0.0
        %881 = vmatprep.subr.mxu0 0.0
        %882 = vmatpush2.msra.mxu0 0.0
        %883 = vmatprep.subr.mxu0 0.0
        %884 = vmatpush2.msra.mxu0 0.0
        %885 = vmatprep.subr.mxu0 0.0
        %886 = vmatpush2.msra.mxu0 0.0
        %887 = vmatprep.mubr.f32.mxu0 0.0
        %888 = vmatmul.mubr.f32.gmra.mxu0 %v331
        %v889 = vpop.f32.mrf.mxu0
        %v890 = vadd.f32 0.0, %v889
        %v891 = vpop.f32.mrf.mxu0
        %892 = vdwg.mxu0
        %v893 = vld [vmem:[%s3] sm:$0xff]
        %v894 = vld [vmem:[%s3 + $0x8] sm:$0xff]
        %v895 = vld [vmem:[%s3 + $0x10] sm:$0xff]
        %v896 = vld [vmem:[%s3 + $0x18] sm:$0xff]
        %v897 = vld [vmem:[%s3 + $0x20] sm:$0xff]
        %v898 = vld [vmem:[%s3 + $0x28] sm:$0xff]
        %v899 = vld [vmem:[%s3 + $0x30] sm:$0xff]
        %v900 = vld [vmem:[%s3 + $0x38] sm:$0xff]
        %v901 = vld [vmem:[%s3 + $0x40] sm:$0xff]
        %v902 = vld [vmem:[%s3 + $0x48] sm:$0xff]
        %v903 = vld [vmem:[%s3 + $0x50] sm:$0xff]
        %v904 = vld [vmem:[%s3 + $0x58] sm:$0xff]
        %v905 = vld [vmem:[%s3 + $0x60] sm:$0xff]
        %v906 = vld [vmem:[%s3 + $0x68] sm:$0xff]
        %v907 = vld [vmem:[%s3 + $0x70] sm:$0xff]
        %v908 = vld [vmem:[%s3 + $0x78] sm:$0xff]
        %v909 = vld [vmem:[%s3 + $0x80] sm:$0xff]
        %v910 = vld [vmem:[%s3 + $0x88] sm:$0xff]
        %v911 = vld [vmem:[%s3 + $0x90] sm:$0xff]
        %v912 = vld [vmem:[%s3 + $0x98] sm:$0xff]
        %v913 = vld [vmem:[%s3 + $0xa0] sm:$0xff]
        %v914 = vld [vmem:[%s3 + $0xa8] sm:$0xff]
        %v915 = vld [vmem:[%s3 + $0xb0] sm:$0xff]
        %v916 = vld [vmem:[%s3 + $0xb8] sm:$0xff]
        %v917 = vld [vmem:[%s3 + $0xc0] sm:$0xff]
        %v918 = vld [vmem:[%s3 + $0xc8] sm:$0xff]
        %v919 = vld [vmem:[%s3 + $0xd0] sm:$0xff]
        %v920 = vld [vmem:[%s3 + $0xd8] sm:$0xff]
        %v921 = vld [vmem:[%s3 + $0xe0] sm:$0xff]
        %v922 = vld [vmem:[%s3 + $0xe8] sm:$0xff]
        %v923 = vld [vmem:[%s3 + $0xf0] sm:$0xff]
        %v924 = vld [vmem:[%s3 + $0xf8] sm:$0xff]
        %v926 = vsel %vm329, %v295, 0
        %v929 = vsel %vm329, %v296, 0
        %931 = vmatprep.subr.mxu0 0.0
        %932 = vmatpush1.msra.mxu0 0.0
        %933 = vmatprep.subr.mxu0 0.0
        %934 = vmatpush1.msra.mxu0 0.0
        %935 = vmatprep.subr.mxu0 0.0
        %936 = vmatpush1.msra.mxu0 0.0
        %937 = vmatprep.subr.mxu0 0.0
        %938 = vmatpush1.msra.mxu0 0.0
        %939 = vmatprep.subr.mxu0 0.0
        %940 = vmatpush1.msra.mxu0 0.0
        %941 = vmatprep.subr.mxu0 0.0
        %942 = vmatpush1.msra.mxu0 0.0
        %943 = vmatprep.subr.mxu0 0.0
        %944 = vmatpush1.msra.mxu0 0.0
        %945 = vmatprep.subr.mxu0 0.0
        %946 = vmatpush1.msra.mxu0 0.0
        %947 = vmatprep.subr.mxu0 0.0
        %948 = vmatpush1.msra.mxu0 0.0
        %949 = vmatprep.subr.mxu0 0.0
        %950 = vmatpush1.msra.mxu0 0.0
        %951 = vmatprep.subr.mxu0 0.0
        %952 = vmatpush1.msra.mxu0 0.0
        %953 = vmatprep.subr.mxu0 0.0
        %954 = vmatpush1.msra.mxu0 0.0
        %955 = vmatprep.subr.mxu0 0.0
        %956 = vmatpush1.msra.mxu0 %v896
        %957 = vmatprep.subr.mxu0 0.0
        %958 = vmatpush1.msra.mxu0 %v895
        %959 = vmatprep.subr.mxu0 0.0
        %960 = vmatpush1.msra.mxu0 %v894
        %961 = vmatprep.subr.mxu0 0.0
        %962 = vmatpush1.msra.mxu0 %v893
        %963 = vmatprep.subr.mxu0 0.0
        %964 = vmatpush2.msra.mxu0 0.0
        %965 = vmatprep.subr.mxu0 0.0
        %966 = vmatpush2.msra.mxu0 0.0
        %967 = vmatprep.subr.mxu0 0.0
        %968 = vmatpush2.msra.mxu0 0.0
        %969 = vmatprep.subr.mxu0 0.0
        %970 = vmatpush2.msra.mxu0 0.0
        %971 = vmatprep.subr.mxu0 0.0
        %972 = vmatpush2.msra.mxu0 0.0
        %973 = vmatprep.subr.mxu0 0.0
        %974 = vmatpush2.msra.mxu0 0.0
        %975 = vmatprep.subr.mxu0 0.0
        %976 = vmatpush2.msra.mxu0 0.0
        %977 = vmatprep.subr.mxu0 0.0
        %978 = vmatpush2.msra.mxu0 0.0
        %979 = vmatprep.subr.mxu0 0.0
        %980 = vmatpush2.msra.mxu0 0.0
        %981 = vmatprep.subr.mxu0 0.0
        %982 = vmatpush2.msra.mxu0 0.0
        %983 = vmatprep.subr.mxu0 0.0
        %984 = vmatpush2.msra.mxu0 0.0
        %985 = vmatprep.subr.mxu0 0.0
        %986 = vmatpush2.msra.mxu0 0.0
        %987 = vmatprep.subr.mxu0 0.0
        %988 = vmatpush2.msra.mxu0 0.0
        %989 = vmatprep.subr.mxu0 0.0
        %990 = vmatpush2.msra.mxu0 0.0
        %991 = vmatprep.subr.mxu0 0.0
        %992 = vmatpush2.msra.mxu0 0.0
        %993 = vmatprep.subr.mxu0 0.0
        %994 = vmatpush2.msra.mxu0 0.0
        %995 = vmatprep.mubr.f32.mxu0 0.0
        %996 = vmatmul.mubr.f32.gmra.mxu0 %v926
        %v997 = vpop.f32.mrf.mxu0
        %v998 = vadd.f32 0.0, %v997
        %v999 = vpop.f32.mrf.mxu0
        %1000 = vmatprep.mubr.f32.mxu0 0.0
        %1001 = vmatmul.mubr.f32.gmra.mxu0 %v929
        %v1002 = vpop.f32.mrf.mxu0
        %v1003 = vadd.f32 0.0, %v1002
        %v1004 = vpop.f32.mrf.mxu0
        %1005 = vdwg.mxu0
        %1006 = vmatprep.subr.mxu0 0.0
        %1007 = vmatpush1.msra.mxu0 0.0
        %1008 = vmatprep.subr.mxu0 0.0
        %1009 = vmatpush1.msra.mxu0 0.0
        %1010 = vmatprep.subr.mxu0 0.0
        %1011 = vmatpush1.msra.mxu0 0.0
        %1012 = vmatprep.subr.mxu0 0.0
        %1013 = vmatpush1.msra.mxu0 0.0
        %1014 = vmatprep.subr.mxu0 0.0
        %1015 = vmatpush1.msra.mxu0 0.0
        %1016 = vmatprep.subr.mxu0 0.0
        %1017 = vmatpush1.msra.mxu0 0.0
        %1018 = vmatprep.subr.mxu0 0.0
        %1019 = vmatpush1.msra.mxu0 0.0
        %1020 = vmatprep.subr.mxu0 0.0
        %1021 = vmatpush1.msra.mxu0 0.0
        %1022 = vmatprep.subr.mxu0 0.0
        %1023 = vmatpush1.msra.mxu0 0.0
        %1024 = vmatprep.subr.mxu0 0.0
        %1025 = vmatpush1.msra.mxu0 0.0
        %1026 = vmatprep.subr.mxu0 0.0
        %1027 = vmatpush1.msra.mxu0 0.0
        %1028 = vmatprep.subr.mxu0 0.0
        %1029 = vmatpush1.msra.mxu0 0.0
        %1030 = vmatprep.subr.mxu0 0.0
        %1031 = vmatpush1.msra.mxu0 %v900
        %1032 = vmatprep.subr.mxu0 0.0
        %1033 = vmatpush1.msra.mxu0 %v899
        %1034 = vmatprep.subr.mxu0 0.0
        %1035 = vmatpush1.msra.mxu0 %v898
        %1036 = vmatprep.subr.mxu0 0.0
        %1037 = vmatpush1.msra.mxu0 %v897
        %1038 = vmatprep.subr.mxu0 0.0
        %1039 = vmatpush2.msra.mxu0 0.0
        %1040 = vmatprep.subr.mxu0 0.0
        %1041 = vmatpush2.msra.mxu0 0.0
        %1042 = vmatprep.subr.mxu0 0.0
        %1043 = vmatpush2.msra.mxu0 0.0
        %1044 = vmatprep.subr.mxu0 0.0
        %1045 = vmatpush2.msra.mxu0 0.0
        %1046 = vmatprep.subr.mxu0 0.0
        %1047 = vmatpush2.msra.mxu0 0.0
        %1048 = vmatprep.subr.mxu0 0.0
        %1049 = vmatpush2.msra.mxu0 0.0
        %1050 = vmatprep.subr.mxu0 0.0
        %1051 = vmatpush2.msra.mxu0 0.0
        %1052 = vmatprep.subr.mxu0 0.0
        %1053 = vmatpush2.msra.mxu0 0.0
        %1054 = vmatprep.subr.mxu0 0.0
        %1055 = vmatpush2.msra.mxu0 0.0
        %1056 = vmatprep.subr.mxu0 0.0
        %1057 = vmatpush2.msra.mxu0 0.0
        %1058 = vmatprep.subr.mxu0 0.0
        %1059 = vmatpush2.msra.mxu0 0.0
        %1060 = vmatprep.subr.mxu0 0.0
        %1061 = vmatpush2.msra.mxu0 0.0
        %1062 = vmatprep.subr.mxu0 0.0
        %1063 = vmatpush2.msra.mxu0 0.0
        %1064 = vmatprep.subr.mxu0 0.0
        %1065 = vmatpush2.msra.mxu0 0.0
        %1066 = vmatprep.subr.mxu0 0.0
        %1067 = vmatpush2.msra.mxu0 0.0
        %1068 = vmatprep.subr.mxu0 0.0
        %1069 = vmatpush2.msra.mxu0 0.0
        %1070 = vmatprep.mubr.f32.mxu0 0.0
        %1071 = vmatmul.mubr.f32.gmra.mxu0 %v926
        %v1072 = vpop.f32.mrf.mxu0
        %v1073 = vadd.f32 0.0, %v1072
        %v1074 = vpop.f32.mrf.mxu0
        %1075 = vmatprep.mubr.f32.mxu0 0.0
        %1076 = vmatmul.mubr.f32.gmra.mxu0 %v929
        %v1077 = vpop.f32.mrf.mxu0
        %v1078 = vadd.f32 0.0, %v1077
        %v1079 = vpop.f32.mrf.mxu0
        %1080 = vdwg.mxu0
        %1081 = vmatprep.subr.mxu0 0.0
        %1082 = vmatpush1.msra.mxu0 0.0
        %1083 = vmatprep.subr.mxu0 0.0
        %1084 = vmatpush1.msra.mxu0 0.0
        %1085 = vmatprep.subr.mxu0 0.0
        %1086 = vmatpush1.msra.mxu0 0.0
        %1087 = vmatprep.subr.mxu0 0.0
        %1088 = vmatpush1.msra.mxu0 0.0
        %1089 = vmatprep.subr.mxu0 0.0
        %1090 = vmatpush1.msra.mxu0 0.0
        %1091 = vmatprep.subr.mxu0 0.0
        %1092 = vmatpush1.msra.mxu0 0.0
        %1093 = vmatprep.subr.mxu0 0.0
        %1094 = vmatpush1.msra.mxu0 0.0
        %1095 = vmatprep.subr.mxu0 0.0
        %1096 = vmatpush1.msra.mxu0 0.0
        %1097 = vmatprep.subr.mxu0 0.0
        %1098 = vmatpush1.msra.mxu0 0.0
        %1099 = vmatprep.subr.mxu0 0.0
        %1100 = vmatpush1.msra.mxu0 0.0
        %1101 = vmatprep.subr.mxu0 0.0
        %1102 = vmatpush1.msra.mxu0 0.0
        %1103 = vmatprep.subr.mxu0 0.0
        %1104 = vmatpush1.msra.mxu0 0.0
        %1105 = vmatprep.subr.mxu0 0.0
        %1106 = vmatpush1.msra.mxu0 %v904
        %1107 = vmatprep.subr.mxu0 0.0
        %1108 = vmatpush1.msra.mxu0 %v903
        %1109 = vmatprep.subr.mxu0 0.0
        %1110 = vmatpush1.msra.mxu0 %v902
        %1111 = vmatprep.subr.mxu0 0.0
        %1112 = vmatpush1.msra.mxu0 %v901
        %1113 = vmatprep.subr.mxu0 0.0
        %1114 = vmatpush2.msra.mxu0 0.0
        %1115 = vmatprep.subr.mxu0 0.0
        %1116 = vmatpush2.msra.mxu0 0.0
        %1117 = vmatprep.subr.mxu0 0.0
        %1118 = vmatpush2.msra.mxu0 0.0
        %1119 = vmatprep.subr.mxu0 0.0
        %1120 = vmatpush2.msra.mxu0 0.0
        %1121 = vmatprep.subr.mxu0 0.0
        %1122 = vmatpush2.msra.mxu0 0.0
        %1123 = vmatprep.subr.mxu0 0.0
        %1124 = vmatpush2.msra.mxu0 0.0
        %1125 = vmatprep.subr.mxu0 0.0
        %1126 = vmatpush2.msra.mxu0 0.0
        %1127 = vmatprep.subr.mxu0 0.0
        %1128 = vmatpush2.msra.mxu0 0.0
        %1129 = vmatprep.subr.mxu0 0.0
        %1130 = vmatpush2.msra.mxu0 0.0
        %1131 = vmatprep.subr.mxu0 0.0
        %1132 = vmatpush2.msra.mxu0 0.0
        %1133 = vmatprep.subr.mxu0 0.0
        %1134 = vmatpush2.msra.mxu0 0.0
        %1135 = vmatprep.subr.mxu0 0.0
        %1136 = vmatpush2.msra.mxu0 0.0
        %1137 = vmatprep.subr.mxu0 0.0
        %1138 = vmatpush2.msra.mxu0 0.0
        %1139 = vmatprep.subr.mxu0 0.0
        %1140 = vmatpush2.msra.mxu0 0.0
        %1141 = vmatprep.subr.mxu0 0.0
        %1142 = vmatpush2.msra.mxu0 0.0
        %1143 = vmatprep.subr.mxu0 0.0
        %1144 = vmatpush2.msra.mxu0 0.0
        %1145 = vmatprep.mubr.f32.mxu0 0.0
        %1146 = vmatmul.mubr.f32.gmra.mxu0 %v926
        %v1147 = vpop.f32.mrf.mxu0
        %v1148 = vadd.f32 0.0, %v1147
        %v1149 = vpop.f32.mrf.mxu0
        %1150 = vmatprep.mubr.f32.mxu0 0.0
        %1151 = vmatmul.mubr.f32.gmra.mxu0 %v929
        %v1152 = vpop.f32.mrf.mxu0
        %v1153 = vadd.f32 0.0, %v1152
        %v1154 = vpop.f32.mrf.mxu0
        %1155 = vdwg.mxu0
        %1156 = vmatprep.subr.mxu0 0.0
        %1157 = vmatpush1.msra.mxu0 0.0
        %1158 = vmatprep.subr.mxu0 0.0
        %1159 = vmatpush1.msra.mxu0 0.0
        %1160 = vmatprep.subr.mxu0 0.0
        %1161 = vmatpush1.msra.mxu0 0.0
        %1162 = vmatprep.subr.mxu0 0.0
        %1163 = vmatpush1.msra.mxu0 0.0
        %1164 = vmatprep.subr.mxu0 0.0
        %1165 = vmatpush1.msra.mxu0 0.0
        %1166 = vmatprep.subr.mxu0 0.0
        %1167 = vmatpush1.msra.mxu0 0.0
        %1168 = vmatprep.subr.mxu0 0.0
        %1169 = vmatpush1.msra.mxu0 0.0
        %1170 = vmatprep.subr.mxu0 0.0
        %1171 = vmatpush1.msra.mxu0 0.0
        %1172 = vmatprep.subr.mxu0 0.0
        %1173 = vmatpush1.msra.mxu0 0.0
        %1174 = vmatprep.subr.mxu0 0.0
        %1175 = vmatpush1.msra.mxu0 0.0
        %1176 = vmatprep.subr.mxu0 0.0
        %1177 = vmatpush1.msra.mxu0 0.0
        %1178 = vmatprep.subr.mxu0 0.0
        %1179 = vmatpush1.msra.mxu0 0.0
        %1180 = vmatprep.subr.mxu0 0.0
        %1181 = vmatpush1.msra.mxu0 %v908
        %1182 = vmatprep.subr.mxu0 0.0
        %1183 = vmatpush1.msra.mxu0 %v907
        %1184 = vmatprep.subr.mxu0 0.0
        %1185 = vmatpush1.msra.mxu0 %v906
        %1186 = vmatprep.subr.mxu0 0.0
        %1187 = vmatpush1.msra.mxu0 %v905
        %1188 = vmatprep.subr.mxu0 0.0
        %1189 = vmatpush2.msra.mxu0 0.0
        %1190 = vmatprep.subr.mxu0 0.0
        %1191 = vmatpush2.msra.mxu0 0.0
        %1192 = vmatprep.subr.mxu0 0.0
        %1193 = vmatpush2.msra.mxu0 0.0
        %1194 = vmatprep.subr.mxu0 0.0
        %1195 = vmatpush2.msra.mxu0 0.0
        %1196 = vmatprep.subr.mxu0 0.0
        %1197 = vmatpush2.msra.mxu0 0.0
        %1198 = vmatprep.subr.mxu0 0.0
        %1199 = vmatpush2.msra.mxu0 0.0
        %1200 = vmatprep.subr.mxu0 0.0
        %1201 = vmatpush2.msra.mxu0 0.0
        %1202 = vmatprep.subr.mxu0 0.0
        %1203 = vmatpush2.msra.mxu0 0.0
        %1204 = vmatprep.subr.mxu0 0.0
        %1205 = vmatpush2.msra.mxu0 0.0
        %1206 = vmatprep.subr.mxu0 0.0
        %1207 = vmatpush2.msra.mxu0 0.0
        %1208 = vmatprep.subr.mxu0 0.0
        %1209 = vmatpush2.msra.mxu0 0.0
        %1210 = vmatprep.subr.mxu0 0.0
        %1211 = vmatpush2.msra.mxu0 0.0
        %1212 = vmatprep.subr.mxu0 0.0
        %1213 = vmatpush2.msra.mxu0 0.0
        %1214 = vmatprep.subr.mxu0 0.0
        %1215 = vmatpush2.msra.mxu0 0.0
        %1216 = vmatprep.subr.mxu0 0.0
        %1217 = vmatpush2.msra.mxu0 0.0
        %1218 = vmatprep.subr.mxu0 0.0
        %1219 = vmatpush2.msra.mxu0 0.0
        %1220 = vmatprep.mubr.f32.mxu0 0.0
        %1221 = vmatmul.mubr.f32.gmra.mxu0 %v926
        %v1222 = vpop.f32.mrf.mxu0
        %v1223 = vadd.f32 0.0, %v1222
        %v1224 = vpop.f32.mrf.mxu0
        %1225 = vmatprep.mubr.f32.mxu0 0.0
        %1226 = vmatmul.mubr.f32.gmra.mxu0 %v929
        %v1227 = vpop.f32.mrf.mxu0
        %v1228 = vadd.f32 0.0, %v1227
        %v1229 = vpop.f32.mrf.mxu0
        %1230 = vdwg.mxu0
        %1231 = vmatprep.subr.mxu0 0.0
        %1232 = vmatpush1.msra.mxu0 0.0
        %1233 = vmatprep.subr.mxu0 0.0
        %1234 = vmatpush1.msra.mxu0 0.0
        %1235 = vmatprep.subr.mxu0 0.0
        %1236 = vmatpush1.msra.mxu0 0.0
        %1237 = vmatprep.subr.mxu0 0.0
        %1238 = vmatpush1.msra.mxu0 0.0
        %1239 = vmatprep.subr.mxu0 0.0
        %1240 = vmatpush1.msra.mxu0 0.0
        %1241 = vmatprep.subr.mxu0 0.0
        %1242 = vmatpush1.msra.mxu0 0.0
        %1243 = vmatprep.subr.mxu0 0.0
        %1244 = vmatpush1.msra.mxu0 0.0
        %1245 = vmatprep.subr.mxu0 0.0
        %1246 = vmatpush1.msra.mxu0 0.0
        %1247 = vmatprep.subr.mxu0 0.0
        %1248 = vmatpush1.msra.mxu0 0.0
        %1249 = vmatprep.subr.mxu0 0.0
        %1250 = vmatpush1.msra.mxu0 0.0
        %1251 = vmatprep.subr.mxu0 0.0
        %1252 = vmatpush1.msra.mxu0 0.0
        %1253 = vmatprep.subr.mxu0 0.0
        %1254 = vmatpush1.msra.mxu0 0.0
        %1255 = vmatprep.subr.mxu0 0.0
        %1256 = vmatpush1.msra.mxu0 %v912
        %1257 = vmatprep.subr.mxu0 0.0
        %1258 = vmatpush1.msra.mxu0 %v911
        %1259 = vmatprep.subr.mxu0 0.0
        %1260 = vmatpush1.msra.mxu0 %v910
        %1261 = vmatprep.subr.mxu0 0.0
        %1262 = vmatpush1.msra.mxu0 %v909
        %1263 = vmatprep.subr.mxu0 0.0
        %1264 = vmatpush2.msra.mxu0 0.0
        %1265 = vmatprep.subr.mxu0 0.0
        %1266 = vmatpush2.msra.mxu0 0.0
        %1267 = vmatprep.subr.mxu0 0.0
        %1268 = vmatpush2.msra.mxu0 0.0
        %1269 = vmatprep.subr.mxu0 0.0
        %1270 = vmatpush2.msra.mxu0 0.0
        %1271 = vmatprep.subr.mxu0 0.0
        %1272 = vmatpush2.msra.mxu0 0.0
        %1273 = vmatprep.subr.mxu0 0.0
        %1274 = vmatpush2.msra.mxu0 0.0
        %1275 = vmatprep.subr.mxu0 0.0
        %1276 = vmatpush2.msra.mxu0 0.0
        %1277 = vmatprep.subr.mxu0 0.0
        %1278 = vmatpush2.msra.mxu0 0.0
        %1279 = vmatprep.subr.mxu0 0.0
        %1280 = vmatpush2.msra.mxu0 0.0
        %1281 = vmatprep.subr.mxu0 0.0
        %1282 = vmatpush2.msra.mxu0 0.0
        %1283 = vmatprep.subr.mxu0 0.0
        %1284 = vmatpush2.msra.mxu0 0.0
        %1285 = vmatprep.subr.mxu0 0.0
        %1286 = vmatpush2.msra.mxu0 0.0
        %1287 = vmatprep.subr.mxu0 0.0
        %1288 = vmatpush2.msra.mxu0 0.0
        %1289 = vmatprep.subr.mxu0 0.0
        %1290 = vmatpush2.msra.mxu0 0.0
        %1291 = vmatprep.subr.mxu0 0.0
        %1292 = vmatpush2.msra.mxu0 0.0
        %1293 = vmatprep.subr.mxu0 0.0
        %1294 = vmatpush2.msra.mxu0 0.0
        %1295 = vmatprep.mubr.f32.mxu0 0.0
        %1296 = vmatmul.mubr.f32.gmra.mxu0 %v926
        %v1297 = vpop.f32.mrf.mxu0
        %v1298 = vadd.f32 0.0, %v1297
        %v1299 = vpop.f32.mrf.mxu0
        %1300 = vmatprep.mubr.f32.mxu0 0.0
        %1301 = vmatmul.mubr.f32.gmra.mxu0 %v929
        %v1302 = vpop.f32.mrf.mxu0
        %v1303 = vadd.f32 0.0, %v1302
        %v1304 = vpop.f32.mrf.mxu0
        %1305 = vdwg.mxu0
        %1306 = vmatprep.subr.mxu0 0.0
        %1307 = vmatpush1.msra.mxu0 0.0
        %1308 = vmatprep.subr.mxu0 0.0
        %1309 = vmatpush1.msra.mxu0 0.0
        %1310 = vmatprep.subr.mxu0 0.0
        %1311 = vmatpush1.msra.mxu0 0.0
        %1312 = vmatprep.subr.mxu0 0.0
        %1313 = vmatpush1.msra.mxu0 0.0
        %1314 = vmatprep.subr.mxu0 0.0
        %1315 = vmatpush1.msra.mxu0 0.0
        %1316 = vmatprep.subr.mxu0 0.0
        %1317 = vmatpush1.msra.mxu0 0.0
        %1318 = vmatprep.subr.mxu0 0.0
        %1319 = vmatpush1.msra.mxu0 0.0
        %1320 = vmatprep.subr.mxu0 0.0
        %1321 = vmatpush1.msra.mxu0 0.0
        %1322 = vmatprep.subr.mxu0 0.0
        %1323 = vmatpush1.msra.mxu0 0.0
        %1324 = vmatprep.subr.mxu0 0.0
        %1325 = vmatpush1.msra.mxu0 0.0
        %1326 = vmatprep.subr.mxu0 0.0
        %1327 = vmatpush1.msra.mxu0 0.0
        %1328 = vmatprep.subr.mxu0 0.0
        %1329 = vmatpush1.msra.mxu0 0.0
        %1330 = vmatprep.subr.mxu0 0.0
        %1331 = vmatpush1.msra.mxu0 %v916
        %1332 = vmatprep.subr.mxu0 0.0
        %1333 = vmatpush1.msra.mxu0 %v915
        %1334 = vmatprep.subr.mxu0 0.0
        %1335 = vmatpush1.msra.mxu0 %v914
        %1336 = vmatprep.subr.mxu0 0.0
        %1337 = vmatpush1.msra.mxu0 %v913
        %1338 = vmatprep.subr.mxu0 0.0
        %1339 = vmatpush2.msra.mxu0 0.0
        %1340 = vmatprep.subr.mxu0 0.0
        %1341 = vmatpush2.msra.mxu0 0.0
        %1342 = vmatprep.subr.mxu0 0.0
        %1343 = vmatpush2.msra.mxu0 0.0
        %1344 = vmatprep.subr.mxu0 0.0
        %1345 = vmatpush2.msra.mxu0 0.0
        %1346 = vmatprep.subr.mxu0 0.0
        %1347 = vmatpush2.msra.mxu0 0.0
        %1348 = vmatprep.subr.mxu0 0.0
        %1349 = vmatpush2.msra.mxu0 0.0
        %1350 = vmatprep.subr.mxu0 0.0
        %1351 = vmatpush2.msra.mxu0 0.0
        %1352 = vmatprep.subr.mxu0 0.0
        %1353 = vmatpush2.msra.mxu0 0.0
        %1354 = vmatprep.subr.mxu0 0.0
        %1355 = vmatpush2.msra.mxu0 0.0
        %1356 = vmatprep.subr.mxu0 0.0
        %1357 = vmatpush2.msra.mxu0 0.0
        %1358 = vmatprep.subr.mxu0 0.0
        %1359 = vmatpush2.msra.mxu0 0.0
        %1360 = vmatprep.subr.mxu0 0.0
        %1361 = vmatpush2.msra.mxu0 0.0
        %1362 = vmatprep.subr.mxu0 0.0
        %1363 = vmatpush2.msra.mxu0 0.0
        %1364 = vmatprep.subr.mxu0 0.0
        %1365 = vmatpush2.msra.mxu0 0.0
        %1366 = vmatprep.subr.mxu0 0.0
        %1367 = vmatpush2.msra.mxu0 0.0
        %1368 = vmatprep.subr.mxu0 0.0
        %1369 = vmatpush2.msra.mxu0 0.0
        %1370 = vmatprep.mubr.f32.mxu0 0.0
        %1371 = vmatmul.mubr.f32.gmra.mxu0 %v926
        %v1372 = vpop.f32.mrf.mxu0
        %v1373 = vadd.f32 0.0, %v1372
        %v1374 = vpop.f32.mrf.mxu0
        %1375 = vmatprep.mubr.f32.mxu0 0.0
        %1376 = vmatmul.mubr.f32.gmra.mxu0 %v929
        %v1377 = vpop.f32.mrf.mxu0
        %v1378 = vadd.f32 0.0, %v1377
        %v1379 = vpop.f32.mrf.mxu0
        %1380 = vdwg.mxu0
        %1381 = vmatprep.subr.mxu0 0.0
        %1382 = vmatpush1.msra.mxu0 0.0
        %1383 = vmatprep.subr.mxu0 0.0
        %1384 = vmatpush1.msra.mxu0 0.0
        %1385 = vmatprep.subr.mxu0 0.0
        %1386 = vmatpush1.msra.mxu0 0.0
        %1387 = vmatprep.subr.mxu0 0.0
        %1388 = vmatpush1.msra.mxu0 0.0
        %1389 = vmatprep.subr.mxu0 0.0
        %1390 = vmatpush1.msra.mxu0 0.0
        %1391 = vmatprep.subr.mxu0 0.0
        %1392 = vmatpush1.msra.mxu0 0.0
        %1393 = vmatprep.subr.mxu0 0.0
        %1394 = vmatpush1.msra.mxu0 0.0
        %1395 = vmatprep.subr.mxu0 0.0
        %1396 = vmatpush1.msra.mxu0 0.0
        %1397 = vmatprep.subr.mxu0 0.0
        %1398 = vmatpush1.msra.mxu0 0.0
        %1399 = vmatprep.subr.mxu0 0.0
        %1400 = vmatpush1.msra.mxu0 0.0
        %1401 = vmatprep.subr.mxu0 0.0
        %1402 = vmatpush1.msra.mxu0 0.0
        %1403 = vmatprep.subr.mxu0 0.0
        %1404 = vmatpush1.msra.mxu0 0.0
        %1405 = vmatprep.subr.mxu0 0.0
        %1406 = vmatpush1.msra.mxu0 %v920
        %1407 = vmatprep.subr.mxu0 0.0
        %1408 = vmatpush1.msra.mxu0 %v919
        %1409 = vmatprep.subr.mxu0 0.0
        %1410 = vmatpush1.msra.mxu0 %v918
        %1411 = vmatprep.subr.mxu0 0.0
        %1412 = vmatpush1.msra.mxu0 %v917
        %1413 = vmatprep.subr.mxu0 0.0
        %1414 = vmatpush2.msra.mxu0 0.0
        %1415 = vmatprep.subr.mxu0 0.0
        %1416 = vmatpush2.msra.mxu0 0.0
        %1417 = vmatprep.subr.mxu0 0.0
        %1418 = vmatpush2.msra.mxu0 0.0
        %1419 = vmatprep.subr.mxu0 0.0
        %1420 = vmatpush2.msra.mxu0 0.0
        %1421 = vmatprep.subr.mxu0 0.0
        %1422 = vmatpush2.msra.mxu0 0.0
        %1423 = vmatprep.subr.mxu0 0.0
        %1424 = vmatpush2.msra.mxu0 0.0
        %1425 = vmatprep.subr.mxu0 0.0
        %1426 = vmatpush2.msra.mxu0 0.0
        %1427 = vmatprep.subr.mxu0 0.0
        %1428 = vmatpush2.msra.mxu0 0.0
        %1429 = vmatprep.subr.mxu0 0.0
        %1430 = vmatpush2.msra.mxu0 0.0
        %1431 = vmatprep.subr.mxu0 0.0
        %1432 = vmatpush2.msra.mxu0 0.0
        %1433 = vmatprep.subr.mxu0 0.0
        %1434 = vmatpush2.msra.mxu0 0.0
        %1435 = vmatprep.subr.mxu0 0.0
        %1436 = vmatpush2.msra.mxu0 0.0
        %1437 = vmatprep.subr.mxu0 0.0
        %1438 = vmatpush2.msra.mxu0 0.0
        %1439 = vmatprep.subr.mxu0 0.0
        %1440 = vmatpush2.msra.mxu0 0.0
        %1441 = vmatprep.subr.mxu0 0.0
        %1442 = vmatpush2.msra.mxu0 0.0
        %1443 = vmatprep.subr.mxu0 0.0
        %1444 = vmatpush2.msra.mxu0 0.0
        %1445 = vmatprep.mubr.f32.mxu0 0.0
        %1446 = vmatmul.mubr.f32.gmra.mxu0 %v926
        %v1447 = vpop.f32.mrf.mxu0
        %v1448 = vadd.f32 0.0, %v1447
        %v1449 = vpop.f32.mrf.mxu0
        %1450 = vmatprep.mubr.f32.mxu0 0.0
        %1451 = vmatmul.mubr.f32.gmra.mxu0 %v929
        %v1452 = vpop.f32.mrf.mxu0
        %v1453 = vadd.f32 0.0, %v1452
        %v1454 = vpop.f32.mrf.mxu0
        %1455 = vdwg.mxu0
        %1456 = vmatprep.subr.mxu0 0.0
        %1457 = vmatpush1.msra.mxu0 0.0
        %1458 = vmatprep.subr.mxu0 0.0
        %1459 = vmatpush1.msra.mxu0 0.0
        %1460 = vmatprep.subr.mxu0 0.0
        %1461 = vmatpush1.msra.mxu0 0.0
        %1462 = vmatprep.subr.mxu0 0.0
        %1463 = vmatpush1.msra.mxu0 0.0
        %1464 = vmatprep.subr.mxu0 0.0
        %1465 = vmatpush1.msra.mxu0 0.0
        %1466 = vmatprep.subr.mxu0 0.0
        %1467 = vmatpush1.msra.mxu0 0.0
        %1468 = vmatprep.subr.mxu0 0.0
        %1469 = vmatpush1.msra.mxu0 0.0
        %1470 = vmatprep.subr.mxu0 0.0
        %1471 = vmatpush1.msra.mxu0 0.0
        %1472 = vmatprep.subr.mxu0 0.0
        %1473 = vmatpush1.msra.mxu0 0.0
        %1474 = vmatprep.subr.mxu0 0.0
        %1475 = vmatpush1.msra.mxu0 0.0
        %1476 = vmatprep.subr.mxu0 0.0
        %1477 = vmatpush1.msra.mxu0 0.0
        %1478 = vmatprep.subr.mxu0 0.0
        %1479 = vmatpush1.msra.mxu0 0.0
        %1480 = vmatprep.subr.mxu0 0.0
        %1481 = vmatpush1.msra.mxu0 %v924
        %1482 = vmatprep.subr.mxu0 0.0
        %1483 = vmatpush1.msra.mxu0 %v923
        %1484 = vmatprep.subr.mxu0 0.0
        %1485 = vmatpush1.msra.mxu0 %v922
        %1486 = vmatprep.subr.mxu0 0.0
        %1487 = vmatpush1.msra.mxu0 %v921
        %1488 = vmatprep.subr.mxu0 0.0
        %1489 = vmatpush2.msra.mxu0 0.0
        %1490 = vmatprep.subr.mxu0 0.0
        %1491 = vmatpush2.msra.mxu0 0.0
        %1492 = vmatprep.subr.mxu0 0.0
        %1493 = vmatpush2.msra.mxu0 0.0
        %1494 = vmatprep.subr.mxu0 0.0
        %1495 = vmatpush2.msra.mxu0 0.0
        %1496 = vmatprep.subr.mxu0 0.0
        %1497 = vmatpush2.msra.mxu0 0.0
        %1498 = vmatprep.subr.mxu0 0.0
        %1499 = vmatpush2.msra.mxu0 0.0
        %1500 = vmatprep.subr.mxu0 0.0
        %1501 = vmatpush2.msra.mxu0 0.0
        %1502 = vmatprep.subr.mxu0 0.0
        %1503 = vmatpush2.msra.mxu0 0.0
        %1504 = vmatprep.subr.mxu0 0.0
        %1505 = vmatpush2.msra.mxu0 0.0
        %1506 = vmatprep.subr.mxu0 0.0
        %1507 = vmatpush2.msra.mxu0 0.0
        %1508 = vmatprep.subr.mxu0 0.0
        %1509 = vmatpush2.msra.mxu0 0.0
        %1510 = vmatprep.subr.mxu0 0.0
        %1511 = vmatpush2.msra.mxu0 0.0
        %1512 = vmatprep.subr.mxu0 0.0
        %1513 = vmatpush2.msra.mxu0 0.0
        %1514 = vmatprep.subr.mxu0 0.0
        %1515 = vmatpush2.msra.mxu0 0.0
        %1516 = vmatprep.subr.mxu0 0.0
        %1517 = vmatpush2.msra.mxu0 0.0
        %1518 = vmatprep.subr.mxu0 0.0
        %1519 = vmatpush2.msra.mxu0 0.0
        %1520 = vmatprep.mubr.f32.mxu0 0.0
        %1521 = vmatmul.mubr.f32.gmra.mxu0 %v926
        %v1522 = vpop.f32.mrf.mxu0
        %v1523 = vadd.f32 0.0, %v1522
        %v1524 = vpop.f32.mrf.mxu0
        %1525 = vmatprep.mubr.f32.mxu0 0.0
        %1526 = vmatmul.mubr.f32.gmra.mxu0 %v929
        %v1527 = vpop.f32.mrf.mxu0
        %v1528 = vadd.f32 0.0, %v1527
        %v1529 = vpop.f32.mrf.mxu0
        %1530 = vdwg.mxu0
        %v1531 = vld [vmem:[%s4] sm:$0xff]
        %v1532 = vld [vmem:[%s4 + $0x8] sm:$0xff]
        %v1533 = vld [vmem:[%s4 + $0x10] sm:$0xff]
        %v1534 = vld [vmem:[%s4 + $0x18] sm:$0xff]
        %v1535 = vld [vmem:[%s4 + $0x20] sm:$0xff]
        %v1536 = vld [vmem:[%s4 + $0x28] sm:$0xff]
        %v1537 = vld [vmem:[%s4 + $0x30] sm:$0xff]
        %v1538 = vld [vmem:[%s4 + $0x38] sm:$0xff]
        %v1539 = vld [vmem:[%s4 + $0x40] sm:$0xff]
        %v1540 = vld [vmem:[%s4 + $0x48] sm:$0xff]
        %v1541 = vld [vmem:[%s4 + $0x50] sm:$0xff]
        %v1542 = vld [vmem:[%s4 + $0x58] sm:$0xff]
        %v1543 = vld [vmem:[%s4 + $0x60] sm:$0xff]
        %v1544 = vld [vmem:[%s4 + $0x68] sm:$0xff]
        %v1545 = vld [vmem:[%s4 + $0x70] sm:$0xff]
        %v1546 = vld [vmem:[%s4 + $0x78] sm:$0xff]
        %v1547 = vld [vmem:[%s4 + $0x80] sm:$0xff]
        %v1548 = vld [vmem:[%s4 + $0x88] sm:$0xff]
        %v1549 = vld [vmem:[%s4 + $0x90] sm:$0xff]
        %v1550 = vld [vmem:[%s4 + $0x98] sm:$0xff]
        %v1551 = vld [vmem:[%s4 + $0xa0] sm:$0xff]
        %v1552 = vld [vmem:[%s4 + $0xa8] sm:$0xff]
        %v1553 = vld [vmem:[%s4 + $0xb0] sm:$0xff]
        %v1554 = vld [vmem:[%s4 + $0xb8] sm:$0xff]
        %v1555 = vld [vmem:[%s4 + $0xc0] sm:$0xff]
        %v1556 = vld [vmem:[%s4 + $0xc8] sm:$0xff]
        %v1557 = vld [vmem:[%s4 + $0xd0] sm:$0xff]
        %v1558 = vld [vmem:[%s4 + $0xd8] sm:$0xff]
        %v1559 = vld [vmem:[%s4 + $0xe0] sm:$0xff]
        %v1560 = vld [vmem:[%s4 + $0xe8] sm:$0xff]
        %v1561 = vld [vmem:[%s4 + $0xf0] sm:$0xff]
        %v1562 = vld [vmem:[%s4 + $0xf8] sm:$0xff]
        %1563 = vmatprep.subr.mxu0 0.0
        %1564 = vmatpush1.msra.mxu0 0.0
        %1565 = vmatprep.subr.mxu0 0.0
        %1566 = vmatpush1.msra.mxu0 0.0
        %1567 = vmatprep.subr.mxu0 0.0
        %1568 = vmatpush1.msra.mxu0 0.0
        %1569 = vmatprep.subr.mxu0 0.0
        %1570 = vmatpush1.msra.mxu0 0.0
        %1571 = vmatprep.subr.mxu0 0.0
        %1572 = vmatpush1.msra.mxu0 0.0
        %1573 = vmatprep.subr.mxu0 0.0
        %1574 = vmatpush1.msra.mxu0 0.0
        %1575 = vmatprep.subr.mxu0 0.0
        %1576 = vmatpush1.msra.mxu0 0.0
        %1577 = vmatprep.subr.mxu0 0.0
        %1578 = vmatpush1.msra.mxu0 0.0
        %1579 = vmatprep.subr.mxu0 0.0
        %1580 = vmatpush1.msra.mxu0 0.0
        %1581 = vmatprep.subr.mxu0 0.0
        %1582 = vmatpush1.msra.mxu0 0.0
        %1583 = vmatprep.subr.mxu0 0.0
        %1584 = vmatpush1.msra.mxu0 0.0
        %1585 = vmatprep.subr.mxu0 0.0
        %1586 = vmatpush1.msra.mxu0 0.0
        %1587 = vmatprep.subr.mxu0 0.0
        %1588 = vmatpush1.msra.mxu0 %v1534
        %1589 = vmatprep.subr.mxu0 0.0
        %1590 = vmatpush1.msra.mxu0 %v1533
        %1591 = vmatprep.subr.mxu0 0.0
        %1592 = vmatpush1.msra.mxu0 %v1532
        %1593 = vmatprep.subr.mxu0 0.0
        %1594 = vmatpush1.msra.mxu0 %v1531
        %1595 = vmatprep.subr.mxu0 0.0
        %1596 = vmatpush2.msra.mxu0 0.0
        %1597 = vmatprep.subr.mxu0 0.0
        %1598 = vmatpush2.msra.mxu0 0.0
        %1599 = vmatprep.subr.mxu0 0.0
        %1600 = vmatpush2.msra.mxu0 0.0
        %1601 = vmatprep.subr.mxu0 0.0
        %1602 = vmatpush2.msra.mxu0 0.0
        %1603 = vmatprep.subr.mxu0 0.0
        %1604 = vmatpush2.msra.mxu0 0.0
        %1605 = vmatprep.subr.mxu0 0.0
        %1606 = vmatpush2.msra.mxu0 0.0
        %1607 = vmatprep.subr.mxu0 0.0
        %1608 = vmatpush2.msra.mxu0 0.0
        %1609 = vmatprep.subr.mxu0 0.0
        %1610 = vmatpush2.msra.mxu0 0.0
        %1611 = vmatprep.subr.mxu0 0.0
        %1612 = vmatpush2.msra.mxu0 0.0
        %1613 = vmatprep.subr.mxu0 0.0
        %1614 = vmatpush2.msra.mxu0 0.0
        %1615 = vmatprep.subr.mxu0 0.0
        %1616 = vmatpush2.msra.mxu0 0.0
        %1617 = vmatprep.subr.mxu0 0.0
        %1618 = vmatpush2.msra.mxu0 0.0
        %1619 = vmatprep.subr.mxu0 0.0
        %1620 = vmatpush2.msra.mxu0 0.0
        %1621 = vmatprep.subr.mxu0 0.0
        %1622 = vmatpush2.msra.mxu0 0.0
        %1623 = vmatprep.subr.mxu0 0.0
        %1624 = vmatpush2.msra.mxu0 0.0
        %1625 = vmatprep.subr.mxu0 0.0
        %1626 = vmatpush2.msra.mxu0 0.0
        %1627 = vmatprep.mubr.f32.mxu0 0.0
        %1628 = vmatmul.mubr.f32.gmra.mxu0 %v926
        %v1629 = vpop.f32.mrf.mxu0
        %v1630 = vadd.f32 0.0, %v1629
        %v1631 = vpop.f32.mrf.mxu0
        %1632 = vmatprep.mubr.f32.mxu0 0.0
        %1633 = vmatmul.mubr.f32.gmra.mxu0 %v929
        %v1634 = vpop.f32.mrf.mxu0
        %v1635 = vadd.f32 0.0, %v1634
        %v1636 = vpop.f32.mrf.mxu0
        %1637 = vdwg.mxu0
        %1638 = vmatprep.subr.mxu0 0.0
        %1639 = vmatpush1.msra.mxu0 0.0
        %1640 = vmatprep.subr.mxu0 0.0
        %1641 = vmatpush1.msra.mxu0 0.0
        %1642 = vmatprep.subr.mxu0 0.0
        %1643 = vmatpush1.msra.mxu0 0.0
        %1644 = vmatprep.subr.mxu0 0.0
        %1645 = vmatpush1.msra.mxu0 0.0
        %1646 = vmatprep.subr.mxu0 0.0
        %1647 = vmatpush1.msra.mxu0 0.0
        %1648 = vmatprep.subr.mxu0 0.0
        %1649 = vmatpush1.msra.mxu0 0.0
        %1650 = vmatprep.subr.mxu0 0.0
        %1651 = vmatpush1.msra.mxu0 0.0
        %1652 = vmatprep.subr.mxu0 0.0
        %1653 = vmatpush1.msra.mxu0 0.0
        %1654 = vmatprep.subr.mxu0 0.0
        %1655 = vmatpush1.msra.mxu0 0.0
        %1656 = vmatprep.subr.mxu0 0.0
        %1657 = vmatpush1.msra.mxu0 0.0
        %1658 = vmatprep.subr.mxu0 0.0
        %1659 = vmatpush1.msra.mxu0 0.0
        %1660 = vmatprep.subr.mxu0 0.0
        %1661 = vmatpush1.msra.mxu0 0.0
        %1662 = vmatprep.subr.mxu0 0.0
        %1663 = vmatpush1.msra.mxu0 %v1538
        %1664 = vmatprep.subr.mxu0 0.0
        %1665 = vmatpush1.msra.mxu0 %v1537
        %1666 = vmatprep.subr.mxu0 0.0
        %1667 = vmatpush1.msra.mxu0 %v1536
        %1668 = vmatprep.subr.mxu0 0.0
        %1669 = vmatpush1.msra.mxu0 %v1535
        %1670 = vmatprep.subr.mxu0 0.0
        %1671 = vmatpush2.msra.mxu0 0.0
        %1672 = vmatprep.subr.mxu0 0.0
        %1673 = vmatpush2.msra.mxu0 0.0
        %1674 = vmatprep.subr.mxu0 0.0
        %1675 = vmatpush2.msra.mxu0 0.0
        %1676 = vmatprep.subr.mxu0 0.0
        %1677 = vmatpush2.msra.mxu0 0.0
        %1678 = vmatprep.subr.mxu0 0.0
        %1679 = vmatpush2.msra.mxu0 0.0
        %1680 = vmatprep.subr.mxu0 0.0
        %1681 = vmatpush2.msra.mxu0 0.0
        %1682 = vmatprep.subr.mxu0 0.0
        %1683 = vmatpush2.msra.mxu0 0.0
        %1684 = vmatprep.subr.mxu0 0.0
        %1685 = vmatpush2.msra.mxu0 0.0
        %1686 = vmatprep.subr.mxu0 0.0
        %1687 = vmatpush2.msra.mxu0 0.0
        %1688 = vmatprep.subr.mxu0 0.0
        %1689 = vmatpush2.msra.mxu0 0.0
        %1690 = vmatprep.subr.mxu0 0.0
        %1691 = vmatpush2.msra.mxu0 0.0
        %1692 = vmatprep.subr.mxu0 0.0
        %1693 = vmatpush2.msra.mxu0 0.0
        %1694 = vmatprep.subr.mxu0 0.0
        %1695 = vmatpush2.msra.mxu0 0.0
        %1696 = vmatprep.subr.mxu0 0.0
        %1697 = vmatpush2.msra.mxu0 0.0
        %1698 = vmatprep.subr.mxu0 0.0
        %1699 = vmatpush2.msra.mxu0 0.0
        %1700 = vmatprep.subr.mxu0 0.0
        %1701 = vmatpush2.msra.mxu0 0.0
        %1702 = vmatprep.mubr.f32.mxu0 0.0
        %1703 = vmatmul.mubr.f32.gmra.mxu0 %v926
        %v1704 = vpop.f32.mrf.mxu0
        %v1705 = vadd.f32 0.0, %v1704
        %v1706 = vpop.f32.mrf.mxu0
        %1707 = vmatprep.mubr.f32.mxu0 0.0
        %1708 = vmatmul.mubr.f32.gmra.mxu0 %v929
        %v1709 = vpop.f32.mrf.mxu0
        %v1710 = vadd.f32 0.0, %v1709
        %v1711 = vpop.f32.mrf.mxu0
        %1712 = vdwg.mxu0
        %1713 = vmatprep.subr.mxu0 0.0
        %1714 = vmatpush1.msra.mxu0 0.0
        %1715 = vmatprep.subr.mxu0 0.0
        %1716 = vmatpush1.msra.mxu0 0.0
        %1717 = vmatprep.subr.mxu0 0.0
        %1718 = vmatpush1.msra.mxu0 0.0
        %1719 = vmatprep.subr.mxu0 0.0
        %1720 = vmatpush1.msra.mxu0 0.0
        %1721 = vmatprep.subr.mxu0 0.0
        %1722 = vmatpush1.msra.mxu0 0.0
        %1723 = vmatprep.subr.mxu0 0.0
        %1724 = vmatpush1.msra.mxu0 0.0
        %1725 = vmatprep.subr.mxu0 0.0
        %1726 = vmatpush1.msra.mxu0 0.0
        %1727 = vmatprep.subr.mxu0 0.0
        %1728 = vmatpush1.msra.mxu0 0.0
        %1729 = vmatprep.subr.mxu0 0.0
        %1730 = vmatpush1.msra.mxu0 0.0
        %1731 = vmatprep.subr.mxu0 0.0
        %1732 = vmatpush1.msra.mxu0 0.0
        %1733 = vmatprep.subr.mxu0 0.0
        %1734 = vmatpush1.msra.mxu0 0.0
        %1735 = vmatprep.subr.mxu0 0.0
        %1736 = vmatpush1.msra.mxu0 0.0
        %1737 = vmatprep.subr.mxu0 0.0
        %1738 = vmatpush1.msra.mxu0 %v1542
        %1739 = vmatprep.subr.mxu0 0.0
        %1740 = vmatpush1.msra.mxu0 %v1541
        %1741 = vmatprep.subr.mxu0 0.0
        %1742 = vmatpush1.msra.mxu0 %v1540
        %1743 = vmatprep.subr.mxu0 0.0
        %1744 = vmatpush1.msra.mxu0 %v1539
        %1745 = vmatprep.subr.mxu0 0.0
        %1746 = vmatpush2.msra.mxu0 0.0
        %1747 = vmatprep.subr.mxu0 0.0
        %1748 = vmatpush2.msra.mxu0 0.0
        %1749 = vmatprep.subr.mxu0 0.0
        %1750 = vmatpush2.msra.mxu0 0.0
        %1751 = vmatprep.subr.mxu0 0.0
        %1752 = vmatpush2.msra.mxu0 0.0
        %1753 = vmatprep.subr.mxu0 0.0
        %1754 = vmatpush2.msra.mxu0 0.0
        %1755 = vmatprep.subr.mxu0 0.0
        %1756 = vmatpush2.msra.mxu0 0.0
        %1757 = vmatprep.subr.mxu0 0.0
        %1758 = vmatpush2.msra.mxu0 0.0
        %1759 = vmatprep.subr.mxu0 0.0
        %1760 = vmatpush2.msra.mxu0 0.0
        %1761 = vmatprep.subr.mxu0 0.0
        %1762 = vmatpush2.msra.mxu0 0.0
        %1763 = vmatprep.subr.mxu0 0.0
        %1764 = vmatpush2.msra.mxu0 0.0
        %1765 = vmatprep.subr.mxu0 0.0
        %1766 = vmatpush2.msra.mxu0 0.0
        %1767 = vmatprep.subr.mxu0 0.0
        %1768 = vmatpush2.msra.mxu0 0.0
        %1769 = vmatprep.subr.mxu0 0.0
        %1770 = vmatpush2.msra.mxu0 0.0
        %1771 = vmatprep.subr.mxu0 0.0
        %1772 = vmatpush2.msra.mxu0 0.0
        %1773 = vmatprep.subr.mxu0 0.0
        %1774 = vmatpush2.msra.mxu0 0.0
        %1775 = vmatprep.subr.mxu0 0.0
        %1776 = vmatpush2.msra.mxu0 0.0
        %1777 = vmatprep.mubr.f32.mxu0 0.0
        %1778 = vmatmul.mubr.f32.gmra.mxu0 %v926
        %v1779 = vpop.f32.mrf.mxu0
        %v1780 = vadd.f32 0.0, %v1779
        %v1781 = vpop.f32.mrf.mxu0
        %1782 = vmatprep.mubr.f32.mxu0 0.0
        %1783 = vmatmul.mubr.f32.gmra.mxu0 %v929
        %v1784 = vpop.f32.mrf.mxu0
        %v1785 = vadd.f32 0.0, %v1784
        %v1786 = vpop.f32.mrf.mxu0
        %1787 = vdwg.mxu0
        %1788 = vmatprep.subr.mxu0 0.0
        %1789 = vmatpush1.msra.mxu0 0.0
        %1790 = vmatprep.subr.mxu0 0.0
        %1791 = vmatpush1.msra.mxu0 0.0
        %1792 = vmatprep.subr.mxu0 0.0
        %1793 = vmatpush1.msra.mxu0 0.0
        %1794 = vmatprep.subr.mxu0 0.0
        %1795 = vmatpush1.msra.mxu0 0.0
        %1796 = vmatprep.subr.mxu0 0.0
        %1797 = vmatpush1.msra.mxu0 0.0
        %1798 = vmatprep.subr.mxu0 0.0
        %1799 = vmatpush1.msra.mxu0 0.0
        %1800 = vmatprep.subr.mxu0 0.0
        %1801 = vmatpush1.msra.mxu0 0.0
        %1802 = vmatprep.subr.mxu0 0.0
        %1803 = vmatpush1.msra.mxu0 0.0
        %1804 = vmatprep.subr.mxu0 0.0
        %1805 = vmatpush1.msra.mxu0 0.0
        %1806 = vmatprep.subr.mxu0 0.0
        %1807 = vmatpush1.msra.mxu0 0.0
        %1808 = vmatprep.subr.mxu0 0.0
        %1809 = vmatpush1.msra.mxu0 0.0
        %1810 = vmatprep.subr.mxu0 0.0
        %1811 = vmatpush1.msra.mxu0 0.0
        %1812 = vmatprep.subr.mxu0 0.0
        %1813 = vmatpush1.msra.mxu0 %v1546
        %1814 = vmatprep.subr.mxu0 0.0
        %1815 = vmatpush1.msra.mxu0 %v1545
        %1816 = vmatprep.subr.mxu0 0.0
        %1817 = vmatpush1.msra.mxu0 %v1544
        %1818 = vmatprep.subr.mxu0 0.0
        %1819 = vmatpush1.msra.mxu0 %v1543
        %1820 = vmatprep.subr.mxu0 0.0
        %1821 = vmatpush2.msra.mxu0 0.0
        %1822 = vmatprep.subr.mxu0 0.0
        %1823 = vmatpush2.msra.mxu0 0.0
        %1824 = vmatprep.subr.mxu0 0.0
        %1825 = vmatpush2.msra.mxu0 0.0
        %1826 = vmatprep.subr.mxu0 0.0
        %1827 = vmatpush2.msra.mxu0 0.0
        %1828 = vmatprep.subr.mxu0 0.0
        %1829 = vmatpush2.msra.mxu0 0.0
        %1830 = vmatprep.subr.mxu0 0.0
        %1831 = vmatpush2.msra.mxu0 0.0
        %1832 = vmatprep.subr.mxu0 0.0
        %1833 = vmatpush2.msra.mxu0 0.0
        %1834 = vmatprep.subr.mxu0 0.0
        %1835 = vmatpush2.msra.mxu0 0.0
        %1836 = vmatprep.subr.mxu0 0.0
        %1837 = vmatpush2.msra.mxu0 0.0
        %1838 = vmatprep.subr.mxu0 0.0
        %1839 = vmatpush2.msra.mxu0 0.0
        %1840 = vmatprep.subr.mxu0 0.0
        %1841 = vmatpush2.msra.mxu0 0.0
        %1842 = vmatprep.subr.mxu0 0.0
        %1843 = vmatpush2.msra.mxu0 0.0
        %1844 = vmatprep.subr.mxu0 0.0
        %1845 = vmatpush2.msra.mxu0 0.0
        %1846 = vmatprep.subr.mxu0 0.0
        %1847 = vmatpush2.msra.mxu0 0.0
        %1848 = vmatprep.subr.mxu0 0.0
        %1849 = vmatpush2.msra.mxu0 0.0
        %1850 = vmatprep.subr.mxu0 0.0
        %1851 = vmatpush2.msra.mxu0 0.0
        %1852 = vmatprep.mubr.f32.mxu0 0.0
        %1853 = vmatmul.mubr.f32.gmra.mxu0 %v926
        %v1854 = vpop.f32.mrf.mxu0
        %v1855 = vadd.f32 0.0, %v1854
        %v1856 = vpop.f32.mrf.mxu0
        %1857 = vmatprep.mubr.f32.mxu0 0.0
        %1858 = vmatmul.mubr.f32.gmra.mxu0 %v929
        %v1859 = vpop.f32.mrf.mxu0
        %v1860 = vadd.f32 0.0, %v1859
        %v1861 = vpop.f32.mrf.mxu0
        %1862 = vdwg.mxu0
        %1863 = vmatprep.subr.mxu0 0.0
        %1864 = vmatpush1.msra.mxu0 0.0
        %1865 = vmatprep.subr.mxu0 0.0
        %1866 = vmatpush1.msra.mxu0 0.0
        %1867 = vmatprep.subr.mxu0 0.0
        %1868 = vmatpush1.msra.mxu0 0.0
        %1869 = vmatprep.subr.mxu0 0.0
        %1870 = vmatpush1.msra.mxu0 0.0
        %1871 = vmatprep.subr.mxu0 0.0
        %1872 = vmatpush1.msra.mxu0 0.0
        %1873 = vmatprep.subr.mxu0 0.0
        %1874 = vmatpush1.msra.mxu0 0.0
        %1875 = vmatprep.subr.mxu0 0.0
        %1876 = vmatpush1.msra.mxu0 0.0
        %1877 = vmatprep.subr.mxu0 0.0
        %1878 = vmatpush1.msra.mxu0 0.0
        %1879 = vmatprep.subr.mxu0 0.0
        %1880 = vmatpush1.msra.mxu0 0.0
        %1881 = vmatprep.subr.mxu0 0.0
        %1882 = vmatpush1.msra.mxu0 0.0
        %1883 = vmatprep.subr.mxu0 0.0
        %1884 = vmatpush1.msra.mxu0 0.0
        %1885 = vmatprep.subr.mxu0 0.0
        %1886 = vmatpush1.msra.mxu0 0.0
        %1887 = vmatprep.subr.mxu0 0.0
        %1888 = vmatpush1.msra.mxu0 %v1550
        %1889 = vmatprep.subr.mxu0 0.0
        %1890 = vmatpush1.msra.mxu0 %v1549
        %1891 = vmatprep.subr.mxu0 0.0
        %1892 = vmatpush1.msra.mxu0 %v1548
        %1893 = vmatprep.subr.mxu0 0.0
        %1894 = vmatpush1.msra.mxu0 %v1547
        %1895 = vmatprep.subr.mxu0 0.0
        %1896 = vmatpush2.msra.mxu0 0.0
        %1897 = vmatprep.subr.mxu0 0.0
        %1898 = vmatpush2.msra.mxu0 0.0
        %1899 = vmatprep.subr.mxu0 0.0
        %1900 = vmatpush2.msra.mxu0 0.0
        %1901 = vmatprep.subr.mxu0 0.0
        %1902 = vmatpush2.msra.mxu0 0.0
        %1903 = vmatprep.subr.mxu0 0.0
        %1904 = vmatpush2.msra.mxu0 0.0
        %1905 = vmatprep.subr.mxu0 0.0
        %1906 = vmatpush2.msra.mxu0 0.0
        %1907 = vmatprep.subr.mxu0 0.0
        %1908 = vmatpush2.msra.mxu0 0.0
        %1909 = vmatprep.subr.mxu0 0.0
        %1910 = vmatpush2.msra.mxu0 0.0
        %1911 = vmatprep.subr.mxu0 0.0
        %1912 = vmatpush2.msra.mxu0 0.0
        %1913 = vmatprep.subr.mxu0 0.0
        %1914 = vmatpush2.msra.mxu0 0.0
        %1915 = vmatprep.subr.mxu0 0.0
        %1916 = vmatpush2.msra.mxu0 0.0
        %1917 = vmatprep.subr.mxu0 0.0
        %1918 = vmatpush2.msra.mxu0 0.0
        %1919 = vmatprep.subr.mxu0 0.0
        %1920 = vmatpush2.msra.mxu0 0.0
        %1921 = vmatprep.subr.mxu0 0.0
        %1922 = vmatpush2.msra.mxu0 0.0
        %1923 = vmatprep.subr.mxu0 0.0
        %1924 = vmatpush2.msra.mxu0 0.0
        %1925 = vmatprep.subr.mxu0 0.0
        %1926 = vmatpush2.msra.mxu0 0.0
        %1927 = vmatprep.mubr.f32.mxu0 0.0
        %1928 = vmatmul.mubr.f32.gmra.mxu0 %v926
        %v1929 = vpop.f32.mrf.mxu0
        %v1930 = vadd.f32 0.0, %v1929
        %v1931 = vpop.f32.mrf.mxu0
        %1932 = vmatprep.mubr.f32.mxu0 0.0
        %1933 = vmatmul.mubr.f32.gmra.mxu0 %v929
        %v1934 = vpop.f32.mrf.mxu0
        %v1935 = vadd.f32 0.0, %v1934
        %v1936 = vpop.f32.mrf.mxu0
        %1937 = vdwg.mxu0
        %1938 = vmatprep.subr.mxu0 0.0
        %1939 = vmatpush1.msra.mxu0 0.0
        %1940 = vmatprep.subr.mxu0 0.0
        %1941 = vmatpush1.msra.mxu0 0.0
        %1942 = vmatprep.subr.mxu0 0.0
        %1943 = vmatpush1.msra.mxu0 0.0
        %1944 = vmatprep.subr.mxu0 0.0
        %1945 = vmatpush1.msra.mxu0 0.0
        %1946 = vmatprep.subr.mxu0 0.0
        %1947 = vmatpush1.msra.mxu0 0.0
        %1948 = vmatprep.subr.mxu0 0.0
        %1949 = vmatpush1.msra.mxu0 0.0
        %1950 = vmatprep.subr.mxu0 0.0
        %1951 = vmatpush1.msra.mxu0 0.0
        %1952 = vmatprep.subr.mxu0 0.0
        %1953 = vmatpush1.msra.mxu0 0.0
        %1954 = vmatprep.subr.mxu0 0.0
        %1955 = vmatpush1.msra.mxu0 0.0
        %1956 = vmatprep.subr.mxu0 0.0
        %1957 = vmatpush1.msra.mxu0 0.0
        %1958 = vmatprep.subr.mxu0 0.0
        %1959 = vmatpush1.msra.mxu0 0.0
        %1960 = vmatprep.subr.mxu0 0.0
        %1961 = vmatpush1.msra.mxu0 0.0
        %1962 = vmatprep.subr.mxu0 0.0
        %1963 = vmatpush1.msra.mxu0 %v1554
        %1964 = vmatprep.subr.mxu0 0.0
        %1965 = vmatpush1.msra.mxu0 %v1553
        %1966 = vmatprep.subr.mxu0 0.0
        %1967 = vmatpush1.msra.mxu0 %v1552
        %1968 = vmatprep.subr.mxu0 0.0
        %1969 = vmatpush1.msra.mxu0 %v1551
        %1970 = vmatprep.subr.mxu0 0.0
        %1971 = vmatpush2.msra.mxu0 0.0
        %1972 = vmatprep.subr.mxu0 0.0
        %1973 = vmatpush2.msra.mxu0 0.0
        %1974 = vmatprep.subr.mxu0 0.0
        %1975 = vmatpush2.msra.mxu0 0.0
        %1976 = vmatprep.subr.mxu0 0.0
        %1977 = vmatpush2.msra.mxu0 0.0
        %1978 = vmatprep.subr.mxu0 0.0
        %1979 = vmatpush2.msra.mxu0 0.0
        %1980 = vmatprep.subr.mxu0 0.0
        %1981 = vmatpush2.msra.mxu0 0.0
        %1982 = vmatprep.subr.mxu0 0.0
        %1983 = vmatpush2.msra.mxu0 0.0
        %1984 = vmatprep.subr.mxu0 0.0
        %1985 = vmatpush2.msra.mxu0 0.0
        %1986 = vmatprep.subr.mxu0 0.0
        %1987 = vmatpush2.msra.mxu0 0.0
        %1988 = vmatprep.subr.mxu0 0.0
        %1989 = vmatpush2.msra.mxu0 0.0
        %1990 = vmatprep.subr.mxu0 0.0
        %1991 = vmatpush2.msra.mxu0 0.0
        %1992 = vmatprep.subr.mxu0 0.0
        %1993 = vmatpush2.msra.mxu0 0.0
        %1994 = vmatprep.subr.mxu0 0.0
        %1995 = vmatpush2.msra.mxu0 0.0
        %1996 = vmatprep.subr.mxu0 0.0
        %1997 = vmatpush2.msra.mxu0 0.0
        %1998 = vmatprep.subr.mxu0 0.0
        %1999 = vmatpush2.msra.mxu0 0.0
        %2000 = vmatprep.subr.mxu0 0.0
        %2001 = vmatpush2.msra.mxu0 0.0
        %2002 = vmatprep.mubr.f32.mxu0 0.0
        %2003 = vmatmul.mubr.f32.gmra.mxu0 %v926
        %v2004 = vpop.f32.mrf.mxu0
        %v2005 = vadd.f32 0.0, %v2004
        %v2006 = vpop.f32.mrf.mxu0
        %2007 = vmatprep.mubr.f32.mxu0 0.0
        %2008 = vmatmul.mubr.f32.gmra.mxu0 %v929
        %v2009 = vpop.f32.mrf.mxu0
        %v2010 = vadd.f32 0.0, %v2009
        %v2011 = vpop.f32.mrf.mxu0
        %2012 = vdwg.mxu0
        %2013 = vmatprep.subr.mxu0 0.0
        %2014 = vmatpush1.msra.mxu0 0.0
        %2015 = vmatprep.subr.mxu0 0.0
        %2016 = vmatpush1.msra.mxu0 0.0
        %2017 = vmatprep.subr.mxu0 0.0
        %2018 = vmatpush1.msra.mxu0 0.0
        %2019 = vmatprep.subr.mxu0 0.0
        %2020 = vmatpush1.msra.mxu0 0.0
        %2021 = vmatprep.subr.mxu0 0.0
        %2022 = vmatpush1.msra.mxu0 0.0
        %2023 = vmatprep.subr.mxu0 0.0
        %2024 = vmatpush1.msra.mxu0 0.0
        %2025 = vmatprep.subr.mxu0 0.0
        %2026 = vmatpush1.msra.mxu0 0.0
        %2027 = vmatprep.subr.mxu0 0.0
        %2028 = vmatpush1.msra.mxu0 0.0
        %2029 = vmatprep.subr.mxu0 0.0
        %2030 = vmatpush1.msra.mxu0 0.0
        %2031 = vmatprep.subr.mxu0 0.0
        %2032 = vmatpush1.msra.mxu0 0.0
        %2033 = vmatprep.subr.mxu0 0.0
        %2034 = vmatpush1.msra.mxu0 0.0
        %2035 = vmatprep.subr.mxu0 0.0
        %2036 = vmatpush1.msra.mxu0 0.0
        %2037 = vmatprep.subr.mxu0 0.0
        %2038 = vmatpush1.msra.mxu0 %v1558
        %2039 = vmatprep.subr.mxu0 0.0
        %2040 = vmatpush1.msra.mxu0 %v1557
        %2041 = vmatprep.subr.mxu0 0.0
        %2042 = vmatpush1.msra.mxu0 %v1556
        %2043 = vmatprep.subr.mxu0 0.0
        %2044 = vmatpush1.msra.mxu0 %v1555
        %2045 = vmatprep.subr.mxu0 0.0
        %2046 = vmatpush2.msra.mxu0 0.0
        %2047 = vmatprep.subr.mxu0 0.0
        %2048 = vmatpush2.msra.mxu0 0.0
        %2049 = vmatprep.subr.mxu0 0.0
        %2050 = vmatpush2.msra.mxu0 0.0
        %2051 = vmatprep.subr.mxu0 0.0
        %2052 = vmatpush2.msra.mxu0 0.0
        %2053 = vmatprep.subr.mxu0 0.0
        %2054 = vmatpush2.msra.mxu0 0.0
        %2055 = vmatprep.subr.mxu0 0.0
        %2056 = vmatpush2.msra.mxu0 0.0
        %2057 = vmatprep.subr.mxu0 0.0
        %2058 = vmatpush2.msra.mxu0 0.0
        %2059 = vmatprep.subr.mxu0 0.0
        %2060 = vmatpush2.msra.mxu0 0.0
        %2061 = vmatprep.subr.mxu0 0.0
        %2062 = vmatpush2.msra.mxu0 0.0
        %2063 = vmatprep.subr.mxu0 0.0
        %2064 = vmatpush2.msra.mxu0 0.0
        %2065 = vmatprep.subr.mxu0 0.0
        %2066 = vmatpush2.msra.mxu0 0.0
        %2067 = vmatprep.subr.mxu0 0.0
        %2068 = vmatpush2.msra.mxu0 0.0
        %2069 = vmatprep.subr.mxu0 0.0
        %2070 = vmatpush2.msra.mxu0 0.0
        %2071 = vmatprep.subr.mxu0 0.0
        %2072 = vmatpush2.msra.mxu0 0.0
        %2073 = vmatprep.subr.mxu0 0.0
        %2074 = vmatpush2.msra.mxu0 0.0
        %2075 = vmatprep.subr.mxu0 0.0
        %2076 = vmatpush2.msra.mxu0 0.0
        %2077 = vmatprep.mubr.f32.mxu0 0.0
        %2078 = vmatmul.mubr.f32.gmra.mxu0 %v926
        %v2079 = vpop.f32.mrf.mxu0
        %v2080 = vadd.f32 0.0, %v2079
        %v2081 = vpop.f32.mrf.mxu0
        %2082 = vmatprep.mubr.f32.mxu0 0.0
        %2083 = vmatmul.mubr.f32.gmra.mxu0 %v929
        %v2084 = vpop.f32.mrf.mxu0
        %v2085 = vadd.f32 0.0, %v2084
        %v2086 = vpop.f32.mrf.mxu0
        %2087 = vdwg.mxu0
        %2088 = vmatprep.subr.mxu0 0.0
        %2089 = vmatpush1.msra.mxu0 0.0
        %2090 = vmatprep.subr.mxu0 0.0
        %2091 = vmatpush1.msra.mxu0 0.0
        %2092 = vmatprep.subr.mxu0 0.0
        %2093 = vmatpush1.msra.mxu0 0.0
        %2094 = vmatprep.subr.mxu0 0.0
        %2095 = vmatpush1.msra.mxu0 0.0
        %2096 = vmatprep.subr.mxu0 0.0
        %2097 = vmatpush1.msra.mxu0 0.0
        %2098 = vmatprep.subr.mxu0 0.0
        %2099 = vmatpush1.msra.mxu0 0.0
        %2100 = vmatprep.subr.mxu0 0.0
        %2101 = vmatpush1.msra.mxu0 0.0
        %2102 = vmatprep.subr.mxu0 0.0
        %2103 = vmatpush1.msra.mxu0 0.0
        %2104 = vmatprep.subr.mxu0 0.0
        %2105 = vmatpush1.msra.mxu0 0.0
        %2106 = vmatprep.subr.mxu0 0.0
        %2107 = vmatpush1.msra.mxu0 0.0
        %2108 = vmatprep.subr.mxu0 0.0
        %2109 = vmatpush1.msra.mxu0 0.0
        %2110 = vmatprep.subr.mxu0 0.0
        %2111 = vmatpush1.msra.mxu0 0.0
        %2112 = vmatprep.subr.mxu0 0.0
        %2113 = vmatpush1.msra.mxu0 %v1562
        %2114 = vmatprep.subr.mxu0 0.0
        %2115 = vmatpush1.msra.mxu0 %v1561
        %2116 = vmatprep.subr.mxu0 0.0
        %2117 = vmatpush1.msra.mxu0 %v1560
        %2118 = vmatprep.subr.mxu0 0.0
        %2119 = vmatpush1.msra.mxu0 %v1559
        %2120 = vmatprep.subr.mxu0 0.0
        %2121 = vmatpush2.msra.mxu0 0.0
        %2122 = vmatprep.subr.mxu0 0.0
        %2123 = vmatpush2.msra.mxu0 0.0
        %2124 = vmatprep.subr.mxu0 0.0
        %2125 = vmatpush2.msra.mxu0 0.0
        %2126 = vmatprep.subr.mxu0 0.0
        %2127 = vmatpush2.msra.mxu0 0.0
        %2128 = vmatprep.subr.mxu0 0.0
        %2129 = vmatpush2.msra.mxu0 0.0
        %2130 = vmatprep.subr.mxu0 0.0
        %2131 = vmatpush2.msra.mxu0 0.0
        %2132 = vmatprep.subr.mxu0 0.0
        %2133 = vmatpush2.msra.mxu0 0.0
        %2134 = vmatprep.subr.mxu0 0.0
        %2135 = vmatpush2.msra.mxu0 0.0
        %2136 = vmatprep.subr.mxu0 0.0
        %2137 = vmatpush2.msra.mxu0 0.0
        %2138 = vmatprep.subr.mxu0 0.0
        %2139 = vmatpush2.msra.mxu0 0.0
        %2140 = vmatprep.subr.mxu0 0.0
        %2141 = vmatpush2.msra.mxu0 0.0
        %2142 = vmatprep.subr.mxu0 0.0
        %2143 = vmatpush2.msra.mxu0 0.0
        %2144 = vmatprep.subr.mxu0 0.0
        %2145 = vmatpush2.msra.mxu0 0.0
        %2146 = vmatprep.subr.mxu0 0.0
        %2147 = vmatpush2.msra.mxu0 0.0
        %2148 = vmatprep.subr.mxu0 0.0
        %2149 = vmatpush2.msra.mxu0 0.0
        %2150 = vmatprep.subr.mxu0 0.0
        %2151 = vmatpush2.msra.mxu0 0.0
        %2152 = vmatprep.mubr.f32.mxu0 0.0
        %2153 = vmatmul.mubr.f32.gmra.mxu0 %v926
        %v2154 = vpop.f32.mrf.mxu0
        %v2155 = vadd.f32 0.0, %v2154
        %v2156 = vpop.f32.mrf.mxu0
        %2157 = vmatprep.mubr.f32.mxu0 0.0
        %2158 = vmatmul.mubr.f32.gmra.mxu0 %v929
        %v2159 = vpop.f32.mrf.mxu0
        %v2160 = vadd.f32 0.0, %v2159
        %v2161 = vpop.f32.mrf.mxu0
        %2162 = vdwg.mxu0
        %v2163 = vmul.f32 %v400, 0.5
        %v2164 = vmul.f32 %v470, 0.5
        %v2165 = vmul.f32 %v540, 0.5
        %v2166 = vmul.f32 %v610, 0.5
        %v2167 = vmul.f32 %v680, 0.5
        %v2168 = vmul.f32 %v750, 0.5
        %v2169 = vmul.f32 %v820, 0.5
        %v2170 = vmul.f32 %v890, 0.5
        %vm2171 = vcmask 31744
        %v2173 = vsel %vm2171, %v2163, 0
        %v2176 = vsel %vm2171, %v998, 0
        %v2179 = vsel %vm2171, %v1003, 0
        %2181 = vmatprep.subr.mxu0 0.0
        %2182 = vmatpush1.xpose.msra.mxu0 0.0
        %2183 = vmatprep.subr.mxu0 0.0
        %2184 = vmatpush1.xpose.msra.mxu0 0.0
        %2185 = vmatprep.subr.mxu0 0.0
        %2186 = vmatpush1.xpose.msra.mxu0 0.0
        %2187 = vmatprep.subr.mxu0 0.0
        %2188 = vmatpush1.xpose.msra.mxu0 0.0
        %2189 = vmatprep.subr.mxu0 0.0
        %2190 = vmatpush1.xpose.msra.mxu0 0.0
        %2191 = vmatprep.subr.mxu0 0.0
        %2192 = vmatpush1.xpose.msra.mxu0 0.0
        %2193 = vmatprep.subr.mxu0 0.0
        %2194 = vmatpush1.xpose.msra.mxu0 0.0
        %2195 = vmatprep.subr.mxu0 0.0
        %2196 = vmatpush1.xpose.msra.mxu0 0.0
        %2197 = vmatprep.subr.mxu0 0.0
        %2198 = vmatpush1.xpose.msra.mxu0 0.0
        %2199 = vmatprep.subr.mxu0 0.0
        %2200 = vmatpush1.xpose.msra.mxu0 0.0
        %2201 = vmatprep.subr.mxu0 0.0
        %2202 = vmatpush1.xpose.msra.mxu0 0.0
        %2203 = vmatprep.subr.mxu0 0.0
        %2204 = vmatpush1.xpose.msra.mxu0 0.0
        %2205 = vmatprep.subr.mxu0 0.0
        %2206 = vmatpush1.xpose.msra.mxu0 0.0
        %2207 = vmatprep.subr.mxu0 0.0
        %2208 = vmatpush1.xpose.msra.mxu0 0.0
        %2209 = vmatprep.subr.mxu0 0.0
        %2210 = vmatpush1.xpose.msra.mxu0 %v2179
        %2211 = vmatprep.subr.mxu0 0.0
        %2212 = vmatpush1.xpose.msra.mxu0 %v2176
        %2213 = vmatprep.subr.mxu0 0.0
        %2214 = vmatpush2.xpose.msra.mxu0 0.0
        %2215 = vmatprep.subr.mxu0 0.0
        %2216 = vmatpush2.xpose.msra.mxu0 0.0
        %2217 = vmatprep.subr.mxu0 0.0
        %2218 = vmatpush2.xpose.msra.mxu0 0.0
        %2219 = vmatprep.subr.mxu0 0.0
        %2220 = vmatpush2.xpose.msra.mxu0 0.0
        %2221 = vmatprep.subr.mxu0 0.0
        %2222 = vmatpush2.xpose.msra.mxu0 0.0
        %2223 = vmatprep.subr.mxu0 0.0
        %2224 = vmatpush2.xpose.msra.mxu0 0.0
        %2225 = vmatprep.subr.mxu0 0.0
        %2226 = vmatpush2.xpose.msra.mxu0 0.0
        %2227 = vmatprep.subr.mxu0 0.0
        %2228 = vmatpush2.xpose.msra.mxu0 0.0
        %2229 = vmatprep.subr.mxu0 0.0
        %2230 = vmatpush2.xpose.msra.mxu0 0.0
        %2231 = vmatprep.subr.mxu0 0.0
        %2232 = vmatpush2.xpose.msra.mxu0 0.0
        %2233 = vmatprep.subr.mxu0 0.0
        %2234 = vmatpush2.xpose.msra.mxu0 0.0
        %2235 = vmatprep.subr.mxu0 0.0
        %2236 = vmatpush2.xpose.msra.mxu0 0.0
        %2237 = vmatprep.subr.mxu0 0.0
        %2238 = vmatpush2.xpose.msra.mxu0 0.0
        %2239 = vmatprep.subr.mxu0 0.0
        %2240 = vmatpush2.xpose.msra.mxu0 0.0
        %2241 = vmatprep.subr.mxu0 0.0
        %2242 = vmatpush2.xpose.msra.mxu0 0.0
        %2243 = vmatprep.subr.mxu0 0.0
        %2244 = vmatpush2.xpose.msra.mxu0 0.0
        %2245 = vmatprep.mubr.f32.mxu0 0.0
        %2246 = vmatmul.mubr.f32.gmra.mxu0 %v2173
        %v2247 = vpop.f32.mrf.mxu0
        %v2248 = vadd.f32 0.0, %v2247
        %v2249 = vpop.f32.mrf.mxu0
        %2250 = vdwg.mxu0
        %v2252 = vsel %vm2171, %v2164, 0
        %v2255 = vsel %vm2171, %v1073, 0
        %v2258 = vsel %vm2171, %v1078, 0
        %2260 = vmatprep.subr.mxu0 0.0
        %2261 = vmatpush1.xpose.msra.mxu0 0.0
        %2262 = vmatprep.subr.mxu0 0.0
        %2263 = vmatpush1.xpose.msra.mxu0 0.0
        %2264 = vmatprep.subr.mxu0 0.0
        %2265 = vmatpush1.xpose.msra.mxu0 0.0
        %2266 = vmatprep.subr.mxu0 0.0
        %2267 = vmatpush1.xpose.msra.mxu0 0.0
        %2268 = vmatprep.subr.mxu0 0.0
        %2269 = vmatpush1.xpose.msra.mxu0 0.0
        %2270 = vmatprep.subr.mxu0 0.0
        %2271 = vmatpush1.xpose.msra.mxu0 0.0
        %2272 = vmatprep.subr.mxu0 0.0
        %2273 = vmatpush1.xpose.msra.mxu0 0.0
        %2274 = vmatprep.subr.mxu0 0.0
        %2275 = vmatpush1.xpose.msra.mxu0 0.0
        %2276 = vmatprep.subr.mxu0 0.0
        %2277 = vmatpush1.xpose.msra.mxu0 0.0
        %2278 = vmatprep.subr.mxu0 0.0
        %2279 = vmatpush1.xpose.msra.mxu0 0.0
        %2280 = vmatprep.subr.mxu0 0.0
        %2281 = vmatpush1.xpose.msra.mxu0 0.0
        %2282 = vmatprep.subr.mxu0 0.0
        %2283 = vmatpush1.xpose.msra.mxu0 0.0
        %2284 = vmatprep.subr.mxu0 0.0
        %2285 = vmatpush1.xpose.msra.mxu0 0.0
        %2286 = vmatprep.subr.mxu0 0.0
        %2287 = vmatpush1.xpose.msra.mxu0 0.0
        %2288 = vmatprep.subr.mxu0 0.0
        %2289 = vmatpush1.xpose.msra.mxu0 %v2258
        %2290 = vmatprep.subr.mxu0 0.0
        %2291 = vmatpush1.xpose.msra.mxu0 %v2255
        %2292 = vmatprep.subr.mxu0 0.0
        %2293 = vmatpush2.xpose.msra.mxu0 0.0
        %2294 = vmatprep.subr.mxu0 0.0
        %2295 = vmatpush2.xpose.msra.mxu0 0.0
        %2296 = vmatprep.subr.mxu0 0.0
        %2297 = vmatpush2.xpose.msra.mxu0 0.0
        %2298 = vmatprep.subr.mxu0 0.0
        %2299 = vmatpush2.xpose.msra.mxu0 0.0
        %2300 = vmatprep.subr.mxu0 0.0
        %2301 = vmatpush2.xpose.msra.mxu0 0.0
        %2302 = vmatprep.subr.mxu0 0.0
        %2303 = vmatpush2.xpose.msra.mxu0 0.0
        %2304 = vmatprep.subr.mxu0 0.0
        %2305 = vmatpush2.xpose.msra.mxu0 0.0
        %2306 = vmatprep.subr.mxu0 0.0
        %2307 = vmatpush2.xpose.msra.mxu0 0.0
        %2308 = vmatprep.subr.mxu0 0.0
        %2309 = vmatpush2.xpose.msra.mxu0 0.0
        %2310 = vmatprep.subr.mxu0 0.0
        %2311 = vmatpush2.xpose.msra.mxu0 0.0
        %2312 = vmatprep.subr.mxu0 0.0
        %2313 = vmatpush2.xpose.msra.mxu0 0.0
        %2314 = vmatprep.subr.mxu0 0.0
        %2315 = vmatpush2.xpose.msra.mxu0 0.0
        %2316 = vmatprep.subr.mxu0 0.0
        %2317 = vmatpush2.xpose.msra.mxu0 0.0
        %2318 = vmatprep.subr.mxu0 0.0
        %2319 = vmatpush2.xpose.msra.mxu0 0.0
        %2320 = vmatprep.subr.mxu0 0.0
        %2321 = vmatpush2.xpose.msra.mxu0 0.0
        %2322 = vmatprep.subr.mxu0 0.0
        %2323 = vmatpush2.xpose.msra.mxu0 0.0
        %2324 = vmatprep.mubr.f32.mxu0 0.0
        %2325 = vmatmul.mubr.f32.gmra.mxu0 %v2252
        %v2326 = vpop.f32.mrf.mxu0
        %v2327 = vadd.f32 0.0, %v2326
        %v2328 = vpop.f32.mrf.mxu0
        %2329 = vdwg.mxu0
        %v2331 = vsel %vm2171, %v2165, 0
        %v2334 = vsel %vm2171, %v1148, 0
        %v2337 = vsel %vm2171, %v1153, 0
        %2339 = vmatprep.subr.mxu0 0.0
        %2340 = vmatpush1.xpose.msra.mxu0 0.0
        %2341 = vmatprep.subr.mxu0 0.0
        %2342 = vmatpush1.xpose.msra.mxu0 0.0
        %2343 = vmatprep.subr.mxu0 0.0
        %2344 = vmatpush1.xpose.msra.mxu0 0.0
        %2345 = vmatprep.subr.mxu0 0.0
        %2346 = vmatpush1.xpose.msra.mxu0 0.0
        %2347 = vmatprep.subr.mxu0 0.0
        %2348 = vmatpush1.xpose.msra.mxu0 0.0
        %2349 = vmatprep.subr.mxu0 0.0
        %2350 = vmatpush1.xpose.msra.mxu0 0.0
        %2351 = vmatprep.subr.mxu0 0.0
        %2352 = vmatpush1.xpose.msra.mxu0 0.0
        %2353 = vmatprep.subr.mxu0 0.0
        %2354 = vmatpush1.xpose.msra.mxu0 0.0
        %2355 = vmatprep.subr.mxu0 0.0
        %2356 = vmatpush1.xpose.msra.mxu0 0.0
        %2357 = vmatprep.subr.mxu0 0.0
        %2358 = vmatpush1.xpose.msra.mxu0 0.0
        %2359 = vmatprep.subr.mxu0 0.0
        %2360 = vmatpush1.xpose.msra.mxu0 0.0
        %2361 = vmatprep.subr.mxu0 0.0
        %2362 = vmatpush1.xpose.msra.mxu0 0.0
        %2363 = vmatprep.subr.mxu0 0.0
        %2364 = vmatpush1.xpose.msra.mxu0 0.0
        %2365 = vmatprep.subr.mxu0 0.0
        %2366 = vmatpush1.xpose.msra.mxu0 0.0
        %2367 = vmatprep.subr.mxu0 0.0
        %2368 = vmatpush1.xpose.msra.mxu0 %v2337
        %2369 = vmatprep.subr.mxu0 0.0
        %2370 = vmatpush1.xpose.msra.mxu0 %v2334
        %2371 = vmatprep.subr.mxu0 0.0
        %2372 = vmatpush2.xpose.msra.mxu0 0.0
        %2373 = vmatprep.subr.mxu0 0.0
        %2374 = vmatpush2.xpose.msra.mxu0 0.0
        %2375 = vmatprep.subr.mxu0 0.0
        %2376 = vmatpush2.xpose.msra.mxu0 0.0
        %2377 = vmatprep.subr.mxu0 0.0
        %2378 = vmatpush2.xpose.msra.mxu0 0.0
        %2379 = vmatprep.subr.mxu0 0.0
        %2380 = vmatpush2.xpose.msra.mxu0 0.0
        %2381 = vmatprep.subr.mxu0 0.0
        %2382 = vmatpush2.xpose.msra.mxu0 0.0
        %2383 = vmatprep.subr.mxu0 0.0
        %2384 = vmatpush2.xpose.msra.mxu0 0.0
        %2385 = vmatprep.subr.mxu0 0.0
        %2386 = vmatpush2.xpose.msra.mxu0 0.0
        %2387 = vmatprep.subr.mxu0 0.0
        %2388 = vmatpush2.xpose.msra.mxu0 0.0
        %2389 = vmatprep.subr.mxu0 0.0
        %2390 = vmatpush2.xpose.msra.mxu0 0.0
        %2391 = vmatprep.subr.mxu0 0.0
        %2392 = vmatpush2.xpose.msra.mxu0 0.0
        %2393 = vmatprep.subr.mxu0 0.0
        %2394 = vmatpush2.xpose.msra.mxu0 0.0
        %2395 = vmatprep.subr.mxu0 0.0
        %2396 = vmatpush2.xpose.msra.mxu0 0.0
        %2397 = vmatprep.subr.mxu0 0.0
        %2398 = vmatpush2.xpose.msra.mxu0 0.0
        %2399 = vmatprep.subr.mxu0 0.0
        %2400 = vmatpush2.xpose.msra.mxu0 0.0
        %2401 = vmatprep.subr.mxu0 0.0
        %2402 = vmatpush2.xpose.msra.mxu0 0.0
        %2403 = vmatprep.mubr.f32.mxu0 0.0
        %2404 = vmatmul.mubr.f32.gmra.mxu0 %v2331
        %v2405 = vpop.f32.mrf.mxu0
        %v2406 = vadd.f32 0.0, %v2405
        %v2407 = vpop.f32.mrf.mxu0
        %2408 = vdwg.mxu0
        %v2410 = vsel %vm2171, %v2166, 0
        %v2413 = vsel %vm2171, %v1223, 0
        %v2416 = vsel %vm2171, %v1228, 0
        %2418 = vmatprep.subr.mxu0 0.0
        %2419 = vmatpush1.xpose.msra.mxu0 0.0
        %2420 = vmatprep.subr.mxu0 0.0
        %2421 = vmatpush1.xpose.msra.mxu0 0.0
        %2422 = vmatprep.subr.mxu0 0.0
        %2423 = vmatpush1.xpose.msra.mxu0 0.0
        %2424 = vmatprep.subr.mxu0 0.0
        %2425 = vmatpush1.xpose.msra.mxu0 0.0
        %2426 = vmatprep.subr.mxu0 0.0
        %2427 = vmatpush1.xpose.msra.mxu0 0.0
        %2428 = vmatprep.subr.mxu0 0.0
        %2429 = vmatpush1.xpose.msra.mxu0 0.0
        %2430 = vmatprep.subr.mxu0 0.0
        %2431 = vmatpush1.xpose.msra.mxu0 0.0
        %2432 = vmatprep.subr.mxu0 0.0
        %2433 = vmatpush1.xpose.msra.mxu0 0.0
        %2434 = vmatprep.subr.mxu0 0.0
        %2435 = vmatpush1.xpose.msra.mxu0 0.0
        %2436 = vmatprep.subr.mxu0 0.0
        %2437 = vmatpush1.xpose.msra.mxu0 0.0
        %2438 = vmatprep.subr.mxu0 0.0
        %2439 = vmatpush1.xpose.msra.mxu0 0.0
        %2440 = vmatprep.subr.mxu0 0.0
        %2441 = vmatpush1.xpose.msra.mxu0 0.0
        %2442 = vmatprep.subr.mxu0 0.0
        %2443 = vmatpush1.xpose.msra.mxu0 0.0
        %2444 = vmatprep.subr.mxu0 0.0
        %2445 = vmatpush1.xpose.msra.mxu0 0.0
        %2446 = vmatprep.subr.mxu0 0.0
        %2447 = vmatpush1.xpose.msra.mxu0 %v2416
        %2448 = vmatprep.subr.mxu0 0.0
        %2449 = vmatpush1.xpose.msra.mxu0 %v2413
        %2450 = vmatprep.subr.mxu0 0.0
        %2451 = vmatpush2.xpose.msra.mxu0 0.0
        %2452 = vmatprep.subr.mxu0 0.0
        %2453 = vmatpush2.xpose.msra.mxu0 0.0
        %2454 = vmatprep.subr.mxu0 0.0
        %2455 = vmatpush2.xpose.msra.mxu0 0.0
        %2456 = vmatprep.subr.mxu0 0.0
        %2457 = vmatpush2.xpose.msra.mxu0 0.0
        %2458 = vmatprep.subr.mxu0 0.0
        %2459 = vmatpush2.xpose.msra.mxu0 0.0
        %2460 = vmatprep.subr.mxu0 0.0
        %2461 = vmatpush2.xpose.msra.mxu0 0.0
        %2462 = vmatprep.subr.mxu0 0.0
        %2463 = vmatpush2.xpose.msra.mxu0 0.0
        %2464 = vmatprep.subr.mxu0 0.0
        %2465 = vmatpush2.xpose.msra.mxu0 0.0
        %2466 = vmatprep.subr.mxu0 0.0
        %2467 = vmatpush2.xpose.msra.mxu0 0.0
        %2468 = vmatprep.subr.mxu0 0.0
        %2469 = vmatpush2.xpose.msra.mxu0 0.0
        %2470 = vmatprep.subr.mxu0 0.0
        %2471 = vmatpush2.xpose.msra.mxu0 0.0
        %2472 = vmatprep.subr.mxu0 0.0
        %2473 = vmatpush2.xpose.msra.mxu0 0.0
        %2474 = vmatprep.subr.mxu0 0.0
        %2475 = vmatpush2.xpose.msra.mxu0 0.0
        %2476 = vmatprep.subr.mxu0 0.0
        %2477 = vmatpush2.xpose.msra.mxu0 0.0
        %2478 = vmatprep.subr.mxu0 0.0
        %2479 = vmatpush2.xpose.msra.mxu0 0.0
        %2480 = vmatprep.subr.mxu0 0.0
        %2481 = vmatpush2.xpose.msra.mxu0 0.0
        %2482 = vmatprep.mubr.f32.mxu0 0.0
        %2483 = vmatmul.mubr.f32.gmra.mxu0 %v2410
        %v2484 = vpop.f32.mrf.mxu0
        %v2485 = vadd.f32 0.0, %v2484
        %v2486 = vpop.f32.mrf.mxu0
        %2487 = vdwg.mxu0
        %v2489 = vsel %vm2171, %v2167, 0
        %v2492 = vsel %vm2171, %v1298, 0
        %v2495 = vsel %vm2171, %v1303, 0
        %2497 = vmatprep.subr.mxu0 0.0
        %2498 = vmatpush1.xpose.msra.mxu0 0.0
        %2499 = vmatprep.subr.mxu0 0.0
        %2500 = vmatpush1.xpose.msra.mxu0 0.0
        %2501 = vmatprep.subr.mxu0 0.0
        %2502 = vmatpush1.xpose.msra.mxu0 0.0
        %2503 = vmatprep.subr.mxu0 0.0
        %2504 = vmatpush1.xpose.msra.mxu0 0.0
        %2505 = vmatprep.subr.mxu0 0.0
        %2506 = vmatpush1.xpose.msra.mxu0 0.0
        %2507 = vmatprep.subr.mxu0 0.0
        %2508 = vmatpush1.xpose.msra.mxu0 0.0
        %2509 = vmatprep.subr.mxu0 0.0
        %2510 = vmatpush1.xpose.msra.mxu0 0.0
        %2511 = vmatprep.subr.mxu0 0.0
        %2512 = vmatpush1.xpose.msra.mxu0 0.0
        %2513 = vmatprep.subr.mxu0 0.0
        %2514 = vmatpush1.xpose.msra.mxu0 0.0
        %2515 = vmatprep.subr.mxu0 0.0
        %2516 = vmatpush1.xpose.msra.mxu0 0.0
        %2517 = vmatprep.subr.mxu0 0.0
        %2518 = vmatpush1.xpose.msra.mxu0 0.0
        %2519 = vmatprep.subr.mxu0 0.0
        %2520 = vmatpush1.xpose.msra.mxu0 0.0
        %2521 = vmatprep.subr.mxu0 0.0
        %2522 = vmatpush1.xpose.msra.mxu0 0.0
        %2523 = vmatprep.subr.mxu0 0.0
        %2524 = vmatpush1.xpose.msra.mxu0 0.0
        %2525 = vmatprep.subr.mxu0 0.0
        %2526 = vmatpush1.xpose.msra.mxu0 %v2495
        %2527 = vmatprep.subr.mxu0 0.0
        %2528 = vmatpush1.xpose.msra.mxu0 %v2492
        %2529 = vmatprep.subr.mxu0 0.0
        %2530 = vmatpush2.xpose.msra.mxu0 0.0
        %2531 = vmatprep.subr.mxu0 0.0
        %2532 = vmatpush2.xpose.msra.mxu0 0.0
        %2533 = vmatprep.subr.mxu0 0.0
        %2534 = vmatpush2.xpose.msra.mxu0 0.0
        %2535 = vmatprep.subr.mxu0 0.0
        %2536 = vmatpush2.xpose.msra.mxu0 0.0
        %2537 = vmatprep.subr.mxu0 0.0
        %2538 = vmatpush2.xpose.msra.mxu0 0.0
        %2539 = vmatprep.subr.mxu0 0.0
        %2540 = vmatpush2.xpose.msra.mxu0 0.0
        %2541 = vmatprep.subr.mxu0 0.0
        %2542 = vmatpush2.xpose.msra.mxu0 0.0
        %2543 = vmatprep.subr.mxu0 0.0
        %2544 = vmatpush2.xpose.msra.mxu0 0.0
        %2545 = vmatprep.subr.mxu0 0.0
        %2546 = vmatpush2.xpose.msra.mxu0 0.0
        %2547 = vmatprep.subr.mxu0 0.0
        %2548 = vmatpush2.xpose.msra.mxu0 0.0
        %2549 = vmatprep.subr.mxu0 0.0
        %2550 = vmatpush2.xpose.msra.mxu0 0.0
        %2551 = vmatprep.subr.mxu0 0.0
        %2552 = vmatpush2.xpose.msra.mxu0 0.0
        %2553 = vmatprep.subr.mxu0 0.0
        %2554 = vmatpush2.xpose.msra.mxu0 0.0
        %2555 = vmatprep.subr.mxu0 0.0
        %2556 = vmatpush2.xpose.msra.mxu0 0.0
        %2557 = vmatprep.subr.mxu0 0.0
        %2558 = vmatpush2.xpose.msra.mxu0 0.0
        %2559 = vmatprep.subr.mxu0 0.0
        %2560 = vmatpush2.xpose.msra.mxu0 0.0
        %2561 = vmatprep.mubr.f32.mxu0 0.0
        %2562 = vmatmul.mubr.f32.gmra.mxu0 %v2489
        %v2563 = vpop.f32.mrf.mxu0
        %v2564 = vadd.f32 0.0, %v2563
        %v2565 = vpop.f32.mrf.mxu0
        %2566 = vdwg.mxu0
        %v2568 = vsel %vm2171, %v2168, 0
        %v2571 = vsel %vm2171, %v1373, 0
        %v2574 = vsel %vm2171, %v1378, 0
        %2576 = vmatprep.subr.mxu0 0.0
        %2577 = vmatpush1.xpose.msra.mxu0 0.0
        %2578 = vmatprep.subr.mxu0 0.0
        %2579 = vmatpush1.xpose.msra.mxu0 0.0
        %2580 = vmatprep.subr.mxu0 0.0
        %2581 = vmatpush1.xpose.msra.mxu0 0.0
        %2582 = vmatprep.subr.mxu0 0.0
        %2583 = vmatpush1.xpose.msra.mxu0 0.0
        %2584 = vmatprep.subr.mxu0 0.0
        %2585 = vmatpush1.xpose.msra.mxu0 0.0
        %2586 = vmatprep.subr.mxu0 0.0
        %2587 = vmatpush1.xpose.msra.mxu0 0.0
        %2588 = vmatprep.subr.mxu0 0.0
        %2589 = vmatpush1.xpose.msra.mxu0 0.0
        %2590 = vmatprep.subr.mxu0 0.0
        %2591 = vmatpush1.xpose.msra.mxu0 0.0
        %2592 = vmatprep.subr.mxu0 0.0
        %2593 = vmatpush1.xpose.msra.mxu0 0.0
        %2594 = vmatprep.subr.mxu0 0.0
        %2595 = vmatpush1.xpose.msra.mxu0 0.0
        %2596 = vmatprep.subr.mxu0 0.0
        %2597 = vmatpush1.xpose.msra.mxu0 0.0
        %2598 = vmatprep.subr.mxu0 0.0
        %2599 = vmatpush1.xpose.msra.mxu0 0.0
        %2600 = vmatprep.subr.mxu0 0.0
        %2601 = vmatpush1.xpose.msra.mxu0 0.0
        %2602 = vmatprep.subr.mxu0 0.0
        %2603 = vmatpush1.xpose.msra.mxu0 0.0
        %2604 = vmatprep.subr.mxu0 0.0
        %2605 = vmatpush1.xpose.msra.mxu0 %v2574
        %2606 = vmatprep.subr.mxu0 0.0
        %2607 = vmatpush1.xpose.msra.mxu0 %v2571
        %2608 = vmatprep.subr.mxu0 0.0
        %2609 = vmatpush2.xpose.msra.mxu0 0.0
        %2610 = vmatprep.subr.mxu0 0.0
        %2611 = vmatpush2.xpose.msra.mxu0 0.0
        %2612 = vmatprep.subr.mxu0 0.0
        %2613 = vmatpush2.xpose.msra.mxu0 0.0
        %2614 = vmatprep.subr.mxu0 0.0
        %2615 = vmatpush2.xpose.msra.mxu0 0.0
        %2616 = vmatprep.subr.mxu0 0.0
        %2617 = vmatpush2.xpose.msra.mxu0 0.0
        %2618 = vmatprep.subr.mxu0 0.0
        %2619 = vmatpush2.xpose.msra.mxu0 0.0
        %2620 = vmatprep.subr.mxu0 0.0
        %2621 = vmatpush2.xpose.msra.mxu0 0.0
        %2622 = vmatprep.subr.mxu0 0.0
        %2623 = vmatpush2.xpose.msra.mxu0 0.0
        %2624 = vmatprep.subr.mxu0 0.0
        %2625 = vmatpush2.xpose.msra.mxu0 0.0
        %2626 = vmatprep.subr.mxu0 0.0
        %2627 = vmatpush2.xpose.msra.mxu0 0.0
        %2628 = vmatprep.subr.mxu0 0.0
        %2629 = vmatpush2.xpose.msra.mxu0 0.0
        %2630 = vmatprep.subr.mxu0 0.0
        %2631 = vmatpush2.xpose.msra.mxu0 0.0
        %2632 = vmatprep.subr.mxu0 0.0
        %2633 = vmatpush2.xpose.msra.mxu0 0.0
        %2634 = vmatprep.subr.mxu0 0.0
        %2635 = vmatpush2.xpose.msra.mxu0 0.0
        %2636 = vmatprep.subr.mxu0 0.0
        %2637 = vmatpush2.xpose.msra.mxu0 0.0
        %2638 = vmatprep.subr.mxu0 0.0
        %2639 = vmatpush2.xpose.msra.mxu0 0.0
        %2640 = vmatprep.mubr.f32.mxu0 0.0
        %2641 = vmatmul.mubr.f32.gmra.mxu0 %v2568
        %v2642 = vpop.f32.mrf.mxu0
        %v2643 = vadd.f32 0.0, %v2642
        %v2644 = vpop.f32.mrf.mxu0
        %2645 = vdwg.mxu0
        %v2647 = vsel %vm2171, %v2169, 0
        %v2650 = vsel %vm2171, %v1448, 0
        %v2653 = vsel %vm2171, %v1453, 0
        %2655 = vmatprep.subr.mxu0 0.0
        %2656 = vmatpush1.xpose.msra.mxu0 0.0
        %2657 = vmatprep.subr.mxu0 0.0
        %2658 = vmatpush1.xpose.msra.mxu0 0.0
        %2659 = vmatprep.subr.mxu0 0.0
        %2660 = vmatpush1.xpose.msra.mxu0 0.0
        %2661 = vmatprep.subr.mxu0 0.0
        %2662 = vmatpush1.xpose.msra.mxu0 0.0
        %2663 = vmatprep.subr.mxu0 0.0
        %2664 = vmatpush1.xpose.msra.mxu0 0.0
        %2665 = vmatprep.subr.mxu0 0.0
        %2666 = vmatpush1.xpose.msra.mxu0 0.0
        %2667 = vmatprep.subr.mxu0 0.0
        %2668 = vmatpush1.xpose.msra.mxu0 0.0
        %2669 = vmatprep.subr.mxu0 0.0
        %2670 = vmatpush1.xpose.msra.mxu0 0.0
        %2671 = vmatprep.subr.mxu0 0.0
        %2672 = vmatpush1.xpose.msra.mxu0 0.0
        %2673 = vmatprep.subr.mxu0 0.0
        %2674 = vmatpush1.xpose.msra.mxu0 0.0
        %2675 = vmatprep.subr.mxu0 0.0
        %2676 = vmatpush1.xpose.msra.mxu0 0.0
        %2677 = vmatprep.subr.mxu0 0.0
        %2678 = vmatpush1.xpose.msra.mxu0 0.0
        %2679 = vmatprep.subr.mxu0 0.0
        %2680 = vmatpush1.xpose.msra.mxu0 0.0
        %2681 = vmatprep.subr.mxu0 0.0
        %2682 = vmatpush1.xpose.msra.mxu0 0.0
        %2683 = vmatprep.subr.mxu0 0.0
        %2684 = vmatpush1.xpose.msra.mxu0 %v2653
        %2685 = vmatprep.subr.mxu0 0.0
        %2686 = vmatpush1.xpose.msra.mxu0 %v2650
        %2687 = vmatprep.subr.mxu0 0.0
        %2688 = vmatpush2.xpose.msra.mxu0 0.0
        %2689 = vmatprep.subr.mxu0 0.0
        %2690 = vmatpush2.xpose.msra.mxu0 0.0
        %2691 = vmatprep.subr.mxu0 0.0
        %2692 = vmatpush2.xpose.msra.mxu0 0.0
        %2693 = vmatprep.subr.mxu0 0.0
        %2694 = vmatpush2.xpose.msra.mxu0 0.0
        %2695 = vmatprep.subr.mxu0 0.0
        %2696 = vmatpush2.xpose.msra.mxu0 0.0
        %2697 = vmatprep.subr.mxu0 0.0
        %2698 = vmatpush2.xpose.msra.mxu0 0.0
        %2699 = vmatprep.subr.mxu0 0.0
        %2700 = vmatpush2.xpose.msra.mxu0 0.0
        %2701 = vmatprep.subr.mxu0 0.0
        %2702 = vmatpush2.xpose.msra.mxu0 0.0
        %2703 = vmatprep.subr.mxu0 0.0
        %2704 = vmatpush2.xpose.msra.mxu0 0.0
        %2705 = vmatprep.subr.mxu0 0.0
        %2706 = vmatpush2.xpose.msra.mxu0 0.0
        %2707 = vmatprep.subr.mxu0 0.0
        %2708 = vmatpush2.xpose.msra.mxu0 0.0
        %2709 = vmatprep.subr.mxu0 0.0
        %2710 = vmatpush2.xpose.msra.mxu0 0.0
        %2711 = vmatprep.subr.mxu0 0.0
        %2712 = vmatpush2.xpose.msra.mxu0 0.0
        %2713 = vmatprep.subr.mxu0 0.0
        %2714 = vmatpush2.xpose.msra.mxu0 0.0
        %2715 = vmatprep.subr.mxu0 0.0
        %2716 = vmatpush2.xpose.msra.mxu0 0.0
        %2717 = vmatprep.subr.mxu0 0.0
        %2718 = vmatpush2.xpose.msra.mxu0 0.0
        %2719 = vmatprep.mubr.f32.mxu0 0.0
        %2720 = vmatmul.mubr.f32.gmra.mxu0 %v2647
        %v2721 = vpop.f32.mrf.mxu0
        %v2722 = vadd.f32 0.0, %v2721
        %v2723 = vpop.f32.mrf.mxu0
        %2724 = vdwg.mxu0
        %v2726 = vsel %vm2171, %v2170, 0
        %v2729 = vsel %vm2171, %v1523, 0
        %v2732 = vsel %vm2171, %v1528, 0
        %2734 = vmatprep.subr.mxu0 0.0
        %2735 = vmatpush1.xpose.msra.mxu0 0.0
        %2736 = vmatprep.subr.mxu0 0.0
        %2737 = vmatpush1.xpose.msra.mxu0 0.0
        %2738 = vmatprep.subr.mxu0 0.0
        %2739 = vmatpush1.xpose.msra.mxu0 0.0
        %2740 = vmatprep.subr.mxu0 0.0
        %2741 = vmatpush1.xpose.msra.mxu0 0.0
        %2742 = vmatprep.subr.mxu0 0.0
        %2743 = vmatpush1.xpose.msra.mxu0 0.0
        %2744 = vmatprep.subr.mxu0 0.0
        %2745 = vmatpush1.xpose.msra.mxu0 0.0
        %2746 = vmatprep.subr.mxu0 0.0
        %2747 = vmatpush1.xpose.msra.mxu0 0.0
        %2748 = vmatprep.subr.mxu0 0.0
        %2749 = vmatpush1.xpose.msra.mxu0 0.0
        %2750 = vmatprep.subr.mxu0 0.0
        %2751 = vmatpush1.xpose.msra.mxu0 0.0
        %2752 = vmatprep.subr.mxu0 0.0
        %2753 = vmatpush1.xpose.msra.mxu0 0.0
        %2754 = vmatprep.subr.mxu0 0.0
        %2755 = vmatpush1.xpose.msra.mxu0 0.0
        %2756 = vmatprep.subr.mxu0 0.0
        %2757 = vmatpush1.xpose.msra.mxu0 0.0
        %2758 = vmatprep.subr.mxu0 0.0
        %2759 = vmatpush1.xpose.msra.mxu0 0.0
        %2760 = vmatprep.subr.mxu0 0.0
        %2761 = vmatpush1.xpose.msra.mxu0 0.0
        %2762 = vmatprep.subr.mxu0 0.0
        %2763 = vmatpush1.xpose.msra.mxu0 %v2732
        %2764 = vmatprep.subr.mxu0 0.0
        %2765 = vmatpush1.xpose.msra.mxu0 %v2729
        %2766 = vmatprep.subr.mxu0 0.0
        %2767 = vmatpush2.xpose.msra.mxu0 0.0
        %2768 = vmatprep.subr.mxu0 0.0
        %2769 = vmatpush2.xpose.msra.mxu0 0.0
        %2770 = vmatprep.subr.mxu0 0.0
        %2771 = vmatpush2.xpose.msra.mxu0 0.0
        %2772 = vmatprep.subr.mxu0 0.0
        %2773 = vmatpush2.xpose.msra.mxu0 0.0
        %2774 = vmatprep.subr.mxu0 0.0
        %2775 = vmatpush2.xpose.msra.mxu0 0.0
        %2776 = vmatprep.subr.mxu0 0.0
        %2777 = vmatpush2.xpose.msra.mxu0 0.0
        %2778 = vmatprep.subr.mxu0 0.0
        %2779 = vmatpush2.xpose.msra.mxu0 0.0
        %2780 = vmatprep.subr.mxu0 0.0
        %2781 = vmatpush2.xpose.msra.mxu0 0.0
        %2782 = vmatprep.subr.mxu0 0.0
        %2783 = vmatpush2.xpose.msra.mxu0 0.0
        %2784 = vmatprep.subr.mxu0 0.0
        %2785 = vmatpush2.xpose.msra.mxu0 0.0
        %2786 = vmatprep.subr.mxu0 0.0
        %2787 = vmatpush2.xpose.msra.mxu0 0.0
        %2788 = vmatprep.subr.mxu0 0.0
        %2789 = vmatpush2.xpose.msra.mxu0 0.0
        %2790 = vmatprep.subr.mxu0 0.0
        %2791 = vmatpush2.xpose.msra.mxu0 0.0
        %2792 = vmatprep.subr.mxu0 0.0
        %2793 = vmatpush2.xpose.msra.mxu0 0.0
        %2794 = vmatprep.subr.mxu0 0.0
        %2795 = vmatpush2.xpose.msra.mxu0 0.0
        %2796 = vmatprep.subr.mxu0 0.0
        %2797 = vmatpush2.xpose.msra.mxu0 0.0
        %2798 = vmatprep.mubr.f32.mxu0 0.0
        %2799 = vmatmul.mubr.f32.gmra.mxu0 %v2726
        %v2800 = vpop.f32.mrf.mxu0
        %v2801 = vadd.f32 0.0, %v2800
        %v2802 = vpop.f32.mrf.mxu0
        %2803 = vdwg.mxu0
        %vm2804 = vcmask 130048
        %v2805 = vsel %vm2804, %v2248, -inf
        %2806 = vmax.xlane.f32.xlu0 %v2805
        %v2807 = vpop.xlane.xlu0 %2806
        %v2808 = vsel %vm2804, %v2327, -inf
        %2809 = vmax.xlane.f32.xlu0 %v2808
        %v2810 = vpop.xlane.xlu0 %2809
        %v2811 = vsel %vm2804, %v2406, -inf
        %2812 = vmax.xlane.f32.xlu0 %v2811
        %v2813 = vpop.xlane.xlu0 %2812
        %v2814 = vsel %vm2804, %v2485, -inf
        %2815 = vmax.xlane.f32.xlu0 %v2814
        %v2816 = vpop.xlane.xlu0 %2815
        %v2817 = vsel %vm2804, %v2564, -inf
        %2818 = vmax.xlane.f32.xlu0 %v2817
        %v2819 = vpop.xlane.xlu0 %2818
        %v2820 = vsel %vm2804, %v2643, -inf
        %2821 = vmax.xlane.f32.xlu0 %v2820
        %v2822 = vpop.xlane.xlu0 %2821
        %v2823 = vsel %vm2804, %v2722, -inf
        %2824 = vmax.xlane.f32.xlu0 %v2823
        %v2825 = vpop.xlane.xlu0 %2824
        %v2826 = vsel %vm2804, %v2801, -inf
        %2827 = vmax.xlane.f32.xlu0 %v2826
        %v2828 = vpop.xlane.xlu0 %2827
        %v2829 = vsub.f32 %v2248, %v2807
        %v2830 = vsub.f32 %v2327, %v2810
        %v2831 = vsub.f32 %v2406, %v2813
        %v2832 = vsub.f32 %v2485, %v2816
        %v2833 = vsub.f32 %v2564, %v2819
        %v2834 = vsub.f32 %v2643, %v2822
        %v2835 = vsub.f32 %v2722, %v2825
        %v2836 = vsub.f32 %v2801, %v2828
        %v2837 = vmul.f32 %v2829, 1.442695
        %v2838 = vpow.pop %v2837
        %v2839 = vmul.f32 %v2830, 1.442695
        %v2840 = vpow.pop %v2839
        %v2841 = vmul.f32 %v2831, 1.442695
        %v2842 = vpow.pop %v2841
        %v2843 = vmul.f32 %v2832, 1.442695
        %v2844 = vpow.pop %v2843
        %v2845 = vmul.f32 %v2833, 1.442695
        %v2846 = vpow.pop %v2845
        %v2847 = vmul.f32 %v2834, 1.442695
        %v2848 = vpow.pop %v2847
        %v2849 = vmul.f32 %v2835, 1.442695
        %v2850 = vpow.pop %v2849
        %v2851 = vmul.f32 %v2836, 1.442695
        %v2852 = vpow.pop %v2851
        %v2853 = vsel %vm2804, %v2838, 0.0
        %2854 = vadd.xlane.f32.xlu0 %v2853
        %v2855 = vpop.xlane.xlu0 %2854
        %v2856 = vsel %vm2804, %v2840, 0.0
        %2857 = vadd.xlane.f32.xlu0 %v2856
        %v2858 = vpop.xlane.xlu0 %2857
        %v2859 = vsel %vm2804, %v2842, 0.0
        %2860 = vadd.xlane.f32.xlu0 %v2859
        %v2861 = vpop.xlane.xlu0 %2860
        %v2862 = vsel %vm2804, %v2844, 0.0
        %2863 = vadd.xlane.f32.xlu0 %v2862
        %v2864 = vpop.xlane.xlu0 %2863
        %v2865 = vsel %vm2804, %v2846, 0.0
        %2866 = vadd.xlane.f32.xlu0 %v2865
        %v2867 = vpop.xlane.xlu0 %2866
        %v2868 = vsel %vm2804, %v2848, 0.0
        %2869 = vadd.xlane.f32.xlu0 %v2868
        %v2870 = vpop.xlane.xlu0 %2869
        %v2871 = vsel %vm2804, %v2850, 0.0
        %2872 = vadd.xlane.f32.xlu0 %v2871
        %v2873 = vpop.xlane.xlu0 %2872
        %v2874 = vsel %vm2804, %v2852, 0.0
        %2875 = vadd.xlane.f32.xlu0 %v2874
        %v2876 = vpop.xlane.xlu0 %2875
        %v2877 = vrcp.pop %v2855
        %v2878 = vrcp.pop %v2858
        %v2879 = vrcp.pop %v2861
        %v2880 = vrcp.pop %v2864
        %v2881 = vrcp.pop %v2867
        %v2882 = vrcp.pop %v2870
        %v2883 = vrcp.pop %v2873
        %v2884 = vrcp.pop %v2876
        %v2885 = vmul.f32 %v2838, %v2877
        %v2886 = vmul.f32 %v2840, %v2878
        %v2887 = vmul.f32 %v2842, %v2879
        %v2888 = vmul.f32 %v2844, %v2880
        %v2889 = vmul.f32 %v2846, %v2881
        %v2890 = vmul.f32 %v2848, %v2882
        %v2891 = vmul.f32 %v2850, %v2883
        %v2892 = vmul.f32 %v2852, %v2884
        %v2894 = vsel %vm2804, %v2885, 0
        %2896 = vmatprep.subr.mxu0 0.0
        %2897 = vmatpush1.msra.mxu0 0.0
        %2898 = vmatprep.subr.mxu0 0.0
        %2899 = vmatpush1.msra.mxu0 0.0
        %2900 = vmatprep.subr.mxu0 0.0
        %2901 = vmatpush1.msra.mxu0 0.0
        %2902 = vmatprep.subr.mxu0 0.0
        %2903 = vmatpush1.msra.mxu0 0.0
        %2904 = vmatprep.subr.mxu0 0.0
        %2905 = vmatpush1.msra.mxu0 0.0
        %2906 = vmatprep.subr.mxu0 0.0
        %2907 = vmatpush1.msra.mxu0 0.0
        %2908 = vmatprep.subr.mxu0 0.0
        %2909 = vmatpush1.msra.mxu0 0.0
        %2910 = vmatprep.subr.mxu0 0.0
        %2911 = vmatpush1.msra.mxu0 0.0
        %2912 = vmatprep.subr.mxu0 0.0
        %2913 = vmatpush1.msra.mxu0 0.0
        %2914 = vmatprep.subr.mxu0 0.0
        %2915 = vmatpush1.msra.mxu0 0.0
        %2916 = vmatprep.subr.mxu0 0.0
        %2917 = vmatpush1.msra.mxu0 0.0
        %2918 = vmatprep.subr.mxu0 0.0
        %2919 = vmatpush1.msra.mxu0 0.0
        %2920 = vmatprep.subr.mxu0 0.0
        %2921 = vmatpush1.msra.mxu0 0.0
        %2922 = vmatprep.subr.mxu0 0.0
        %2923 = vmatpush1.msra.mxu0 0.0
        %2924 = vmatprep.subr.mxu0 0.0
        %2925 = vmatpush1.msra.mxu0 %v1635
        %2926 = vmatprep.subr.mxu0 0.0
        %2927 = vmatpush1.msra.mxu0 %v1630
        %2928 = vmatprep.subr.mxu0 0.0
        %2929 = vmatpush2.msra.mxu0 0.0
        %2930 = vmatprep.subr.mxu0 0.0
        %2931 = vmatpush2.msra.mxu0 0.0
        %2932 = vmatprep.subr.mxu0 0.0
        %2933 = vmatpush2.msra.mxu0 0.0
        %2934 = vmatprep.subr.mxu0 0.0
        %2935 = vmatpush2.msra.mxu0 0.0
        %2936 = vmatprep.subr.mxu0 0.0
        %2937 = vmatpush2.msra.mxu0 0.0
        %2938 = vmatprep.subr.mxu0 0.0
        %2939 = vmatpush2.msra.mxu0 0.0
        %2940 = vmatprep.subr.mxu0 0.0
        %2941 = vmatpush2.msra.mxu0 0.0
        %2942 = vmatprep.subr.mxu0 0.0
        %2943 = vmatpush2.msra.mxu0 0.0
        %2944 = vmatprep.subr.mxu0 0.0
        %2945 = vmatpush2.msra.mxu0 0.0
        %2946 = vmatprep.subr.mxu0 0.0
        %2947 = vmatpush2.msra.mxu0 0.0
        %2948 = vmatprep.subr.mxu0 0.0
        %2949 = vmatpush2.msra.mxu0 0.0
        %2950 = vmatprep.subr.mxu0 0.0
        %2951 = vmatpush2.msra.mxu0 0.0
        %2952 = vmatprep.subr.mxu0 0.0
        %2953 = vmatpush2.msra.mxu0 0.0
        %2954 = vmatprep.subr.mxu0 0.0
        %2955 = vmatpush2.msra.mxu0 0.0
        %2956 = vmatprep.subr.mxu0 0.0
        %2957 = vmatpush2.msra.mxu0 0.0
        %2958 = vmatprep.subr.mxu0 0.0
        %2959 = vmatpush2.msra.mxu0 0.0
        %2960 = vmatprep.mubr.f32.mxu0 0.0
        %2961 = vmatmul.mubr.f32.gmra.mxu0 %v2894
        %v2962 = vpop.f32.mrf.mxu0
        %v2963 = vadd.f32 0.0, %v2962
        %v2964 = vpop.f32.mrf.mxu0
        %2965 = vdwg.mxu0
        %v2967 = vsel %vm2804, %v2886, 0
        %2969 = vmatprep.subr.mxu0 0.0
        %2970 = vmatpush1.msra.mxu0 0.0
        %2971 = vmatprep.subr.mxu0 0.0
        %2972 = vmatpush1.msra.mxu0 0.0
        %2973 = vmatprep.subr.mxu0 0.0
        %2974 = vmatpush1.msra.mxu0 0.0
        %2975 = vmatprep.subr.mxu0 0.0
        %2976 = vmatpush1.msra.mxu0 0.0
        %2977 = vmatprep.subr.mxu0 0.0
        %2978 = vmatpush1.msra.mxu0 0.0
        %2979 = vmatprep.subr.mxu0 0.0
        %2980 = vmatpush1.msra.mxu0 0.0
        %2981 = vmatprep.subr.mxu0 0.0
        %2982 = vmatpush1.msra.mxu0 0.0
        %2983 = vmatprep.subr.mxu0 0.0
        %2984 = vmatpush1.msra.mxu0 0.0
        %2985 = vmatprep.subr.mxu0 0.0
        %2986 = vmatpush1.msra.mxu0 0.0
        %2987 = vmatprep.subr.mxu0 0.0
        %2988 = vmatpush1.msra.mxu0 0.0
        %2989 = vmatprep.subr.mxu0 0.0
        %2990 = vmatpush1.msra.mxu0 0.0
        %2991 = vmatprep.subr.mxu0 0.0
        %2992 = vmatpush1.msra.mxu0 0.0
        %2993 = vmatprep.subr.mxu0 0.0
        %2994 = vmatpush1.msra.mxu0 0.0
        %2995 = vmatprep.subr.mxu0 0.0
        %2996 = vmatpush1.msra.mxu0 0.0
        %2997 = vmatprep.subr.mxu0 0.0
        %2998 = vmatpush1.msra.mxu0 %v1710
        %2999 = vmatprep.subr.mxu0 0.0
        %3000 = vmatpush1.msra.mxu0 %v1705
        %3001 = vmatprep.subr.mxu0 0.0
        %3002 = vmatpush2.msra.mxu0 0.0
        %3003 = vmatprep.subr.mxu0 0.0
        %3004 = vmatpush2.msra.mxu0 0.0
        %3005 = vmatprep.subr.mxu0 0.0
        %3006 = vmatpush2.msra.mxu0 0.0
        %3007 = vmatprep.subr.mxu0 0.0
        %3008 = vmatpush2.msra.mxu0 0.0
        %3009 = vmatprep.subr.mxu0 0.0
        %3010 = vmatpush2.msra.mxu0 0.0
        %3011 = vmatprep.subr.mxu0 0.0
        %3012 = vmatpush2.msra.mxu0 0.0
        %3013 = vmatprep.subr.mxu0 0.0
        %3014 = vmatpush2.msra.mxu0 0.0
        %3015 = vmatprep.subr.mxu0 0.0
        %3016 = vmatpush2.msra.mxu0 0.0
        %3017 = vmatprep.subr.mxu0 0.0
        %3018 = vmatpush2.msra.mxu0 0.0
        %3019 = vmatprep.subr.mxu0 0.0
        %3020 = vmatpush2.msra.mxu0 0.0
        %3021 = vmatprep.subr.mxu0 0.0
        %3022 = vmatpush2.msra.mxu0 0.0
        %3023 = vmatprep.subr.mxu0 0.0
        %3024 = vmatpush2.msra.mxu0 0.0
        %3025 = vmatprep.subr.mxu0 0.0
        %3026 = vmatpush2.msra.mxu0 0.0
        %3027 = vmatprep.subr.mxu0 0.0
        %3028 = vmatpush2.msra.mxu0 0.0
        %3029 = vmatprep.subr.mxu0 0.0
        %3030 = vmatpush2.msra.mxu0 0.0
        %3031 = vmatprep.subr.mxu0 0.0
        %3032 = vmatpush2.msra.mxu0 0.0
        %3033 = vmatprep.mubr.f32.mxu0 0.0
        %3034 = vmatmul.mubr.f32.gmra.mxu0 %v2967
        %v3035 = vpop.f32.mrf.mxu0
        %v3036 = vadd.f32 0.0, %v3035
        %v3037 = vpop.f32.mrf.mxu0
        %3038 = vdwg.mxu0
        %v3040 = vsel %vm2804, %v2887, 0
        %3042 = vmatprep.subr.mxu0 0.0
        %3043 = vmatpush1.msra.mxu0 0.0
        %3044 = vmatprep.subr.mxu0 0.0
        %3045 = vmatpush1.msra.mxu0 0.0
        %3046 = vmatprep.subr.mxu0 0.0
        %3047 = vmatpush1.msra.mxu0 0.0
        %3048 = vmatprep.subr.mxu0 0.0
        %3049 = vmatpush1.msra.mxu0 0.0
        %3050 = vmatprep.subr.mxu0 0.0
        %3051 = vmatpush1.msra.mxu0 0.0
        %3052 = vmatprep.subr.mxu0 0.0
        %3053 = vmatpush1.msra.mxu0 0.0
        %3054 = vmatprep.subr.mxu0 0.0
        %3055 = vmatpush1.msra.mxu0 0.0
        %3056 = vmatprep.subr.mxu0 0.0
        %3057 = vmatpush1.msra.mxu0 0.0
        %3058 = vmatprep.subr.mxu0 0.0
        %3059 = vmatpush1.msra.mxu0 0.0
        %3060 = vmatprep.subr.mxu0 0.0
        %3061 = vmatpush1.msra.mxu0 0.0
        %3062 = vmatprep.subr.mxu0 0.0
        %3063 = vmatpush1.msra.mxu0 0.0
        %3064 = vmatprep.subr.mxu0 0.0
        %3065 = vmatpush1.msra.mxu0 0.0
        %3066 = vmatprep.subr.mxu0 0.0
        %3067 = vmatpush1.msra.mxu0 0.0
        %3068 = vmatprep.subr.mxu0 0.0
        %3069 = vmatpush1.msra.mxu0 0.0
        %3070 = vmatprep.subr.mxu0 0.0
        %3071 = vmatpush1.msra.mxu0 %v1785
        %3072 = vmatprep.subr.mxu0 0.0
        %3073 = vmatpush1.msra.mxu0 %v1780
        %3074 = vmatprep.subr.mxu0 0.0
        %3075 = vmatpush2.msra.mxu0 0.0
        %3076 = vmatprep.subr.mxu0 0.0
        %3077 = vmatpush2.msra.mxu0 0.0
        %3078 = vmatprep.subr.mxu0 0.0
        %3079 = vmatpush2.msra.mxu0 0.0
        %3080 = vmatprep.subr.mxu0 0.0
        %3081 = vmatpush2.msra.mxu0 0.0
        %3082 = vmatprep.subr.mxu0 0.0
        %3083 = vmatpush2.msra.mxu0 0.0
        %3084 = vmatprep.subr.mxu0 0.0
        %3085 = vmatpush2.msra.mxu0 0.0
        %3086 = vmatprep.subr.mxu0 0.0
        %3087 = vmatpush2.msra.mxu0 0.0
        %3088 = vmatprep.subr.mxu0 0.0
        %3089 = vmatpush2.msra.mxu0 0.0
        %3090 = vmatprep.subr.mxu0 0.0
        %3091 = vmatpush2.msra.mxu0 0.0
        %3092 = vmatprep.subr.mxu0 0.0
        %3093 = vmatpush2.msra.mxu0 0.0
        %3094 = vmatprep.subr.mxu0 0.0
        %3095 = vmatpush2.msra.mxu0 0.0
        %3096 = vmatprep.subr.mxu0 0.0
        %3097 = vmatpush2.msra.mxu0 0.0
        %3098 = vmatprep.subr.mxu0 0.0
        %3099 = vmatpush2.msra.mxu0 0.0
        %3100 = vmatprep.subr.mxu0 0.0
        %3101 = vmatpush2.msra.mxu0 0.0
        %3102 = vmatprep.subr.mxu0 0.0
        %3103 = vmatpush2.msra.mxu0 0.0
        %3104 = vmatprep.subr.mxu0 0.0
        %3105 = vmatpush2.msra.mxu0 0.0
        %3106 = vmatprep.mubr.f32.mxu0 0.0
        %3107 = vmatmul.mubr.f32.gmra.mxu0 %v3040
        %v3108 = vpop.f32.mrf.mxu0
        %v3109 = vadd.f32 0.0, %v3108
        %v3110 = vpop.f32.mrf.mxu0
        %3111 = vdwg.mxu0
        %v3113 = vsel %vm2804, %v2888, 0
        %3115 = vmatprep.subr.mxu0 0.0
        %3116 = vmatpush1.msra.mxu0 0.0
        %3117 = vmatprep.subr.mxu0 0.0
        %3118 = vmatpush1.msra.mxu0 0.0
        %3119 = vmatprep.subr.mxu0 0.0
        %3120 = vmatpush1.msra.mxu0 0.0
        %3121 = vmatprep.subr.mxu0 0.0
        %3122 = vmatpush1.msra.mxu0 0.0
        %3123 = vmatprep.subr.mxu0 0.0
        %3124 = vmatpush1.msra.mxu0 0.0
        %3125 = vmatprep.subr.mxu0 0.0
        %3126 = vmatpush1.msra.mxu0 0.0
        %3127 = vmatprep.subr.mxu0 0.0
        %3128 = vmatpush1.msra.mxu0 0.0
        %3129 = vmatprep.subr.mxu0 0.0
        %3130 = vmatpush1.msra.mxu0 0.0
        %3131 = vmatprep.subr.mxu0 0.0
        %3132 = vmatpush1.msra.mxu0 0.0
        %3133 = vmatprep.subr.mxu0 0.0
        %3134 = vmatpush1.msra.mxu0 0.0
        %3135 = vmatprep.subr.mxu0 0.0
        %3136 = vmatpush1.msra.mxu0 0.0
        %3137 = vmatprep.subr.mxu0 0.0
        %3138 = vmatpush1.msra.mxu0 0.0
        %3139 = vmatprep.subr.mxu0 0.0
        %3140 = vmatpush1.msra.mxu0 0.0
        %3141 = vmatprep.subr.mxu0 0.0
        %3142 = vmatpush1.msra.mxu0 0.0
        %3143 = vmatprep.subr.mxu0 0.0
        %3144 = vmatpush1.msra.mxu0 %v1860
        %3145 = vmatprep.subr.mxu0 0.0
        %3146 = vmatpush1.msra.mxu0 %v1855
        %3147 = vmatprep.subr.mxu0 0.0
        %3148 = vmatpush2.msra.mxu0 0.0
        %3149 = vmatprep.subr.mxu0 0.0
        %3150 = vmatpush2.msra.mxu0 0.0
        %3151 = vmatprep.subr.mxu0 0.0
        %3152 = vmatpush2.msra.mxu0 0.0
        %3153 = vmatprep.subr.mxu0 0.0
        %3154 = vmatpush2.msra.mxu0 0.0
        %3155 = vmatprep.subr.mxu0 0.0
        %3156 = vmatpush2.msra.mxu0 0.0
        %3157 = vmatprep.subr.mxu0 0.0
        %3158 = vmatpush2.msra.mxu0 0.0
        %3159 = vmatprep.subr.mxu0 0.0
        %3160 = vmatpush2.msra.mxu0 0.0
        %3161 = vmatprep.subr.mxu0 0.0
        %3162 = vmatpush2.msra.mxu0 0.0
        %3163 = vmatprep.subr.mxu0 0.0
        %3164 = vmatpush2.msra.mxu0 0.0
        %3165 = vmatprep.subr.mxu0 0.0
        %3166 = vmatpush2.msra.mxu0 0.0
        %3167 = vmatprep.subr.mxu0 0.0
        %3168 = vmatpush2.msra.mxu0 0.0
        %3169 = vmatprep.subr.mxu0 0.0
        %3170 = vmatpush2.msra.mxu0 0.0
        %3171 = vmatprep.subr.mxu0 0.0
        %3172 = vmatpush2.msra.mxu0 0.0
        %3173 = vmatprep.subr.mxu0 0.0
        %3174 = vmatpush2.msra.mxu0 0.0
        %3175 = vmatprep.subr.mxu0 0.0
        %3176 = vmatpush2.msra.mxu0 0.0
        %3177 = vmatprep.subr.mxu0 0.0
        %3178 = vmatpush2.msra.mxu0 0.0
        %3179 = vmatprep.mubr.f32.mxu0 0.0
        %3180 = vmatmul.mubr.f32.gmra.mxu0 %v3113
        %v3181 = vpop.f32.mrf.mxu0
        %v3182 = vadd.f32 0.0, %v3181
        %v3183 = vpop.f32.mrf.mxu0
        %3184 = vdwg.mxu0
        %v3186 = vsel %vm2804, %v2889, 0
        %3188 = vmatprep.subr.mxu0 0.0
        %3189 = vmatpush1.msra.mxu0 0.0
        %3190 = vmatprep.subr.mxu0 0.0
        %3191 = vmatpush1.msra.mxu0 0.0
        %3192 = vmatprep.subr.mxu0 0.0
        %3193 = vmatpush1.msra.mxu0 0.0
        %3194 = vmatprep.subr.mxu0 0.0
        %3195 = vmatpush1.msra.mxu0 0.0
        %3196 = vmatprep.subr.mxu0 0.0
        %3197 = vmatpush1.msra.mxu0 0.0
        %3198 = vmatprep.subr.mxu0 0.0
        %3199 = vmatpush1.msra.mxu0 0.0
        %3200 = vmatprep.subr.mxu0 0.0
        %3201 = vmatpush1.msra.mxu0 0.0
        %3202 = vmatprep.subr.mxu0 0.0
        %3203 = vmatpush1.msra.mxu0 0.0
        %3204 = vmatprep.subr.mxu0 0.0
        %3205 = vmatpush1.msra.mxu0 0.0
        %3206 = vmatprep.subr.mxu0 0.0
        %3207 = vmatpush1.msra.mxu0 0.0
        %3208 = vmatprep.subr.mxu0 0.0
        %3209 = vmatpush1.msra.mxu0 0.0
        %3210 = vmatprep.subr.mxu0 0.0
        %3211 = vmatpush1.msra.mxu0 0.0
        %3212 = vmatprep.subr.mxu0 0.0
        %3213 = vmatpush1.msra.mxu0 0.0
        %3214 = vmatprep.subr.mxu0 0.0
        %3215 = vmatpush1.msra.mxu0 0.0
        %3216 = vmatprep.subr.mxu0 0.0
        %3217 = vmatpush1.msra.mxu0 %v1935
        %3218 = vmatprep.subr.mxu0 0.0
        %3219 = vmatpush1.msra.mxu0 %v1930
        %3220 = vmatprep.subr.mxu0 0.0
        %3221 = vmatpush2.msra.mxu0 0.0
        %3222 = vmatprep.subr.mxu0 0.0
        %3223 = vmatpush2.msra.mxu0 0.0
        %3224 = vmatprep.subr.mxu0 0.0
        %3225 = vmatpush2.msra.mxu0 0.0
        %3226 = vmatprep.subr.mxu0 0.0
        %3227 = vmatpush2.msra.mxu0 0.0
        %3228 = vmatprep.subr.mxu0 0.0
        %3229 = vmatpush2.msra.mxu0 0.0
        %3230 = vmatprep.subr.mxu0 0.0
        %3231 = vmatpush2.msra.mxu0 0.0
        %3232 = vmatprep.subr.mxu0 0.0
        %3233 = vmatpush2.msra.mxu0 0.0
        %3234 = vmatprep.subr.mxu0 0.0
        %3235 = vmatpush2.msra.mxu0 0.0
        %3236 = vmatprep.subr.mxu0 0.0
        %3237 = vmatpush2.msra.mxu0 0.0
        %3238 = vmatprep.subr.mxu0 0.0
        %3239 = vmatpush2.msra.mxu0 0.0
        %3240 = vmatprep.subr.mxu0 0.0
        %3241 = vmatpush2.msra.mxu0 0.0
        %3242 = vmatprep.subr.mxu0 0.0
        %3243 = vmatpush2.msra.mxu0 0.0
        %3244 = vmatprep.subr.mxu0 0.0
        %3245 = vmatpush2.msra.mxu0 0.0
        %3246 = vmatprep.subr.mxu0 0.0
        %3247 = vmatpush2.msra.mxu0 0.0
        %3248 = vmatprep.subr.mxu0 0.0
        %3249 = vmatpush2.msra.mxu0 0.0
        %3250 = vmatprep.subr.mxu0 0.0
        %3251 = vmatpush2.msra.mxu0 0.0
        %3252 = vmatprep.mubr.f32.mxu0 0.0
        %3253 = vmatmul.mubr.f32.gmra.mxu0 %v3186
        %v3254 = vpop.f32.mrf.mxu0
        %v3255 = vadd.f32 0.0, %v3254
        %v3256 = vpop.f32.mrf.mxu0
        %3257 = vdwg.mxu0
        %v3259 = vsel %vm2804, %v2890, 0
        %3261 = vmatprep.subr.mxu0 0.0
        %3262 = vmatpush1.msra.mxu0 0.0
        %3263 = vmatprep.subr.mxu0 0.0
        %3264 = vmatpush1.msra.mxu0 0.0
        %3265 = vmatprep.subr.mxu0 0.0
        %3266 = vmatpush1.msra.mxu0 0.0
        %3267 = vmatprep.subr.mxu0 0.0
        %3268 = vmatpush1.msra.mxu0 0.0
        %3269 = vmatprep.subr.mxu0 0.0
        %3270 = vmatpush1.msra.mxu0 0.0
        %3271 = vmatprep.subr.mxu0 0.0
        %3272 = vmatpush1.msra.mxu0 0.0
        %3273 = vmatprep.subr.mxu0 0.0
        %3274 = vmatpush1.msra.mxu0 0.0
        %3275 = vmatprep.subr.mxu0 0.0
        %3276 = vmatpush1.msra.mxu0 0.0
        %3277 = vmatprep.subr.mxu0 0.0
        %3278 = vmatpush1.msra.mxu0 0.0
        %3279 = vmatprep.subr.mxu0 0.0
        %3280 = vmatpush1.msra.mxu0 0.0
        %3281 = vmatprep.subr.mxu0 0.0
        %3282 = vmatpush1.msra.mxu0 0.0
        %3283 = vmatprep.subr.mxu0 0.0
        %3284 = vmatpush1.msra.mxu0 0.0
        %3285 = vmatprep.subr.mxu0 0.0
        %3286 = vmatpush1.msra.mxu0 0.0
        %3287 = vmatprep.subr.mxu0 0.0
        %3288 = vmatpush1.msra.mxu0 0.0
        %3289 = vmatprep.subr.mxu0 0.0
        %3290 = vmatpush1.msra.mxu0 %v2010
        %3291 = vmatprep.subr.mxu0 0.0
        %3292 = vmatpush1.msra.mxu0 %v2005
        %3293 = vmatprep.subr.mxu0 0.0
        %3294 = vmatpush2.msra.mxu0 0.0
        %3295 = vmatprep.subr.mxu0 0.0
        %3296 = vmatpush2.msra.mxu0 0.0
        %3297 = vmatprep.subr.mxu0 0.0
        %3298 = vmatpush2.msra.mxu0 0.0
        %3299 = vmatprep.subr.mxu0 0.0
        %3300 = vmatpush2.msra.mxu0 0.0
        %3301 = vmatprep.subr.mxu0 0.0
        %3302 = vmatpush2.msra.mxu0 0.0
        %3303 = vmatprep.subr.mxu0 0.0
        %3304 = vmatpush2.msra.mxu0 0.0
        %3305 = vmatprep.subr.mxu0 0.0
        %3306 = vmatpush2.msra.mxu0 0.0
        %3307 = vmatprep.subr.mxu0 0.0
        %3308 = vmatpush2.msra.mxu0 0.0
        %3309 = vmatprep.subr.mxu0 0.0
        %3310 = vmatpush2.msra.mxu0 0.0
        %3311 = vmatprep.subr.mxu0 0.0
        %3312 = vmatpush2.msra.mxu0 0.0
        %3313 = vmatprep.subr.mxu0 0.0
        %3314 = vmatpush2.msra.mxu0 0.0
        %3315 = vmatprep.subr.mxu0 0.0
        %3316 = vmatpush2.msra.mxu0 0.0
        %3317 = vmatprep.subr.mxu0 0.0
        %3318 = vmatpush2.msra.mxu0 0.0
        %3319 = vmatprep.subr.mxu0 0.0
        %3320 = vmatpush2.msra.mxu0 0.0
        %3321 = vmatprep.subr.mxu0 0.0
        %3322 = vmatpush2.msra.mxu0 0.0
        %3323 = vmatprep.subr.mxu0 0.0
        %3324 = vmatpush2.msra.mxu0 0.0
        %3325 = vmatprep.mubr.f32.mxu0 0.0
        %3326 = vmatmul.mubr.f32.gmra.mxu0 %v3259
        %v3327 = vpop.f32.mrf.mxu0
        %v3328 = vadd.f32 0.0, %v3327
        %v3329 = vpop.f32.mrf.mxu0
        %3330 = vdwg.mxu0
        %v3332 = vsel %vm2804, %v2891, 0
        %3334 = vmatprep.subr.mxu0 0.0
        %3335 = vmatpush1.msra.mxu0 0.0
        %3336 = vmatprep.subr.mxu0 0.0
        %3337 = vmatpush1.msra.mxu0 0.0
        %3338 = vmatprep.subr.mxu0 0.0
        %3339 = vmatpush1.msra.mxu0 0.0
        %3340 = vmatprep.subr.mxu0 0.0
        %3341 = vmatpush1.msra.mxu0 0.0
        %3342 = vmatprep.subr.mxu0 0.0
        %3343 = vmatpush1.msra.mxu0 0.0
        %3344 = vmatprep.subr.mxu0 0.0
        %3345 = vmatpush1.msra.mxu0 0.0
        %3346 = vmatprep.subr.mxu0 0.0
        %3347 = vmatpush1.msra.mxu0 0.0
        %3348 = vmatprep.subr.mxu0 0.0
        %3349 = vmatpush1.msra.mxu0 0.0
        %3350 = vmatprep.subr.mxu0 0.0
        %3351 = vmatpush1.msra.mxu0 0.0
        %3352 = vmatprep.subr.mxu0 0.0
        %3353 = vmatpush1.msra.mxu0 0.0
        %3354 = vmatprep.subr.mxu0 0.0
        %3355 = vmatpush1.msra.mxu0 0.0
        %3356 = vmatprep.subr.mxu0 0.0
        %3357 = vmatpush1.msra.mxu0 0.0
        %3358 = vmatprep.subr.mxu0 0.0
        %3359 = vmatpush1.msra.mxu0 0.0
        %3360 = vmatprep.subr.mxu0 0.0
        %3361 = vmatpush1.msra.mxu0 0.0
        %3362 = vmatprep.subr.mxu0 0.0
        %3363 = vmatpush1.msra.mxu0 %v2085
        %3364 = vmatprep.subr.mxu0 0.0
        %3365 = vmatpush1.msra.mxu0 %v2080
        %3366 = vmatprep.subr.mxu0 0.0
        %3367 = vmatpush2.msra.mxu0 0.0
        %3368 = vmatprep.subr.mxu0 0.0
        %3369 = vmatpush2.msra.mxu0 0.0
        %3370 = vmatprep.subr.mxu0 0.0
        %3371 = vmatpush2.msra.mxu0 0.0
        %3372 = vmatprep.subr.mxu0 0.0
        %3373 = vmatpush2.msra.mxu0 0.0
        %3374 = vmatprep.subr.mxu0 0.0
        %3375 = vmatpush2.msra.mxu0 0.0
        %3376 = vmatprep.subr.mxu0 0.0
        %3377 = vmatpush2.msra.mxu0 0.0
        %3378 = vmatprep.subr.mxu0 0.0
        %3379 = vmatpush2.msra.mxu0 0.0
        %3380 = vmatprep.subr.mxu0 0.0
        %3381 = vmatpush2.msra.mxu0 0.0
        %3382 = vmatprep.subr.mxu0 0.0
        %3383 = vmatpush2.msra.mxu0 0.0
        %3384 = vmatprep.subr.mxu0 0.0
        %3385 = vmatpush2.msra.mxu0 0.0
        %3386 = vmatprep.subr.mxu0 0.0
        %3387 = vmatpush2.msra.mxu0 0.0
        %3388 = vmatprep.subr.mxu0 0.0
        %3389 = vmatpush2.msra.mxu0 0.0
        %3390 = vmatprep.subr.mxu0 0.0
        %3391 = vmatpush2.msra.mxu0 0.0
        %3392 = vmatprep.subr.mxu0 0.0
        %3393 = vmatpush2.msra.mxu0 0.0
        %3394 = vmatprep.subr.mxu0 0.0
        %3395 = vmatpush2.msra.mxu0 0.0
        %3396 = vmatprep.subr.mxu0 0.0
        %3397 = vmatpush2.msra.mxu0 0.0
        %3398 = vmatprep.mubr.f32.mxu0 0.0
        %3399 = vmatmul.mubr.f32.gmra.mxu0 %v3332
        %v3400 = vpop.f32.mrf.mxu0
        %v3401 = vadd.f32 0.0, %v3400
        %v3402 = vpop.f32.mrf.mxu0
        %3403 = vdwg.mxu0
        %v3405 = vsel %vm2804, %v2892, 0
        %3407 = vmatprep.subr.mxu0 0.0
        %3408 = vmatpush1.msra.mxu0 0.0
        %3409 = vmatprep.subr.mxu0 0.0
        %3410 = vmatpush1.msra.mxu0 0.0
        %3411 = vmatprep.subr.mxu0 0.0
        %3412 = vmatpush1.msra.mxu0 0.0
        %3413 = vmatprep.subr.mxu0 0.0
        %3414 = vmatpush1.msra.mxu0 0.0
        %3415 = vmatprep.subr.mxu0 0.0
        %3416 = vmatpush1.msra.mxu0 0.0
        %3417 = vmatprep.subr.mxu0 0.0
        %3418 = vmatpush1.msra.mxu0 0.0
        %3419 = vmatprep.subr.mxu0 0.0
        %3420 = vmatpush1.msra.mxu0 0.0
        %3421 = vmatprep.subr.mxu0 0.0
        %3422 = vmatpush1.msra.mxu0 0.0
        %3423 = vmatprep.subr.mxu0 0.0
        %3424 = vmatpush1.msra.mxu0 0.0
        %3425 = vmatprep.subr.mxu0 0.0
        %3426 = vmatpush1.msra.mxu0 0.0
        %3427 = vmatprep.subr.mxu0 0.0
        %3428 = vmatpush1.msra.mxu0 0.0
        %3429 = vmatprep.subr.mxu0 0.0
        %3430 = vmatpush1.msra.mxu0 0.0
        %3431 = vmatprep.subr.mxu0 0.0
        %3432 = vmatpush1.msra.mxu0 0.0
        %3433 = vmatprep.subr.mxu0 0.0
        %3434 = vmatpush1.msra.mxu0 0.0
        %3435 = vmatprep.subr.mxu0 0.0
        %3436 = vmatpush1.msra.mxu0 %v2160
        %3437 = vmatprep.subr.mxu0 0.0
        %3438 = vmatpush1.msra.mxu0 %v2155
        %3439 = vmatprep.subr.mxu0 0.0
        %3440 = vmatpush2.msra.mxu0 0.0
        %3441 = vmatprep.subr.mxu0 0.0
        %3442 = vmatpush2.msra.mxu0 0.0
        %3443 = vmatprep.subr.mxu0 0.0
        %3444 = vmatpush2.msra.mxu0 0.0
        %3445 = vmatprep.subr.mxu0 0.0
        %3446 = vmatpush2.msra.mxu0 0.0
        %3447 = vmatprep.subr.mxu0 0.0
        %3448 = vmatpush2.msra.mxu0 0.0
        %3449 = vmatprep.subr.mxu0 0.0
        %3450 = vmatpush2.msra.mxu0 0.0
        %3451 = vmatprep.subr.mxu0 0.0
        %3452 = vmatpush2.msra.mxu0 0.0
        %3453 = vmatprep.subr.mxu0 0.0
        %3454 = vmatpush2.msra.mxu0 0.0
        %3455 = vmatprep.subr.mxu0 0.0
        %3456 = vmatpush2.msra.mxu0 0.0
        %3457 = vmatprep.subr.mxu0 0.0
        %3458 = vmatpush2.msra.mxu0 0.0
        %3459 = vmatprep.subr.mxu0 0.0
        %3460 = vmatpush2.msra.mxu0 0.0
        %3461 = vmatprep.subr.mxu0 0.0
        %3462 = vmatpush2.msra.mxu0 0.0
        %3463 = vmatprep.subr.mxu0 0.0
        %3464 = vmatpush2.msra.mxu0 0.0
        %3465 = vmatprep.subr.mxu0 0.0
        %3466 = vmatpush2.msra.mxu0 0.0
        %3467 = vmatprep.subr.mxu0 0.0
        %3468 = vmatpush2.msra.mxu0 0.0
        %3469 = vmatprep.subr.mxu0 0.0
        %3470 = vmatpush2.msra.mxu0 0.0
        %3471 = vmatprep.mubr.f32.mxu0 0.0
        %3472 = vmatmul.mubr.f32.gmra.mxu0 %v3405
        %v3473 = vpop.f32.mrf.mxu0
        %v3474 = vadd.f32 0.0, %v3473
        %v3475 = vpop.f32.mrf.mxu0
        %3476 = vdwg.mxu0
        %v3477 = vld [vmem:[%s5] sm:$0xf]
        %v3478 = vld [vmem:[%s5 + $0x4] sm:$0xf]
        %v3479 = vld [vmem:[%s5 + $0x8] sm:$0xf]
        %v3480 = vld [vmem:[%s5 + $0xc] sm:$0xf]
        %v3481 = vld [vmem:[%s5 + $0x10] sm:$0xf]
        %v3482 = vld [vmem:[%s5 + $0x14] sm:$0xf]
        %v3483 = vld [vmem:[%s5 + $0x18] sm:$0xf]
        %v3484 = vld [vmem:[%s5 + $0x1c] sm:$0xf]
        %v3486 = vsel %vm2171, %v2963, 0
        %vm3488 = vcmask 1043456
        %v3490 = vsel %vm3488, %v3477, 0
        %3492 = vmatprep.subr.mxu0 0.0
        %3493 = vmatpush1.msra.mxu0 0.0
        %3494 = vmatprep.subr.mxu0 0.0
        %3495 = vmatpush1.msra.mxu0 0.0
        %3496 = vmatprep.subr.mxu0 0.0
        %3497 = vmatpush1.msra.mxu0 0.0
        %3498 = vmatprep.subr.mxu0 0.0
        %3499 = vmatpush1.msra.mxu0 0.0
        %3500 = vmatprep.subr.mxu0 0.0
        %3501 = vmatpush1.msra.mxu0 0.0
        %3502 = vmatprep.subr.mxu0 0.0
        %3503 = vmatpush1.msra.mxu0 0.0
        %3504 = vmatprep.subr.mxu0 0.0
        %3505 = vmatpush1.msra.mxu0 0.0
        %3506 = vmatprep.subr.mxu0 0.0
        %3507 = vmatpush1.msra.mxu0 0.0
        %3508 = vmatprep.subr.mxu0 0.0
        %3509 = vmatpush1.msra.mxu0 0.0
        %3510 = vmatprep.subr.mxu0 0.0
        %3511 = vmatpush1.msra.mxu0 0.0
        %3512 = vmatprep.subr.mxu0 0.0
        %3513 = vmatpush1.msra.mxu0 0.0
        %3514 = vmatprep.subr.mxu0 0.0
        %3515 = vmatpush1.msra.mxu0 0.0
        %3516 = vmatprep.subr.mxu0 0.0
        %3517 = vmatpush1.msra.mxu0 0.0
        %3518 = vmatprep.subr.mxu0 0.0
        %3519 = vmatpush1.msra.mxu0 0.0
        %3520 = vmatprep.subr.mxu0 0.0
        %3521 = vmatpush1.msra.mxu0 0.0
        %3522 = vmatprep.subr.mxu0 0.0
        %3523 = vmatpush1.msra.mxu0 %v3490
        %3524 = vmatprep.subr.mxu0 0.0
        %3525 = vmatpush2.msra.mxu0 0.0
        %3526 = vmatprep.subr.mxu0 0.0
        %3527 = vmatpush2.msra.mxu0 0.0
        %3528 = vmatprep.subr.mxu0 0.0
        %3529 = vmatpush2.msra.mxu0 0.0
        %3530 = vmatprep.subr.mxu0 0.0
        %3531 = vmatpush2.msra.mxu0 0.0
        %3532 = vmatprep.subr.mxu0 0.0
        %3533 = vmatpush2.msra.mxu0 0.0
        %3534 = vmatprep.subr.mxu0 0.0
        %3535 = vmatpush2.msra.mxu0 0.0
        %3536 = vmatprep.subr.mxu0 0.0
        %3537 = vmatpush2.msra.mxu0 0.0
        %3538 = vmatprep.subr.mxu0 0.0
        %3539 = vmatpush2.msra.mxu0 0.0
        %3540 = vmatprep.subr.mxu0 0.0
        %3541 = vmatpush2.msra.mxu0 0.0
        %3542 = vmatprep.subr.mxu0 0.0
        %3543 = vmatpush2.msra.mxu0 0.0
        %3544 = vmatprep.subr.mxu0 0.0
        %3545 = vmatpush2.msra.mxu0 0.0
        %3546 = vmatprep.subr.mxu0 0.0
        %3547 = vmatpush2.msra.mxu0 0.0
        %3548 = vmatprep.subr.mxu0 0.0
        %3549 = vmatpush2.msra.mxu0 0.0
        %3550 = vmatprep.subr.mxu0 0.0
        %3551 = vmatpush2.msra.mxu0 0.0
        %3552 = vmatprep.subr.mxu0 0.0
        %3553 = vmatpush2.msra.mxu0 0.0
        %3554 = vmatprep.subr.mxu0 0.0
        %3555 = vmatpush2.msra.mxu0 0.0
        %3556 = vmatprep.mubr.f32.mxu0 0.0
        %3557 = vmatmul.mubr.f32.gmra.mxu0 %v3486
        %v3558 = vpop.f32.mrf.mxu0
        %v3559 = vadd.f32 0.0, %v3558
        %v3560 = vpop.f32.mrf.mxu0
        %3561 = vdwg.mxu0
        %v3563 = vsel %vm2171, %v3036, 0
        %v3566 = vsel %vm3488, %v3478, 0
        %3568 = vmatprep.subr.mxu0 0.0
        %3569 = vmatpush1.msra.mxu0 0.0
        %3570 = vmatprep.subr.mxu0 0.0
        %3571 = vmatpush1.msra.mxu0 0.0
        %3572 = vmatprep.subr.mxu0 0.0
        %3573 = vmatpush1.msra.mxu0 0.0
        %3574 = vmatprep.subr.mxu0 0.0
        %3575 = vmatpush1.msra.mxu0 0.0
        %3576 = vmatprep.subr.mxu0 0.0
        %3577 = vmatpush1.msra.mxu0 0.0
        %3578 = vmatprep.subr.mxu0 0.0
        %3579 = vmatpush1.msra.mxu0 0.0
        %3580 = vmatprep.subr.mxu0 0.0
        %3581 = vmatpush1.msra.mxu0 0.0
        %3582 = vmatprep.subr.mxu0 0.0
        %3583 = vmatpush1.msra.mxu0 0.0
        %3584 = vmatprep.subr.mxu0 0.0
        %3585 = vmatpush1.msra.mxu0 0.0
        %3586 = vmatprep.subr.mxu0 0.0
        %3587 = vmatpush1.msra.mxu0 0.0
        %3588 = vmatprep.subr.mxu0 0.0
        %3589 = vmatpush1.msra.mxu0 0.0
        %3590 = vmatprep.subr.mxu0 0.0
        %3591 = vmatpush1.msra.mxu0 0.0
        %3592 = vmatprep.subr.mxu0 0.0
        %3593 = vmatpush1.msra.mxu0 0.0
        %3594 = vmatprep.subr.mxu0 0.0
        %3595 = vmatpush1.msra.mxu0 0.0
        %3596 = vmatprep.subr.mxu0 0.0
        %3597 = vmatpush1.msra.mxu0 0.0
        %3598 = vmatprep.subr.mxu0 0.0
        %3599 = vmatpush1.msra.mxu0 %v3566
        %3600 = vmatprep.subr.mxu0 0.0
        %3601 = vmatpush2.msra.mxu0 0.0
        %3602 = vmatprep.subr.mxu0 0.0
        %3603 = vmatpush2.msra.mxu0 0.0
        %3604 = vmatprep.subr.mxu0 0.0
        %3605 = vmatpush2.msra.mxu0 0.0
        %3606 = vmatprep.subr.mxu0 0.0
        %3607 = vmatpush2.msra.mxu0 0.0
        %3608 = vmatprep.subr.mxu0 0.0
        %3609 = vmatpush2.msra.mxu0 0.0
        %3610 = vmatprep.subr.mxu0 0.0
        %3611 = vmatpush2.msra.mxu0 0.0
        %3612 = vmatprep.subr.mxu0 0.0
        %3613 = vmatpush2.msra.mxu0 0.0
        %3614 = vmatprep.subr.mxu0 0.0
        %3615 = vmatpush2.msra.mxu0 0.0
        %3616 = vmatprep.subr.mxu0 0.0
        %3617 = vmatpush2.msra.mxu0 0.0
        %3618 = vmatprep.subr.mxu0 0.0
        %3619 = vmatpush2.msra.mxu0 0.0
        %3620 = vmatprep.subr.mxu0 0.0
        %3621 = vmatpush2.msra.mxu0 0.0
        %3622 = vmatprep.subr.mxu0 0.0
        %3623 = vmatpush2.msra.mxu0 0.0
        %3624 = vmatprep.subr.mxu0 0.0
        %3625 = vmatpush2.msra.mxu0 0.0
        %3626 = vmatprep.subr.mxu0 0.0
        %3627 = vmatpush2.msra.mxu0 0.0
        %3628 = vmatprep.subr.mxu0 0.0
        %3629 = vmatpush2.msra.mxu0 0.0
        %3630 = vmatprep.subr.mxu0 0.0
        %3631 = vmatpush2.msra.mxu0 0.0
        %3632 = vmatprep.mubr.f32.mxu0 0.0
        %3633 = vmatmul.mubr.f32.gmra.mxu0 %v3563
        %v3634 = vpop.f32.mrf.mxu0
        %v3635 = vadd.f32 0.0, %v3634
        %v3636 = vpop.f32.mrf.mxu0
        %3637 = vdwg.mxu0
        %v3639 = vsel %vm2171, %v3109, 0
        %v3642 = vsel %vm3488, %v3479, 0
        %3644 = vmatprep.subr.mxu0 0.0
        %3645 = vmatpush1.msra.mxu0 0.0
        %3646 = vmatprep.subr.mxu0 0.0
        %3647 = vmatpush1.msra.mxu0 0.0
        %3648 = vmatprep.subr.mxu0 0.0
        %3649 = vmatpush1.msra.mxu0 0.0
        %3650 = vmatprep.subr.mxu0 0.0
        %3651 = vmatpush1.msra.mxu0 0.0
        %3652 = vmatprep.subr.mxu0 0.0
        %3653 = vmatpush1.msra.mxu0 0.0
        %3654 = vmatprep.subr.mxu0 0.0
        %3655 = vmatpush1.msra.mxu0 0.0
        %3656 = vmatprep.subr.mxu0 0.0
        %3657 = vmatpush1.msra.mxu0 0.0
        %3658 = vmatprep.subr.mxu0 0.0
        %3659 = vmatpush1.msra.mxu0 0.0
        %3660 = vmatprep.subr.mxu0 0.0
        %3661 = vmatpush1.msra.mxu0 0.0
        %3662 = vmatprep.subr.mxu0 0.0
        %3663 = vmatpush1.msra.mxu0 0.0
        %3664 = vmatprep.subr.mxu0 0.0
        %3665 = vmatpush1.msra.mxu0 0.0
        %3666 = vmatprep.subr.mxu0 0.0
        %3667 = vmatpush1.msra.mxu0 0.0
        %3668 = vmatprep.subr.mxu0 0.0
        %3669 = vmatpush1.msra.mxu0 0.0
        %3670 = vmatprep.subr.mxu0 0.0
        %3671 = vmatpush1.msra.mxu0 0.0
        %3672 = vmatprep.subr.mxu0 0.0
        %3673 = vmatpush1.msra.mxu0 0.0
        %3674 = vmatprep.subr.mxu0 0.0
        %3675 = vmatpush1.msra.mxu0 %v3642
        %3676 = vmatprep.subr.mxu0 0.0
        %3677 = vmatpush2.msra.mxu0 0.0
        %3678 = vmatprep.subr.mxu0 0.0
        %3679 = vmatpush2.msra.mxu0 0.0
        %3680 = vmatprep.subr.mxu0 0.0
        %3681 = vmatpush2.msra.mxu0 0.0
        %3682 = vmatprep.subr.mxu0 0.0
        %3683 = vmatpush2.msra.mxu0 0.0
        %3684 = vmatprep.subr.mxu0 0.0
        %3685 = vmatpush2.msra.mxu0 0.0
        %3686 = vmatprep.subr.mxu0 0.0
        %3687 = vmatpush2.msra.mxu0 0.0
        %3688 = vmatprep.subr.mxu0 0.0
        %3689 = vmatpush2.msra.mxu0 0.0
        %3690 = vmatprep.subr.mxu0 0.0
        %3691 = vmatpush2.msra.mxu0 0.0
        %3692 = vmatprep.subr.mxu0 0.0
        %3693 = vmatpush2.msra.mxu0 0.0
        %3694 = vmatprep.subr.mxu0 0.0
        %3695 = vmatpush2.msra.mxu0 0.0
        %3696 = vmatprep.subr.mxu0 0.0
        %3697 = vmatpush2.msra.mxu0 0.0
        %3698 = vmatprep.subr.mxu0 0.0
        %3699 = vmatpush2.msra.mxu0 0.0
        %3700 = vmatprep.subr.mxu0 0.0
        %3701 = vmatpush2.msra.mxu0 0.0
        %3702 = vmatprep.subr.mxu0 0.0
        %3703 = vmatpush2.msra.mxu0 0.0
        %3704 = vmatprep.subr.mxu0 0.0
        %3705 = vmatpush2.msra.mxu0 0.0
        %3706 = vmatprep.subr.mxu0 0.0
        %3707 = vmatpush2.msra.mxu0 0.0
        %3708 = vmatprep.mubr.f32.mxu0 0.0
        %3709 = vmatmul.mubr.f32.gmra.mxu0 %v3639
        %v3710 = vpop.f32.mrf.mxu0
        %v3711 = vadd.f32 0.0, %v3710
        %v3712 = vpop.f32.mrf.mxu0
        %3713 = vdwg.mxu0
        %v3715 = vsel %vm2171, %v3182, 0
        %v3718 = vsel %vm3488, %v3480, 0
        %3720 = vmatprep.subr.mxu0 0.0
        %3721 = vmatpush1.msra.mxu0 0.0
        %3722 = vmatprep.subr.mxu0 0.0
        %3723 = vmatpush1.msra.mxu0 0.0
        %3724 = vmatprep.subr.mxu0 0.0
        %3725 = vmatpush1.msra.mxu0 0.0
        %3726 = vmatprep.subr.mxu0 0.0
        %3727 = vmatpush1.msra.mxu0 0.0
        %3728 = vmatprep.subr.mxu0 0.0
        %3729 = vmatpush1.msra.mxu0 0.0
        %3730 = vmatprep.subr.mxu0 0.0
        %3731 = vmatpush1.msra.mxu0 0.0
        %3732 = vmatprep.subr.mxu0 0.0
        %3733 = vmatpush1.msra.mxu0 0.0
        %3734 = vmatprep.subr.mxu0 0.0
        %3735 = vmatpush1.msra.mxu0 0.0
        %3736 = vmatprep.subr.mxu0 0.0
        %3737 = vmatpush1.msra.mxu0 0.0
        %3738 = vmatprep.subr.mxu0 0.0
        %3739 = vmatpush1.msra.mxu0 0.0
        %3740 = vmatprep.subr.mxu0 0.0
        %3741 = vmatpush1.msra.mxu0 0.0
        %3742 = vmatprep.subr.mxu0 0.0
        %3743 = vmatpush1.msra.mxu0 0.0
        %3744 = vmatprep.subr.mxu0 0.0
        %3745 = vmatpush1.msra.mxu0 0.0
        %3746 = vmatprep.subr.mxu0 0.0
        %3747 = vmatpush1.msra.mxu0 0.0
        %3748 = vmatprep.subr.mxu0 0.0
        %3749 = vmatpush1.msra.mxu0 0.0
        %3750 = vmatprep.subr.mxu0 0.0
        %3751 = vmatpush1.msra.mxu0 %v3718
        %3752 = vmatprep.subr.mxu0 0.0
        %3753 = vmatpush2.msra.mxu0 0.0
        %3754 = vmatprep.subr.mxu0 0.0
        %3755 = vmatpush2.msra.mxu0 0.0
        %3756 = vmatprep.subr.mxu0 0.0
        %3757 = vmatpush2.msra.mxu0 0.0
        %3758 = vmatprep.subr.mxu0 0.0
        %3759 = vmatpush2.msra.mxu0 0.0
        %3760 = vmatprep.subr.mxu0 0.0
        %3761 = vmatpush2.msra.mxu0 0.0
        %3762 = vmatprep.subr.mxu0 0.0
        %3763 = vmatpush2.msra.mxu0 0.0
        %3764 = vmatprep.subr.mxu0 0.0
        %3765 = vmatpush2.msra.mxu0 0.0
        %3766 = vmatprep.subr.mxu0 0.0
        %3767 = vmatpush2.msra.mxu0 0.0
        %3768 = vmatprep.subr.mxu0 0.0
        %3769 = vmatpush2.msra.mxu0 0.0
        %3770 = vmatprep.subr.mxu0 0.0
        %3771 = vmatpush2.msra.mxu0 0.0
        %3772 = vmatprep.subr.mxu0 0.0
        %3773 = vmatpush2.msra.mxu0 0.0
        %3774 = vmatprep.subr.mxu0 0.0
        %3775 = vmatpush2.msra.mxu0 0.0
        %3776 = vmatprep.subr.mxu0 0.0
        %3777 = vmatpush2.msra.mxu0 0.0
        %3778 = vmatprep.subr.mxu0 0.0
        %3779 = vmatpush2.msra.mxu0 0.0
        %3780 = vmatprep.subr.mxu0 0.0
        %3781 = vmatpush2.msra.mxu0 0.0
        %3782 = vmatprep.subr.mxu0 0.0
        %3783 = vmatpush2.msra.mxu0 0.0
        %3784 = vmatprep.mubr.f32.mxu0 0.0
        %3785 = vmatmul.mubr.f32.gmra.mxu0 %v3715
        %v3786 = vpop.f32.mrf.mxu0
        %v3787 = vadd.f32 0.0, %v3786
        %v3788 = vpop.f32.mrf.mxu0
        %3789 = vdwg.mxu0
        %v3791 = vsel %vm2171, %v3255, 0
        %v3794 = vsel %vm3488, %v3481, 0
        %3796 = vmatprep.subr.mxu0 0.0
        %3797 = vmatpush1.msra.mxu0 0.0
        %3798 = vmatprep.subr.mxu0 0.0
        %3799 = vmatpush1.msra.mxu0 0.0
        %3800 = vmatprep.subr.mxu0 0.0
        %3801 = vmatpush1.msra.mxu0 0.0
        %3802 = vmatprep.subr.mxu0 0.0
        %3803 = vmatpush1.msra.mxu0 0.0
        %3804 = vmatprep.subr.mxu0 0.0
        %3805 = vmatpush1.msra.mxu0 0.0
        %3806 = vmatprep.subr.mxu0 0.0
        %3807 = vmatpush1.msra.mxu0 0.0
        %3808 = vmatprep.subr.mxu0 0.0
        %3809 = vmatpush1.msra.mxu0 0.0
        %3810 = vmatprep.subr.mxu0 0.0
        %3811 = vmatpush1.msra.mxu0 0.0
        %3812 = vmatprep.subr.mxu0 0.0
        %3813 = vmatpush1.msra.mxu0 0.0
        %3814 = vmatprep.subr.mxu0 0.0
        %3815 = vmatpush1.msra.mxu0 0.0
        %3816 = vmatprep.subr.mxu0 0.0
        %3817 = vmatpush1.msra.mxu0 0.0
        %3818 = vmatprep.subr.mxu0 0.0
        %3819 = vmatpush1.msra.mxu0 0.0
        %3820 = vmatprep.subr.mxu0 0.0
        %3821 = vmatpush1.msra.mxu0 0.0
        %3822 = vmatprep.subr.mxu0 0.0
        %3823 = vmatpush1.msra.mxu0 0.0
        %3824 = vmatprep.subr.mxu0 0.0
        %3825 = vmatpush1.msra.mxu0 0.0
        %3826 = vmatprep.subr.mxu0 0.0
        %3827 = vmatpush1.msra.mxu0 %v3794
        %3828 = vmatprep.subr.mxu0 0.0
        %3829 = vmatpush2.msra.mxu0 0.0
        %3830 = vmatprep.subr.mxu0 0.0
        %3831 = vmatpush2.msra.mxu0 0.0
        %3832 = vmatprep.subr.mxu0 0.0
        %3833 = vmatpush2.msra.mxu0 0.0
        %3834 = vmatprep.subr.mxu0 0.0
        %3835 = vmatpush2.msra.mxu0 0.0
        %3836 = vmatprep.subr.mxu0 0.0
        %3837 = vmatpush2.msra.mxu0 0.0
        %3838 = vmatprep.subr.mxu0 0.0
        %3839 = vmatpush2.msra.mxu0 0.0
        %3840 = vmatprep.subr.mxu0 0.0
        %3841 = vmatpush2.msra.mxu0 0.0
        %3842 = vmatprep.subr.mxu0 0.0
        %3843 = vmatpush2.msra.mxu0 0.0
        %3844 = vmatprep.subr.mxu0 0.0
        %3845 = vmatpush2.msra.mxu0 0.0
        %3846 = vmatprep.subr.mxu0 0.0
        %3847 = vmatpush2.msra.mxu0 0.0
        %3848 = vmatprep.subr.mxu0 0.0
        %3849 = vmatpush2.msra.mxu0 0.0
        %3850 = vmatprep.subr.mxu0 0.0
        %3851 = vmatpush2.msra.mxu0 0.0
        %3852 = vmatprep.subr.mxu0 0.0
        %3853 = vmatpush2.msra.mxu0 0.0
        %3854 = vmatprep.subr.mxu0 0.0
        %3855 = vmatpush2.msra.mxu0 0.0
        %3856 = vmatprep.subr.mxu0 0.0
        %3857 = vmatpush2.msra.mxu0 0.0
        %3858 = vmatprep.subr.mxu0 0.0
        %3859 = vmatpush2.msra.mxu0 0.0
        %3860 = vmatprep.mubr.f32.mxu0 0.0
        %3861 = vmatmul.mubr.f32.gmra.mxu0 %v3791
        %v3862 = vpop.f32.mrf.mxu0
        %v3863 = vadd.f32 0.0, %v3862
        %v3864 = vpop.f32.mrf.mxu0
        %3865 = vdwg.mxu0
        %v3867 = vsel %vm2171, %v3328, 0
        %v3870 = vsel %vm3488, %v3482, 0
        %3872 = vmatprep.subr.mxu0 0.0
        %3873 = vmatpush1.msra.mxu0 0.0
        %3874 = vmatprep.subr.mxu0 0.0
        %3875 = vmatpush1.msra.mxu0 0.0
        %3876 = vmatprep.subr.mxu0 0.0
        %3877 = vmatpush1.msra.mxu0 0.0
        %3878 = vmatprep.subr.mxu0 0.0
        %3879 = vmatpush1.msra.mxu0 0.0
        %3880 = vmatprep.subr.mxu0 0.0
        %3881 = vmatpush1.msra.mxu0 0.0
        %3882 = vmatprep.subr.mxu0 0.0
        %3883 = vmatpush1.msra.mxu0 0.0
        %3884 = vmatprep.subr.mxu0 0.0
        %3885 = vmatpush1.msra.mxu0 0.0
        %3886 = vmatprep.subr.mxu0 0.0
        %3887 = vmatpush1.msra.mxu0 0.0
        %3888 = vmatprep.subr.mxu0 0.0
        %3889 = vmatpush1.msra.mxu0 0.0
        %3890 = vmatprep.subr.mxu0 0.0
        %3891 = vmatpush1.msra.mxu0 0.0
        %3892 = vmatprep.subr.mxu0 0.0
        %3893 = vmatpush1.msra.mxu0 0.0
        %3894 = vmatprep.subr.mxu0 0.0
        %3895 = vmatpush1.msra.mxu0 0.0
        %3896 = vmatprep.subr.mxu0 0.0
        %3897 = vmatpush1.msra.mxu0 0.0
        %3898 = vmatprep.subr.mxu0 0.0
        %3899 = vmatpush1.msra.mxu0 0.0
        %3900 = vmatprep.subr.mxu0 0.0
        %3901 = vmatpush1.msra.mxu0 0.0
        %3902 = vmatprep.subr.mxu0 0.0
        %3903 = vmatpush1.msra.mxu0 %v3870
        %3904 = vmatprep.subr.mxu0 0.0
        %3905 = vmatpush2.msra.mxu0 0.0
        %3906 = vmatprep.subr.mxu0 0.0
        %3907 = vmatpush2.msra.mxu0 0.0
        %3908 = vmatprep.subr.mxu0 0.0
        %3909 = vmatpush2.msra.mxu0 0.0
        %3910 = vmatprep.subr.mxu0 0.0
        %3911 = vmatpush2.msra.mxu0 0.0
        %3912 = vmatprep.subr.mxu0 0.0
        %3913 = vmatpush2.msra.mxu0 0.0
        %3914 = vmatprep.subr.mxu0 0.0
        %3915 = vmatpush2.msra.mxu0 0.0
        %3916 = vmatprep.subr.mxu0 0.0
        %3917 = vmatpush2.msra.mxu0 0.0
        %3918 = vmatprep.subr.mxu0 0.0
        %3919 = vmatpush2.msra.mxu0 0.0
        %3920 = vmatprep.subr.mxu0 0.0
        %3921 = vmatpush2.msra.mxu0 0.0
        %3922 = vmatprep.subr.mxu0 0.0
        %3923 = vmatpush2.msra.mxu0 0.0
        %3924 = vmatprep.subr.mxu0 0.0
        %3925 = vmatpush2.msra.mxu0 0.0
        %3926 = vmatprep.subr.mxu0 0.0
        %3927 = vmatpush2.msra.mxu0 0.0
        %3928 = vmatprep.subr.mxu0 0.0
        %3929 = vmatpush2.msra.mxu0 0.0
        %3930 = vmatprep.subr.mxu0 0.0
        %3931 = vmatpush2.msra.mxu0 0.0
        %3932 = vmatprep.subr.mxu0 0.0
        %3933 = vmatpush2.msra.mxu0 0.0
        %3934 = vmatprep.subr.mxu0 0.0
        %3935 = vmatpush2.msra.mxu0 0.0
        %3936 = vmatprep.mubr.f32.mxu0 0.0
        %3937 = vmatmul.mubr.f32.gmra.mxu0 %v3867
        %v3938 = vpop.f32.mrf.mxu0
        %v3939 = vadd.f32 0.0, %v3938
        %v3940 = vpop.f32.mrf.mxu0
        %3941 = vdwg.mxu0
        %v3943 = vsel %vm2171, %v3401, 0
        %v3946 = vsel %vm3488, %v3483, 0
        %3948 = vmatprep.subr.mxu0 0.0
        %3949 = vmatpush1.msra.mxu0 0.0
        %3950 = vmatprep.subr.mxu0 0.0
        %3951 = vmatpush1.msra.mxu0 0.0
        %3952 = vmatprep.subr.mxu0 0.0
        %3953 = vmatpush1.msra.mxu0 0.0
        %3954 = vmatprep.subr.mxu0 0.0
        %3955 = vmatpush1.msra.mxu0 0.0
        %3956 = vmatprep.subr.mxu0 0.0
        %3957 = vmatpush1.msra.mxu0 0.0
        %3958 = vmatprep.subr.mxu0 0.0
        %3959 = vmatpush1.msra.mxu0 0.0
        %3960 = vmatprep.subr.mxu0 0.0
        %3961 = vmatpush1.msra.mxu0 0.0
        %3962 = vmatprep.subr.mxu0 0.0
        %3963 = vmatpush1.msra.mxu0 0.0
        %3964 = vmatprep.subr.mxu0 0.0
        %3965 = vmatpush1.msra.mxu0 0.0
        %3966 = vmatprep.subr.mxu0 0.0
        %3967 = vmatpush1.msra.mxu0 0.0
        %3968 = vmatprep.subr.mxu0 0.0
        %3969 = vmatpush1.msra.mxu0 0.0
        %3970 = vmatprep.subr.mxu0 0.0
        %3971 = vmatpush1.msra.mxu0 0.0
        %3972 = vmatprep.subr.mxu0 0.0
        %3973 = vmatpush1.msra.mxu0 0.0
        %3974 = vmatprep.subr.mxu0 0.0
        %3975 = vmatpush1.msra.mxu0 0.0
        %3976 = vmatprep.subr.mxu0 0.0
        %3977 = vmatpush1.msra.mxu0 0.0
        %3978 = vmatprep.subr.mxu0 0.0
        %3979 = vmatpush1.msra.mxu0 %v3946
        %3980 = vmatprep.subr.mxu0 0.0
        %3981 = vmatpush2.msra.mxu0 0.0
        %3982 = vmatprep.subr.mxu0 0.0
        %3983 = vmatpush2.msra.mxu0 0.0
        %3984 = vmatprep.subr.mxu0 0.0
        %3985 = vmatpush2.msra.mxu0 0.0
        %3986 = vmatprep.subr.mxu0 0.0
        %3987 = vmatpush2.msra.mxu0 0.0
        %3988 = vmatprep.subr.mxu0 0.0
        %3989 = vmatpush2.msra.mxu0 0.0
        %3990 = vmatprep.subr.mxu0 0.0
        %3991 = vmatpush2.msra.mxu0 0.0
        %3992 = vmatprep.subr.mxu0 0.0
        %3993 = vmatpush2.msra.mxu0 0.0
        %3994 = vmatprep.subr.mxu0 0.0
        %3995 = vmatpush2.msra.mxu0 0.0
        %3996 = vmatprep.subr.mxu0 0.0
        %3997 = vmatpush2.msra.mxu0 0.0
        %3998 = vmatprep.subr.mxu0 0.0
        %3999 = vmatpush2.msra.mxu0 0.0
        %4000 = vmatprep.subr.mxu0 0.0
        %4001 = vmatpush2.msra.mxu0 0.0
        %4002 = vmatprep.subr.mxu0 0.0
        %4003 = vmatpush2.msra.mxu0 0.0
        %4004 = vmatprep.subr.mxu0 0.0
        %4005 = vmatpush2.msra.mxu0 0.0
        %4006 = vmatprep.subr.mxu0 0.0
        %4007 = vmatpush2.msra.mxu0 0.0
        %4008 = vmatprep.subr.mxu0 0.0
        %4009 = vmatpush2.msra.mxu0 0.0
        %4010 = vmatprep.subr.mxu0 0.0
        %4011 = vmatpush2.msra.mxu0 0.0
        %4012 = vmatprep.mubr.f32.mxu0 0.0
        %4013 = vmatmul.mubr.f32.gmra.mxu0 %v3943
        %v4014 = vpop.f32.mrf.mxu0
        %v4015 = vadd.f32 0.0, %v4014
        %v4016 = vpop.f32.mrf.mxu0
        %4017 = vdwg.mxu0
        %v4019 = vsel %vm2171, %v3474, 0
        %v4022 = vsel %vm3488, %v3484, 0
        %4024 = vmatprep.subr.mxu0 0.0
        %4025 = vmatpush1.msra.mxu0 0.0
        %4026 = vmatprep.subr.mxu0 0.0
        %4027 = vmatpush1.msra.mxu0 0.0
        %4028 = vmatprep.subr.mxu0 0.0
        %4029 = vmatpush1.msra.mxu0 0.0
        %4030 = vmatprep.subr.mxu0 0.0
        %4031 = vmatpush1.msra.mxu0 0.0
        %4032 = vmatprep.subr.mxu0 0.0
        %4033 = vmatpush1.msra.mxu0 0.0
        %4034 = vmatprep.subr.mxu0 0.0
        %4035 = vmatpush1.msra.mxu0 0.0
        %4036 = vmatprep.subr.mxu0 0.0
        %4037 = vmatpush1.msra.mxu0 0.0
        %4038 = vmatprep.subr.mxu0 0.0
        %4039 = vmatpush1.msra.mxu0 0.0
        %4040 = vmatprep.subr.mxu0 0.0
        %4041 = vmatpush1.msra.mxu0 0.0
        %4042 = vmatprep.subr.mxu0 0.0
        %4043 = vmatpush1.msra.mxu0 0.0
        %4044 = vmatprep.subr.mxu0 0.0
        %4045 = vmatpush1.msra.mxu0 0.0
        %4046 = vmatprep.subr.mxu0 0.0
        %4047 = vmatpush1.msra.mxu0 0.0
        %4048 = vmatprep.subr.mxu0 0.0
        %4049 = vmatpush1.msra.mxu0 0.0
        %4050 = vmatprep.subr.mxu0 0.0
        %4051 = vmatpush1.msra.mxu0 0.0
        %4052 = vmatprep.subr.mxu0 0.0
        %4053 = vmatpush1.msra.mxu0 0.0
        %4054 = vmatprep.subr.mxu0 0.0
        %4055 = vmatpush1.msra.mxu0 %v4022
        %4056 = vmatprep.subr.mxu0 0.0
        %4057 = vmatpush2.msra.mxu0 0.0
        %4058 = vmatprep.subr.mxu0 0.0
        %4059 = vmatpush2.msra.mxu0 0.0
        %4060 = vmatprep.subr.mxu0 0.0
        %4061 = vmatpush2.msra.mxu0 0.0
        %4062 = vmatprep.subr.mxu0 0.0
        %4063 = vmatpush2.msra.mxu0 0.0
        %4064 = vmatprep.subr.mxu0 0.0
        %4065 = vmatpush2.msra.mxu0 0.0
        %4066 = vmatprep.subr.mxu0 0.0
        %4067 = vmatpush2.msra.mxu0 0.0
        %4068 = vmatprep.subr.mxu0 0.0
        %4069 = vmatpush2.msra.mxu0 0.0
        %4070 = vmatprep.subr.mxu0 0.0
        %4071 = vmatpush2.msra.mxu0 0.0
        %4072 = vmatprep.subr.mxu0 0.0
        %4073 = vmatpush2.msra.mxu0 0.0
        %4074 = vmatprep.subr.mxu0 0.0
        %4075 = vmatpush2.msra.mxu0 0.0
        %4076 = vmatprep.subr.mxu0 0.0
        %4077 = vmatpush2.msra.mxu0 0.0
        %4078 = vmatprep.subr.mxu0 0.0
        %4079 = vmatpush2.msra.mxu0 0.0
        %4080 = vmatprep.subr.mxu0 0.0
        %4081 = vmatpush2.msra.mxu0 0.0
        %4082 = vmatprep.subr.mxu0 0.0
        %4083 = vmatpush2.msra.mxu0 0.0
        %4084 = vmatprep.subr.mxu0 0.0
        %4085 = vmatpush2.msra.mxu0 0.0
        %4086 = vmatprep.subr.mxu0 0.0
        %4087 = vmatpush2.msra.mxu0 0.0
        %4088 = vmatprep.mubr.f32.mxu0 0.0
        %4089 = vmatmul.mubr.f32.gmra.mxu0 %v4019
        %v4090 = vpop.f32.mrf.mxu0
        %v4091 = vadd.f32 0.0, %v4090
        %v4092 = vpop.f32.mrf.mxu0
        %4093 = vdwg.mxu0
        %v4094 = vsel %vm329, %v3559, 0.0
        %v4095 = vsel %vm329, %v3635, 0.0
        %v4096 = vadd.f32 %v4094, %v4095
        %v4097 = vsel %vm329, %v3711, 0.0
        %v4098 = vadd.f32 %v4096, %v4097
        %v4099 = vsel %vm329, %v3787, 0.0
        %v4100 = vadd.f32 %v4098, %v4099
        %v4101 = vsel %vm329, %v3863, 0.0
        %v4102 = vadd.f32 %v4100, %v4101
        %v4103 = vsel %vm329, %v3939, 0.0
        %v4104 = vadd.f32 %v4102, %v4103
        %v4105 = vsel %vm329, %v4015, 0.0
        %v4106 = vadd.f32 %v4104, %v4105
        %v4107 = vsel %vm329, %v4091, 0.0
        %v4108 = vadd.f32 %v4106, %v4107
        %v4109 = vld [vmem:[%s6] sm:$0x1]
        %v4111 = vlaneseq
        %v4112 = vshrl.u32 %v4111, 7
        %v4113 = vsub.s32 0, %v4112
        %v4114 = vrot.slane %v4109, %v4113
        %v4116 = vadd.f32 %v4108, %v4114
        %4117 = vst.msk [vmem:[%s284] sm:$0xff] %vm329, %v4116
        %s4118 = sand.u32 %s186, 1
        %s4119 = scalar_lea.sflag [#allocation3], %s4118
        %s4120 = sand.u32 %s186, 1
        %s4121 = smul.addr %s4120, 8
        %s4122 = scalar_lea.vmem [#allocation2], %s4121
        // Predicated region
        $region49: #{tpu_custom_call.1} parent=47 // pred_check
          %p4123 = pneg %p196
        $region50: #{tpu_custom_call.1} parent=47 // pred_check_branch
          %4125 = sbr.rel (%p4123) target = $region52
        $region51: #{tpu_custom_call.1} parent=47 // pred_region
          %s4127 = ssub.s32 128, 128
          %4128 = vsyncadd %s4119, %s4127
          %s4129 = smul.addr %s21, 128
          %s4130 = scalar_lea.hbm %s7, %s4129
          %s4132 = sshll.u32 %s4122, 4
          %s4133 = int_to_ptr.vmem [resolvable:$true] %s4132
          %4135 = dma.vmem_to_hbm [thread:$0]  %s4133, 128, %s4130, %s4119
        $region52: #{tpu_custom_call.1} parent=47 // pred_fallthru
          _
      $region48: #{tpu_custom_call.1} parent=5 // pred_fallthru
        _
      %p4136 = scmp.le.s32.totalorder 2, %s16
      // Predicated region
      $region53: #{tpu_custom_call.1} parent=5 // pred_check
        %p4137 = pneg %p4136
      $region54: #{tpu_custom_call.1} parent=5 // pred_check_branch
        %4139 = sbr.rel (%p4137) target = $region56
      $region55: #{tpu_custom_call.1} parent=5 // pred_region
        %s4140 = ssub.s32 %s16, 2
        // Predicated region
        $region57: #{tpu_custom_call.1} parent=55 // pred_check
          %p4141 = pneg %p202
        $region58: #{tpu_custom_call.1} parent=55 // pred_check_branch
          %4143 = sbr.rel (%p4141) target = $region60
        $region59: #{tpu_custom_call.1} parent=55 // pred_region
          %s4144 = sand.u32 %s187, 1
          %s4145 = scalar_lea.sflag [#allocation3], %s4144
          %s4146 = sand.u32 %s187, 1
          %s4147 = smul.addr %s4146, 8
          %s4148 = scalar_lea.vmem [#allocation2], %s4147
          %4149 = dma.done %s4145, 128
        $region60: #{tpu_custom_call.1} parent=55 // pred_fallthru
          _
      $region56: #{tpu_custom_call.1} parent=5 // pred_fallthru
        _
    $region6: #{tpu_custom_call.1} parent=1 // loop_footer
      %s20 = sadd.s32 1, %s16
    $region7: #{tpu_custom_call.1} parent=1 // loop_footer_branch
      %15 = sbr.rel target = $region3
    $region8: #{tpu_custom_call.1} parent=1 // loop_exit
      _
    %4150 = vsyncpa [#allocation3], 1
    %s4151 = scalar_lea.sflag [#allocation3], 1
    %4152 = vsyncpa %s4151, 1

</llo_original>
